<compile_context>
chip_gen: v7x
topology: tpu7x:2x2x1
jax: 0.10.0
libtpu: 0.0.40
codegen_flags: <defaults>
</compile_context>

<pallas_src>
import functools

import jax
import jax.numpy as jnp
from jax import lax
from jax.experimental import pallas as pl
from jax.experimental.pallas import tpu as pltpu

_EPS = 1e-5  # BatchNorm2d default eps
_VMEM = pl.BlockSpec(memory_space=pltpu.MemorySpace.VMEM)


def _round_up(x, m):
    return (x + m - 1) // m * m


def _convlayer_kernel(xp_ref, w_ref, b_ref, g_ref, be_ref, o_ref, *,
                      kh, kw, use_norm, use_act):
    # xp_ref: (B, Hp, Wp, Cin_p)      input, spatially zero-padded, channels padded
    # w_ref : (kh*kw*Cin_p, Cp)       im2col weight, Cout zero-padded to lane-dense Cp
    # b_ref : (1, Cp)  conv bias      g_ref/be_ref: (1, Cp) BN gamma / beta
    # o_ref : (B, Ho, Wo, Cp)
    B, Hp, Wp, Cin = xp_ref.shape
    Ho = Hp - (kh - 1)
    Wo = Wp - (kw - 1)
    Cp = w_ref.shape[-1]

    xp = xp_ref[...]

    # ---- im2col: concatenate the kh*kw shifted taps along the channel (lane) axis ----
    taps = []
    for dy in range(kh):
        for dx in range(kw):
            taps.append(xp[:, dy:dy + Ho, dx:dx + Wo, :])
    patches = jnp.concatenate(taps, axis=-1).reshape(B * Ho * Wo, kh * kw * Cin)

    # ---- one MXU matmul: bf16 operands, f32 accumulate ----
    acc = jnp.dot(patches.astype(jnp.bfloat16),
                  w_ref[...].astype(jnp.bfloat16),
                  preferred_element_type=jnp.float32)
    acc = acc + b_ref[...].astype(jnp.float32)

    # ---- BatchNorm (training-mode batch stats), single-pass sum / sum-of-squares ----
    if use_norm:
        inv_n = 1.0 / float(B * Ho * Wo)
        s = jnp.sum(acc, axis=0, keepdims=True)
        ss = jnp.sum(acc * acc, axis=0, keepdims=True)
        mean = s * inv_n
        var = jnp.maximum(ss * inv_n - mean * mean, 0.0)
        acc = (acc - mean) * lax.rsqrt(var + _EPS) * g_ref[...] + be_ref[...]

    # ---- SiLU ----
    if use_act:
        acc = acc * jax.nn.sigmoid(acc)

    o_ref[...] = acc.reshape(B, Ho, Wo, Cp).astype(o_ref.dtype)


def conv_layer_forward(x_nchw, weight_oihw, *, bn_gamma=None, bn_beta=None,
                       conv_bias=None, stride=(1, 1), groups=1,
                       use_norm=True, use_act=True):
    """Fused ConvLayer forward: Conv2d(bias optional) -> BatchNorm2d -> SiLU."""
    assert stride == (1, 1), "TODO(synk): stride > 1 not implemented in the Pallas kernel"
    assert groups == 1, "TODO(synk): groups > 1 not implemented in the Pallas kernel"

    Cout, Cin, kh, kw = weight_oihw.shape
    B, _, H, W = x_nchw.shape
    ph, pw = (kh - 1) // 2, (kw - 1) // 2
    Ho = H + 2 * ph - kh + 1
    Wo = W + 2 * pw - kw + 1

    Cin_p = _round_up(max(Cin, 8), 8)      # sublane-friendly K for im2col
    Cp = _round_up(max(Cout, 128), 128)    # lane-dense output channels

    # ---- glue: NCHW -> NHWC, spatial zero-pad, channel zero-pad ----
    x = jnp.transpose(x_nchw, (0, 2, 3, 1))
    x = jnp.pad(x, ((0, 0), (ph, ph), (pw, pw), (0, Cin_p - Cin)))

    # ---- glue: OIHW -> HWIO, pad channels, flatten to im2col weight ----
    w = jnp.transpose(weight_oihw, (2, 3, 1, 0)).astype(jnp.float32)
    w = jnp.pad(w, ((0, 0), (0, 0), (0, Cin_p - Cin), (0, Cp - Cout)))
    w = w.reshape(kh * kw * Cin_p, Cp)

    def _pad_c(v, fill):
        if v is None:
            v = jnp.full((Cout,), fill, jnp.float32)
        return jnp.pad(v.astype(jnp.float32), (0, Cp - Cout)).reshape(1, Cp)

    b = _pad_c(conv_bias, 0.0)
    g = _pad_c(bn_gamma, 1.0)
    be = _pad_c(bn_beta, 0.0)

    kern = functools.partial(_convlayer_kernel, kh=kh, kw=kw,
                             use_norm=use_norm, use_act=use_act)
    out = pl.pallas_call(
        kern,
        out_shape=jax.ShapeDtypeStruct((B, Ho, Wo, Cp), x_nchw.dtype),
        in_specs=[_VMEM] * 5,
        out_specs=_VMEM,
        compiler_params=pltpu.CompilerParams(vmem_limit_bytes=48 * 1024 * 1024),
    )(x, w, b, g, be)

    # strip channel padding, back to NCHW
    return jnp.transpose(out[..., :Cout], (0, 3, 1, 2))


# -------------------- pure-JAX reference (correctness check) --------------------
def conv_layer_ref(x_nchw, weight_oihw, bn_gamma, bn_beta, conv_bias=None,
                   use_norm=True, use_act=True):
    Cout, Cin, kh, kw = weight_oihw.shape
    ph, pw = (kh - 1) // 2, (kw - 1) // 2
    y = lax.conv_general_dilated(
        x_nchw, weight_oihw, window_strides=(1, 1),
        padding=((ph, ph), (pw, pw)),
        dimension_numbers=('NCHW', 'OIHW', 'NCHW'),
        precision=lax.Precision.HIGHEST)
    if conv_bias is not None:
        y = y + conv_bias[None, :, None, None]
    if use_norm:
        m = jnp.mean(y, axis=(0, 2, 3), keepdims=True)
        v = jnp.mean((y - m) ** 2, axis=(0, 2, 3), keepdims=True)
        y = (y - m) * lax.rsqrt(v + _EPS) * bn_gamma[None, :, None, None] \
            + bn_beta[None, :, None, None]
    if use_act:
        y = y * jax.nn.sigmoid(y)
    return y


if __name__ == "__main__":
    key = jax.random.PRNGKey(0)
    B, Cin, H, W = 2, 4, 16, 16
    Cout, k = 32, 3

    k1, k2, k3, k4 = jax.random.split(key, 4)
    x = jax.random.normal(k1, (B, Cin, H, W), jnp.float32)
    weight = 0.1 * jax.random.normal(k2, (Cout, Cin, k, k), jnp.float32)
    gamma = 1.0 + 0.1 * jax.random.normal(k3, (Cout,), jnp.float32)
    beta = 0.1 * jax.random.normal(k4, (Cout,), jnp.float32)

    y = conv_layer_forward(x, weight, bn_gamma=gamma, bn_beta=beta)
    y = jax.block_until_ready(y)
    assert y.shape == (B, Cout, H, W), y.shape

    y_ref = conv_layer_ref(x, weight, gamma, beta)
    err = float(jnp.max(jnp.abs(y - y_ref)))
    assert err < 5e-2, f"max abs error vs reference: {err}"

    print("KERNEL_OK")
</pallas_src>

<mosaic_0001>
module attributes {stable_mosaic.version = 11 : i64} {
  func.func @_convlayer_kernel(%arg0: memref<2x18x18x8xf32, #tpu.memory_space<vmem>>, %arg1: memref<72x128xf32, #tpu.memory_space<vmem>>, %arg2: memref<1x128xf32, #tpu.memory_space<vmem>>, %arg3: memref<1x128xf32, #tpu.memory_space<vmem>>, %arg4: memref<1x128xf32, #tpu.memory_space<vmem>>, %arg5: memref<2x16x16x128xf32, #tpu.memory_space<vmem>>) attributes {dimension_semantics = [], scalar_prefetch = 0 : i64, scratch_operands = 0 : i64, tpu.core_type = #tpu.core_type<tc>} {
    %c0 = arith.constant 0 : index
    %c0_0 = arith.constant 0 : index
    %c0_1 = arith.constant 0 : index
    %c0_2 = arith.constant 0 : index
    %0 = vector.load %arg0[%c0, %c0_0, %c0_1, %c0_2] : memref<2x18x18x8xf32, #tpu.memory_space<vmem>>, vector<2x18x18x8xf32>
    %1 = vector.extract_strided_slice %0 {offsets = [0, 0, 0, 0], sizes = [2, 16, 16, 8], strides = [1, 1, 1, 1]} : vector<2x18x18x8xf32> to vector<2x16x16x8xf32>
    %2 = vector.extract_strided_slice %0 {offsets = [0, 0, 1, 0], sizes = [2, 16, 16, 8], strides = [1, 1, 1, 1]} : vector<2x18x18x8xf32> to vector<2x16x16x8xf32>
    %3 = vector.extract_strided_slice %0 {offsets = [0, 0, 2, 0], sizes = [2, 16, 16, 8], strides = [1, 1, 1, 1]} : vector<2x18x18x8xf32> to vector<2x16x16x8xf32>
    %4 = vector.extract_strided_slice %0 {offsets = [0, 1, 0, 0], sizes = [2, 16, 16, 8], strides = [1, 1, 1, 1]} : vector<2x18x18x8xf32> to vector<2x16x16x8xf32>
    %5 = vector.extract_strided_slice %0 {offsets = [0, 1, 1, 0], sizes = [2, 16, 16, 8], strides = [1, 1, 1, 1]} : vector<2x18x18x8xf32> to vector<2x16x16x8xf32>
    %6 = vector.extract_strided_slice %0 {offsets = [0, 1, 2, 0], sizes = [2, 16, 16, 8], strides = [1, 1, 1, 1]} : vector<2x18x18x8xf32> to vector<2x16x16x8xf32>
    %7 = vector.extract_strided_slice %0 {offsets = [0, 2, 0, 0], sizes = [2, 16, 16, 8], strides = [1, 1, 1, 1]} : vector<2x18x18x8xf32> to vector<2x16x16x8xf32>
    %8 = vector.extract_strided_slice %0 {offsets = [0, 2, 1, 0], sizes = [2, 16, 16, 8], strides = [1, 1, 1, 1]} : vector<2x18x18x8xf32> to vector<2x16x16x8xf32>
    %9 = vector.extract_strided_slice %0 {offsets = [0, 2, 2, 0], sizes = [2, 16, 16, 8], strides = [1, 1, 1, 1]} : vector<2x18x18x8xf32> to vector<2x16x16x8xf32>
    %10 = tpu.concatenate %1, %2, %3, %4, %5, %6, %7, %8, %9 in 3 : vector<2x16x16x8xf32>, vector<2x16x16x8xf32>, vector<2x16x16x8xf32>, vector<2x16x16x8xf32>, vector<2x16x16x8xf32>, vector<2x16x16x8xf32>, vector<2x16x16x8xf32>, vector<2x16x16x8xf32>, vector<2x16x16x8xf32> -> vector<2x16x16x72xf32>
    %11 = vector.shape_cast %10 : vector<2x16x16x72xf32> to vector<512x72xf32>
    %12 = arith.truncf %11 : vector<512x72xf32> to vector<512x72xbf16>
    %c0_3 = arith.constant 0 : index
    %c0_4 = arith.constant 0 : index
    %13 = vector.load %arg1[%c0_3, %c0_4] : memref<72x128xf32, #tpu.memory_space<vmem>>, vector<72x128xf32>
    %14 = arith.truncf %13 : vector<72x128xf32> to vector<72x128xbf16>
    %cst = arith.constant dense<0.000000e+00> : vector<512x128xf32>
    %15 = tpu.matmul %12, %14, %cst {dimension_numbers = #tpu.dot_dimension_numbers<[1], [0], [0], [1], [0, 0, 1, 1], [], []>} : vector<512x72xbf16>, vector<72x128xbf16>, vector<512x128xf32> -> vector<512x128xf32>
    %c0_5 = arith.constant 0 : index
    %c0_6 = arith.constant 0 : index
    %16 = vector.load %arg2[%c0_5, %c0_6] : memref<1x128xf32, #tpu.memory_space<vmem>>, vector<1x128xf32>
    %17 = vector.broadcast %16 : vector<1x128xf32> to vector<512x128xf32>
    %18 = arith.addf %15, %17 : vector<512x128xf32>
    %cst_7 = arith.constant dense<0.000000e+00> : vector<128xf32>
    %19 = vector.multi_reduction <add>, %18, %cst_7 [0] : vector<512x128xf32> to vector<128xf32>
    %20 = vector.shape_cast %19 : vector<128xf32> to vector<1x128xf32>
    %21 = arith.mulf %18, %18 : vector<512x128xf32>
    %cst_8 = arith.constant dense<0.000000e+00> : vector<128xf32>
    %22 = vector.multi_reduction <add>, %21, %cst_8 [0] : vector<512x128xf32> to vector<128xf32>
    %23 = vector.shape_cast %22 : vector<128xf32> to vector<1x128xf32>
    %cst_9 = arith.constant 0.001953125 : f32
    %24 = vector.broadcast %cst_9 : f32 to vector<1x128xf32>
    %25 = arith.mulf %20, %24 : vector<1x128xf32>
    %cst_10 = arith.constant 0.001953125 : f32
    %26 = vector.broadcast %cst_10 : f32 to vector<1x128xf32>
    %27 = arith.mulf %23, %26 : vector<1x128xf32>
    %28 = arith.mulf %25, %25 : vector<1x128xf32>
    %29 = arith.subf %27, %28 : vector<1x128xf32>
    %cst_11 = arith.constant 0.000000e+00 : f32
    %30 = vector.broadcast %cst_11 : f32 to vector<1x128xf32>
    %31 = arith.maximumf %29, %30 : vector<1x128xf32>
    %32 = vector.broadcast %25 : vector<1x128xf32> to vector<512x128xf32>
    %33 = arith.subf %18, %32 : vector<512x128xf32>
    %cst_12 = arith.constant 9.99999974E-6 : f32
    %34 = vector.broadcast %cst_12 : f32 to vector<1x128xf32>
    %35 = arith.addf %31, %34 : vector<1x128xf32>
    %36 = math.rsqrt %35 : vector<1x128xf32>
    %37 = vector.broadcast %36 : vector<1x128xf32> to vector<512x128xf32>
    %38 = arith.mulf %33, %37 : vector<512x128xf32>
    %c0_13 = arith.constant 0 : index
    %c0_14 = arith.constant 0 : index
    %39 = vector.load %arg3[%c0_13, %c0_14] : memref<1x128xf32, #tpu.memory_space<vmem>>, vector<1x128xf32>
    %40 = vector.broadcast %39 : vector<1x128xf32> to vector<512x128xf32>
    %41 = arith.mulf %38, %40 : vector<512x128xf32>
    %c0_15 = arith.constant 0 : index
    %c0_16 = arith.constant 0 : index
    %42 = vector.load %arg4[%c0_15, %c0_16] : memref<1x128xf32, #tpu.memory_space<vmem>>, vector<1x128xf32>
    %43 = vector.broadcast %42 : vector<1x128xf32> to vector<512x128xf32>
    %44 = arith.addf %41, %43 : vector<512x128xf32>
    %45 = arith.negf %44 : vector<512x128xf32>
    %46 = math.exp %45 : vector<512x128xf32>
    %cst_17 = arith.constant 1.000000e+00 : f32
    %47 = vector.broadcast %cst_17 : f32 to vector<512x128xf32>
    %48 = arith.addf %47, %46 : vector<512x128xf32>
    %49 = arith.divf %47, %48 : vector<512x128xf32>
    %50 = arith.mulf %44, %49 : vector<512x128xf32>
    %51 = vector.shape_cast %50 : vector<512x128xf32> to vector<2x16x16x128xf32>
    %c0_18 = arith.constant 0 : index
    %c0_19 = arith.constant 0 : index
    %c0_20 = arith.constant 0 : index
    %c0_21 = arith.constant 0 : index
    %52 = vector.load %arg5[%c0_18, %c0_19, %c0_20, %c0_21] : memref<2x16x16x128xf32, #tpu.memory_space<vmem>>, vector<2x16x16x128xf32>
    tpu.vector_store %arg5[%c0_18, %c0_19, %c0_20, %c0_21], %51 {strides = array<i32>} : memref<2x16x16x128xf32, #tpu.memory_space<vmem>>, vector<2x16x16x128xf32>,
    return
  }
}

</mosaic_0001>

<llo_original>
// kernel: tpu_custom_call.1
$region0: #{tpu_custom_call.1}
  #allocation0 [shape = 'u32[]', space=smem, size = 0x4, offset = 0x4, fixed_abs, tag = 'smem constant byte address 0x4 - core index']
  #allocation1 [shape = 'u32[144,128]{1,0:T(1,128)}', space=vmem, size = 0x12000, scoped, tag = 'internal scratch']
  %s0 = inlined_call_operand.vmem [shape: f32[2,18,18,8], index: 0, kind: input, shape index: {}]
  %s1 = inlined_call_operand.vmem [shape: f32[72,128], index: 1, kind: input, shape index: {}]
  %s2 = inlined_call_operand.vmem [shape: f32[1,128], index: 2, kind: input, shape index: {}]
  %s3 = inlined_call_operand.vmem [shape: f32[1,128], index: 3, kind: input, shape index: {}]
  %s4 = inlined_call_operand.vmem [shape: f32[1,128], index: 4, kind: input, shape index: {}]
  %s5 = inlined_call_operand.hbm [shape: f32[2,16,16,128], index: 5, kind: output, shape index: {}]
  %s6 = sld [smem:[#allocation0]]
  $region30: #{tpu_custom_call.1} parent=0
    _
  %s8 = ssub.s32 1, %s6
  %s9 = scalar_select 0, %s8, %s6
  $region1: #{tpu_custom_call.1} parent=0
    #allocation2 [shape = 'u8[262144]{0}', space=vmem, size = 0x40000, scoped, tag = 'output window, operand 0, single buffered']
    #allocation3 [shape = 's32[1]{0}', space=sflag, size = 0x4, scoped, tag = 'scoped memory for tpu_custom_call.1']
    %10 = vsyncpa [#allocation3], 0
    // Predicated region
    $region2: #{tpu_custom_call.1} parent=1 // pred_check
      _
    $region3: #{tpu_custom_call.1} parent=1 // pred_check_branch
      %12 = sbr.rel (0) target = $region5
    $region4: #{tpu_custom_call.1} parent=1 // pred_region
      _
    $region5: #{tpu_custom_call.1} parent=1 // pred_fallthru
      _
    // Predicated region
    $region6: #{tpu_custom_call.1} parent=1 // pred_check
      _
    $region7: #{tpu_custom_call.1} parent=1 // pred_check_branch
      %14 = sbr.rel (0) target = $region9
    $region8: #{tpu_custom_call.1} parent=1 // pred_region
      _
    $region9: #{tpu_custom_call.1} parent=1 // pred_fallthru
      _
    // Predicated region
    $region10: #{tpu_custom_call.1} parent=1 // pred_check
      _
    $region11: #{tpu_custom_call.1} parent=1 // pred_check_branch
      %16 = sbr.rel (0) target = $region13
    $region12: #{tpu_custom_call.1} parent=1 // pred_region
      _
    $region13: #{tpu_custom_call.1} parent=1 // pred_fallthru
      _
    // Predicated region
    $region14: #{tpu_custom_call.1} parent=1 // pred_check
      _
    $region15: #{tpu_custom_call.1} parent=1 // pred_check_branch
      %18 = sbr.rel (0) target = $region17
    $region16: #{tpu_custom_call.1} parent=1 // pred_region
      _
    $region17: #{tpu_custom_call.1} parent=1 // pred_fallthru
      _
    // Predicated region
    $region18: #{tpu_custom_call.1} parent=1 // pred_check
      _
    $region19: #{tpu_custom_call.1} parent=1 // pred_check_branch
      %20 = sbr.rel (0) target = $region21
    $region20: #{tpu_custom_call.1} parent=1 // pred_region
      _
    $region21: #{tpu_custom_call.1} parent=1 // pred_fallthru
      _
    %v22 = vld [vmem:[%s0] sm:$0xff]
    %v23 = vld [vmem:[%s0 + $0x8] sm:$0xff]
    %v24 = vld [vmem:[%s0 + $0x10] sm:$0x3]
    %v25 = vld [vmem:[%s0 + $0x18] sm:$0xff]
    %v26 = vld [vmem:[%s0 + $0x20] sm:$0xff]
    %v27 = vld [vmem:[%s0 + $0x28] sm:$0x3]
    %v28 = vld [vmem:[%s0 + $0x30] sm:$0xff]
    %v29 = vld [vmem:[%s0 + $0x38] sm:$0xff]
    %v30 = vld [vmem:[%s0 + $0x40] sm:$0x3]
    %v31 = vld [vmem:[%s0 + $0x48] sm:$0xff]
    %v32 = vld [vmem:[%s0 + $0x50] sm:$0xff]
    %v33 = vld [vmem:[%s0 + $0x58] sm:$0x3]
    %v34 = vld [vmem:[%s0 + $0x60] sm:$0xff]
    %v35 = vld [vmem:[%s0 + $0x68] sm:$0xff]
    %v36 = vld [vmem:[%s0 + $0x70] sm:$0x3]
    %v37 = vld [vmem:[%s0 + $0x78] sm:$0xff]
    %v38 = vld [vmem:[%s0 + $0x80] sm:$0xff]
    %v39 = vld [vmem:[%s0 + $0x88] sm:$0x3]
    %v40 = vld [vmem:[%s0 + $0x90] sm:$0xff]
    %v41 = vld [vmem:[%s0 + $0x98] sm:$0xff]
    %v42 = vld [vmem:[%s0 + $0xa0] sm:$0x3]
    %v43 = vld [vmem:[%s0 + $0xa8] sm:$0xff]
    %v44 = vld [vmem:[%s0 + $0xb0] sm:$0xff]
    %v45 = vld [vmem:[%s0 + $0xb8] sm:$0x3]
    %v46 = vld [vmem:[%s0 + $0xc0] sm:$0xff]
    %v47 = vld [vmem:[%s0 + $0xc8] sm:$0xff]
    %v48 = vld [vmem:[%s0 + $0xd0] sm:$0x3]
    %v49 = vld [vmem:[%s0 + $0xd8] sm:$0xff]
    %v50 = vld [vmem:[%s0 + $0xe0] sm:$0xff]
    %v51 = vld [vmem:[%s0 + $0xe8] sm:$0x3]
    %v52 = vld [vmem:[%s0 + $0xf0] sm:$0xff]
    %v53 = vld [vmem:[%s0 + $0xf8] sm:$0xff]
    %v54 = vld [vmem:[%s0 + $0x100] sm:$0x3]
    %v55 = vld [vmem:[%s0 + $0x108] sm:$0xff]
    %v56 = vld [vmem:[%s0 + $0x110] sm:$0xff]
    %v57 = vld [vmem:[%s0 + $0x118] sm:$0x3]
    %v58 = vld [vmem:[%s0 + $0x120] sm:$0xff]
    %v59 = vld [vmem:[%s0 + $0x128] sm:$0xff]
    %v60 = vld [vmem:[%s0 + $0x130] sm:$0x3]
    %v61 = vld [vmem:[%s0 + $0x138] sm:$0xff]
    %v62 = vld [vmem:[%s0 + $0x140] sm:$0xff]
    %v63 = vld [vmem:[%s0 + $0x148] sm:$0x3]
    %v64 = vld [vmem:[%s0 + $0x150] sm:$0xff]
    %v65 = vld [vmem:[%s0 + $0x158] sm:$0xff]
    %v66 = vld [vmem:[%s0 + $0x160] sm:$0x3]
    %v67 = vld [vmem:[%s0 + $0x168] sm:$0xff]
    %v68 = vld [vmem:[%s0 + $0x170] sm:$0xff]
    %v69 = vld [vmem:[%s0 + $0x178] sm:$0x3]
    %v70 = vld [vmem:[%s0 + $0x180] sm:$0xff]
    %v71 = vld [vmem:[%s0 + $0x188] sm:$0xff]
    %v72 = vld [vmem:[%s0 + $0x190] sm:$0x3]
    %v73 = vld [vmem:[%s0 + $0x198] sm:$0xff]
    %v74 = vld [vmem:[%s0 + $0x1a0] sm:$0xff]
    %v75 = vld [vmem:[%s0 + $0x1a8] sm:$0x3]
    %v76 = vld [vmem:[%s0 + $0x1b0] sm:$0xff]
    %v77 = vld [vmem:[%s0 + $0x1b8] sm:$0xff]
    %v78 = vld [vmem:[%s0 + $0x1c0] sm:$0x3]
    %v79 = vld [vmem:[%s0 + $0x1c8] sm:$0xff]
    %v80 = vld [vmem:[%s0 + $0x1d0] sm:$0xff]
    %v81 = vld [vmem:[%s0 + $0x1d8] sm:$0x3]
    %v82 = vld [vmem:[%s0 + $0x1e0] sm:$0xff]
    %v83 = vld [vmem:[%s0 + $0x1e8] sm:$0xff]
    %v84 = vld [vmem:[%s0 + $0x1f0] sm:$0x3]
    %v85 = vld [vmem:[%s0 + $0x1f8] sm:$0xff]
    %v86 = vld [vmem:[%s0 + $0x200] sm:$0xff]
    %v87 = vld [vmem:[%s0 + $0x208] sm:$0x3]
    %v88 = vld [vmem:[%s0 + $0x210] sm:$0xff]
    %v89 = vld [vmem:[%s0 + $0x218] sm:$0xff]
    %v90 = vld [vmem:[%s0 + $0x220] sm:$0x3]
    %v91 = vld [vmem:[%s0 + $0x228] sm:$0xff]
    %v92 = vld [vmem:[%s0 + $0x230] sm:$0xff]
    %v93 = vld [vmem:[%s0 + $0x238] sm:$0x3]
    %v94 = vld [vmem:[%s0 + $0x240] sm:$0xff]
    %v95 = vld [vmem:[%s0 + $0x248] sm:$0xff]
    %v96 = vld [vmem:[%s0 + $0x250] sm:$0x3]
    %v97 = vld [vmem:[%s0 + $0x258] sm:$0xff]
    %v98 = vld [vmem:[%s0 + $0x260] sm:$0xff]
    %v99 = vld [vmem:[%s0 + $0x268] sm:$0x3]
    %v100 = vld [vmem:[%s0 + $0x270] sm:$0xff]
    %v101 = vld [vmem:[%s0 + $0x278] sm:$0xff]
    %v102 = vld [vmem:[%s0 + $0x280] sm:$0x3]
    %v103 = vld [vmem:[%s0 + $0x288] sm:$0xff]
    %v104 = vld [vmem:[%s0 + $0x290] sm:$0xff]
    %v105 = vld [vmem:[%s0 + $0x298] sm:$0x3]
    %v106 = vld [vmem:[%s0 + $0x2a0] sm:$0xff]
    %v107 = vld [vmem:[%s0 + $0x2a8] sm:$0xff]
    %v108 = vld [vmem:[%s0 + $0x2b0] sm:$0x3]
    %v109 = vld [vmem:[%s0 + $0x2b8] sm:$0xff]
    %v110 = vld [vmem:[%s0 + $0x2c0] sm:$0xff]
    %v111 = vld [vmem:[%s0 + $0x2c8] sm:$0x3]
    %v112 = vld [vmem:[%s0 + $0x2d0] sm:$0xff]
    %v113 = vld [vmem:[%s0 + $0x2d8] sm:$0xff]
    %v114 = vld [vmem:[%s0 + $0x2e0] sm:$0x3]
    %v115 = vld [vmem:[%s0 + $0x2e8] sm:$0xff]
    %v116 = vld [vmem:[%s0 + $0x2f0] sm:$0xff]
    %v117 = vld [vmem:[%s0 + $0x2f8] sm:$0x3]
    %v118 = vld [vmem:[%s0 + $0x300] sm:$0xff]
    %v119 = vld [vmem:[%s0 + $0x308] sm:$0xff]
    %v120 = vld [vmem:[%s0 + $0x310] sm:$0x3]
    %v121 = vld [vmem:[%s0 + $0x318] sm:$0xff]
    %v122 = vld [vmem:[%s0 + $0x320] sm:$0xff]
    %v123 = vld [vmem:[%s0 + $0x328] sm:$0x3]
    %v124 = vld [vmem:[%s0 + $0x330] sm:$0xff]
    %v125 = vld [vmem:[%s0 + $0x338] sm:$0xff]
    %v126 = vld [vmem:[%s0 + $0x340] sm:$0x3]
    %v127 = vld [vmem:[%s0 + $0x348] sm:$0xff]
    %v128 = vld [vmem:[%s0 + $0x350] sm:$0xff]
    %v129 = vld [vmem:[%s0 + $0x358] sm:$0x3]
    %vm226 = vcmask 1046528
    %v227 = vrot.slane %v22, 1
    %v228 = vrot.slane %v23, 1
    %v229 = vsel %vm226, %v227, %v228
    %v230 = vrot.slane %v24, 1
    %v231 = vsel %vm226, %v228, %v230
    %v232 = vrot.slane %v25, 1
    %v233 = vrot.slane %v26, 1
    %v234 = vsel %vm226, %v232, %v233
    %v235 = vrot.slane %v27, 1
    %v236 = vsel %vm226, %v233, %v235
    %v237 = vrot.slane %v28, 1
    %v238 = vrot.slane %v29, 1
    %v239 = vsel %vm226, %v237, %v238
    %v240 = vrot.slane %v30, 1
    %v241 = vsel %vm226, %v238, %v240
    %v242 = vrot.slane %v31, 1
    %v243 = vrot.slane %v32, 1
    %v244 = vsel %vm226, %v242, %v243
    %v245 = vrot.slane %v33, 1
    %v246 = vsel %vm226, %v243, %v245
    %v247 = vrot.slane %v34, 1
    %v248 = vrot.slane %v35, 1
    %v249 = vsel %vm226, %v247, %v248
    %v250 = vrot.slane %v36, 1
    %v251 = vsel %vm226, %v248, %v250
    %v252 = vrot.slane %v37, 1
    %v253 = vrot.slane %v38, 1
    %v254 = vsel %vm226, %v252, %v253
    %v255 = vrot.slane %v39, 1
    %v256 = vsel %vm226, %v253, %v255
    %v257 = vrot.slane %v40, 1
    %v258 = vrot.slane %v41, 1
    %v259 = vsel %vm226, %v257, %v258
    %v260 = vrot.slane %v42, 1
    %v261 = vsel %vm226, %v258, %v260
    %v262 = vrot.slane %v43, 1
    %v263 = vrot.slane %v44, 1
    %v264 = vsel %vm226, %v262, %v263
    %v265 = vrot.slane %v45, 1
    %v266 = vsel %vm226, %v263, %v265
    %v267 = vrot.slane %v46, 1
    %v268 = vrot.slane %v47, 1
    %v269 = vsel %vm226, %v267, %v268
    %v270 = vrot.slane %v48, 1
    %v271 = vsel %vm226, %v268, %v270
    %v272 = vrot.slane %v49, 1
    %v273 = vrot.slane %v50, 1
    %v274 = vsel %vm226, %v272, %v273
    %v275 = vrot.slane %v51, 1
    %v276 = vsel %vm226, %v273, %v275
    %v277 = vrot.slane %v52, 1
    %v278 = vrot.slane %v53, 1
    %v279 = vsel %vm226, %v277, %v278
    %v280 = vrot.slane %v54, 1
    %v281 = vsel %vm226, %v278, %v280
    %v282 = vrot.slane %v55, 1
    %v283 = vrot.slane %v56, 1
    %v284 = vsel %vm226, %v282, %v283
    %v285 = vrot.slane %v57, 1
    %v286 = vsel %vm226, %v283, %v285
    %v287 = vrot.slane %v58, 1
    %v288 = vrot.slane %v59, 1
    %v289 = vsel %vm226, %v287, %v288
    %v290 = vrot.slane %v60, 1
    %v291 = vsel %vm226, %v288, %v290
    %v292 = vrot.slane %v61, 1
    %v293 = vrot.slane %v62, 1
    %v294 = vsel %vm226, %v292, %v293
    %v295 = vrot.slane %v63, 1
    %v296 = vsel %vm226, %v293, %v295
    %v297 = vrot.slane %v64, 1
    %v298 = vrot.slane %v65, 1
    %v299 = vsel %vm226, %v297, %v298
    %v300 = vrot.slane %v66, 1
    %v301 = vsel %vm226, %v298, %v300
    %v302 = vrot.slane %v67, 1
    %v303 = vrot.slane %v68, 1
    %v304 = vsel %vm226, %v302, %v303
    %v305 = vrot.slane %v69, 1
    %v306 = vsel %vm226, %v303, %v305
    %v307 = vrot.slane %v76, 1
    %v308 = vrot.slane %v77, 1
    %v309 = vsel %vm226, %v307, %v308
    %v310 = vrot.slane %v78, 1
    %v311 = vsel %vm226, %v308, %v310
    %v312 = vrot.slane %v79, 1
    %v313 = vrot.slane %v80, 1
    %v314 = vsel %vm226, %v312, %v313
    %v315 = vrot.slane %v81, 1
    %v316 = vsel %vm226, %v313, %v315
    %v317 = vrot.slane %v82, 1
    %v318 = vrot.slane %v83, 1
    %v319 = vsel %vm226, %v317, %v318
    %v320 = vrot.slane %v84, 1
    %v321 = vsel %vm226, %v318, %v320
    %v322 = vrot.slane %v85, 1
    %v323 = vrot.slane %v86, 1
    %v324 = vsel %vm226, %v322, %v323
    %v325 = vrot.slane %v87, 1
    %v326 = vsel %vm226, %v323, %v325
    %v327 = vrot.slane %v88, 1
    %v328 = vrot.slane %v89, 1
    %v329 = vsel %vm226, %v327, %v328
    %v330 = vrot.slane %v90, 1
    %v331 = vsel %vm226, %v328, %v330
    %v332 = vrot.slane %v91, 1
    %v333 = vrot.slane %v92, 1
    %v334 = vsel %vm226, %v332, %v333
    %v335 = vrot.slane %v93, 1
    %v336 = vsel %vm226, %v333, %v335
    %v337 = vrot.slane %v94, 1
    %v338 = vrot.slane %v95, 1
    %v339 = vsel %vm226, %v337, %v338
    %v340 = vrot.slane %v96, 1
    %v341 = vsel %vm226, %v338, %v340
    %v342 = vrot.slane %v97, 1
    %v343 = vrot.slane %v98, 1
    %v344 = vsel %vm226, %v342, %v343
    %v345 = vrot.slane %v99, 1
    %v346 = vsel %vm226, %v343, %v345
    %v347 = vrot.slane %v100, 1
    %v348 = vrot.slane %v101, 1
    %v349 = vsel %vm226, %v347, %v348
    %v350 = vrot.slane %v102, 1
    %v351 = vsel %vm226, %v348, %v350
    %v352 = vrot.slane %v103, 1
    %v353 = vrot.slane %v104, 1
    %v354 = vsel %vm226, %v352, %v353
    %v355 = vrot.slane %v105, 1
    %v356 = vsel %vm226, %v353, %v355
    %v357 = vrot.slane %v106, 1
    %v358 = vrot.slane %v107, 1
    %v359 = vsel %vm226, %v357, %v358
    %v360 = vrot.slane %v108, 1
    %v361 = vsel %vm226, %v358, %v360
    %v362 = vrot.slane %v109, 1
    %v363 = vrot.slane %v110, 1
    %v364 = vsel %vm226, %v362, %v363
    %v365 = vrot.slane %v111, 1
    %v366 = vsel %vm226, %v363, %v365
    %v367 = vrot.slane %v112, 1
    %v368 = vrot.slane %v113, 1
    %v369 = vsel %vm226, %v367, %v368
    %v370 = vrot.slane %v114, 1
    %v371 = vsel %vm226, %v368, %v370
    %v372 = vrot.slane %v115, 1
    %v373 = vrot.slane %v116, 1
    %v374 = vsel %vm226, %v372, %v373
    %v375 = vrot.slane %v117, 1
    %v376 = vsel %vm226, %v373, %v375
    %v377 = vrot.slane %v118, 1
    %v378 = vrot.slane %v119, 1
    %v379 = vsel %vm226, %v377, %v378
    %v380 = vrot.slane %v120, 1
    %v381 = vsel %vm226, %v378, %v380
    %v382 = vrot.slane %v121, 1
    %v383 = vrot.slane %v122, 1
    %v384 = vsel %vm226, %v382, %v383
    %v385 = vrot.slane %v123, 1
    %v386 = vsel %vm226, %v383, %v385
    %387 = vrot.lane.b32.xlu0 %v229, 8
    %v388 = vpop.permute.xlu0 %387
    %389 = vrot.lane.b32.xlu0 %v231, 8
    %v390 = vpop.permute.xlu0 %389
    %391 = vrot.lane.b32.xlu0 %v234, 8
    %v392 = vpop.permute.xlu0 %391
    %393 = vrot.lane.b32.xlu0 %v236, 8
    %v394 = vpop.permute.xlu0 %393
    %395 = vrot.lane.b32.xlu0 %v239, 8
    %v396 = vpop.permute.xlu0 %395
    %397 = vrot.lane.b32.xlu0 %v241, 8
    %v398 = vpop.permute.xlu0 %397
    %399 = vrot.lane.b32.xlu0 %v244, 8
    %v400 = vpop.permute.xlu0 %399
    %401 = vrot.lane.b32.xlu0 %v246, 8
    %v402 = vpop.permute.xlu0 %401
    %403 = vrot.lane.b32.xlu0 %v249, 8
    %v404 = vpop.permute.xlu0 %403
    %405 = vrot.lane.b32.xlu0 %v251, 8
    %v406 = vpop.permute.xlu0 %405
    %407 = vrot.lane.b32.xlu0 %v254, 8
    %v408 = vpop.permute.xlu0 %407
    %409 = vrot.lane.b32.xlu0 %v256, 8
    %v410 = vpop.permute.xlu0 %409
    %411 = vrot.lane.b32.xlu0 %v259, 8
    %v412 = vpop.permute.xlu0 %411
    %413 = vrot.lane.b32.xlu0 %v261, 8
    %v414 = vpop.permute.xlu0 %413
    %415 = vrot.lane.b32.xlu0 %v264, 8
    %v416 = vpop.permute.xlu0 %415
    %417 = vrot.lane.b32.xlu0 %v266, 8
    %v418 = vpop.permute.xlu0 %417
    %419 = vrot.lane.b32.xlu0 %v269, 8
    %v420 = vpop.permute.xlu0 %419
    %421 = vrot.lane.b32.xlu0 %v271, 8
    %v422 = vpop.permute.xlu0 %421
    %423 = vrot.lane.b32.xlu0 %v274, 8
    %v424 = vpop.permute.xlu0 %423
    %425 = vrot.lane.b32.xlu0 %v276, 8
    %v426 = vpop.permute.xlu0 %425
    %427 = vrot.lane.b32.xlu0 %v279, 8
    %v428 = vpop.permute.xlu0 %427
    %429 = vrot.lane.b32.xlu0 %v281, 8
    %v430 = vpop.permute.xlu0 %429
    %431 = vrot.lane.b32.xlu0 %v284, 8
    %v432 = vpop.permute.xlu0 %431
    %433 = vrot.lane.b32.xlu0 %v286, 8
    %v434 = vpop.permute.xlu0 %433
    %435 = vrot.lane.b32.xlu0 %v289, 8
    %v436 = vpop.permute.xlu0 %435
    %437 = vrot.lane.b32.xlu0 %v291, 8
    %v438 = vpop.permute.xlu0 %437
    %439 = vrot.lane.b32.xlu0 %v294, 8
    %v440 = vpop.permute.xlu0 %439
    %441 = vrot.lane.b32.xlu0 %v296, 8
    %v442 = vpop.permute.xlu0 %441
    %443 = vrot.lane.b32.xlu0 %v299, 8
    %v444 = vpop.permute.xlu0 %443
    %445 = vrot.lane.b32.xlu0 %v301, 8
    %v446 = vpop.permute.xlu0 %445
    %447 = vrot.lane.b32.xlu0 %v304, 8
    %v448 = vpop.permute.xlu0 %447
    %449 = vrot.lane.b32.xlu0 %v306, 8
    %v450 = vpop.permute.xlu0 %449
    %451 = vrot.lane.b32.xlu0 %v309, 8
    %v452 = vpop.permute.xlu0 %451
    %453 = vrot.lane.b32.xlu0 %v311, 8
    %v454 = vpop.permute.xlu0 %453
    %455 = vrot.lane.b32.xlu0 %v314, 8
    %v456 = vpop.permute.xlu0 %455
    %457 = vrot.lane.b32.xlu0 %v316, 8
    %v458 = vpop.permute.xlu0 %457
    %459 = vrot.lane.b32.xlu0 %v319, 8
    %v460 = vpop.permute.xlu0 %459
    %461 = vrot.lane.b32.xlu0 %v321, 8
    %v462 = vpop.permute.xlu0 %461
    %463 = vrot.lane.b32.xlu0 %v324, 8
    %v464 = vpop.permute.xlu0 %463
    %465 = vrot.lane.b32.xlu0 %v326, 8
    %v466 = vpop.permute.xlu0 %465
    %467 = vrot.lane.b32.xlu0 %v329, 8
    %v468 = vpop.permute.xlu0 %467
    %469 = vrot.lane.b32.xlu0 %v331, 8
    %v470 = vpop.permute.xlu0 %469
    %471 = vrot.lane.b32.xlu0 %v334, 8
    %v472 = vpop.permute.xlu0 %471
    %473 = vrot.lane.b32.xlu0 %v336, 8
    %v474 = vpop.permute.xlu0 %473
    %475 = vrot.lane.b32.xlu0 %v339, 8
    %v476 = vpop.permute.xlu0 %475
    %477 = vrot.lane.b32.xlu0 %v341, 8
    %v478 = vpop.permute.xlu0 %477
    %479 = vrot.lane.b32.xlu0 %v344, 8
    %v480 = vpop.permute.xlu0 %479
    %481 = vrot.lane.b32.xlu0 %v346, 8
    %v482 = vpop.permute.xlu0 %481
    %483 = vrot.lane.b32.xlu0 %v349, 8
    %v484 = vpop.permute.xlu0 %483
    %485 = vrot.lane.b32.xlu0 %v351, 8
    %v486 = vpop.permute.xlu0 %485
    %487 = vrot.lane.b32.xlu0 %v354, 8
    %v488 = vpop.permute.xlu0 %487
    %489 = vrot.lane.b32.xlu0 %v356, 8
    %v490 = vpop.permute.xlu0 %489
    %491 = vrot.lane.b32.xlu0 %v359, 8
    %v492 = vpop.permute.xlu0 %491
    %493 = vrot.lane.b32.xlu0 %v361, 8
    %v494 = vpop.permute.xlu0 %493
    %495 = vrot.lane.b32.xlu0 %v364, 8
    %v496 = vpop.permute.xlu0 %495
    %497 = vrot.lane.b32.xlu0 %v366, 8
    %v498 = vpop.permute.xlu0 %497
    %499 = vrot.lane.b32.xlu0 %v369, 8
    %v500 = vpop.permute.xlu0 %499
    %501 = vrot.lane.b32.xlu0 %v371, 8
    %v502 = vpop.permute.xlu0 %501
    %503 = vrot.lane.b32.xlu0 %v374, 8
    %v504 = vpop.permute.xlu0 %503
    %505 = vrot.lane.b32.xlu0 %v376, 8
    %v506 = vpop.permute.xlu0 %505
    %507 = vrot.lane.b32.xlu0 %v379, 8
    %v508 = vpop.permute.xlu0 %507
    %509 = vrot.lane.b32.xlu0 %v381, 8
    %v510 = vpop.permute.xlu0 %509
    %511 = vrot.lane.b32.xlu0 %v384, 8
    %v512 = vpop.permute.xlu0 %511
    %513 = vrot.lane.b32.xlu0 %v386, 8
    %v514 = vpop.permute.xlu0 %513
    %vm579 = vcmask 1045504
    %v580 = vrot.slane %v22, 2
    %v581 = vrot.slane %v23, 2
    %v582 = vsel %vm579, %v580, %v581
    %v583 = vrot.slane %v24, 2
    %v584 = vsel %vm579, %v581, %v583
    %v585 = vrot.slane %v25, 2
    %v586 = vrot.slane %v26, 2
    %v587 = vsel %vm579, %v585, %v586
    %v588 = vrot.slane %v27, 2
    %v589 = vsel %vm579, %v586, %v588
    %v590 = vrot.slane %v28, 2
    %v591 = vrot.slane %v29, 2
    %v592 = vsel %vm579, %v590, %v591
    %v593 = vrot.slane %v30, 2
    %v594 = vsel %vm579, %v591, %v593
    %v595 = vrot.slane %v31, 2
    %v596 = vrot.slane %v32, 2
    %v597 = vsel %vm579, %v595, %v596
    %v598 = vrot.slane %v33, 2
    %v599 = vsel %vm579, %v596, %v598
    %v600 = vrot.slane %v34, 2
    %v601 = vrot.slane %v35, 2
    %v602 = vsel %vm579, %v600, %v601
    %v603 = vrot.slane %v36, 2
    %v604 = vsel %vm579, %v601, %v603
    %v605 = vrot.slane %v37, 2
    %v606 = vrot.slane %v38, 2
    %v607 = vsel %vm579, %v605, %v606
    %v608 = vrot.slane %v39, 2
    %v609 = vsel %vm579, %v606, %v608
    %v610 = vrot.slane %v40, 2
    %v611 = vrot.slane %v41, 2
    %v612 = vsel %vm579, %v610, %v611
    %v613 = vrot.slane %v42, 2
    %v614 = vsel %vm579, %v611, %v613
    %v615 = vrot.slane %v43, 2
    %v616 = vrot.slane %v44, 2
    %v617 = vsel %vm579, %v615, %v616
    %v618 = vrot.slane %v45, 2
    %v619 = vsel %vm579, %v616, %v618
    %v620 = vrot.slane %v46, 2
    %v621 = vrot.slane %v47, 2
    %v622 = vsel %vm579, %v620, %v621
    %v623 = vrot.slane %v48, 2
    %v624 = vsel %vm579, %v621, %v623
    %v625 = vrot.slane %v49, 2
    %v626 = vrot.slane %v50, 2
    %v627 = vsel %vm579, %v625, %v626
    %v628 = vrot.slane %v51, 2
    %v629 = vsel %vm579, %v626, %v628
    %v630 = vrot.slane %v52, 2
    %v631 = vrot.slane %v53, 2
    %v632 = vsel %vm579, %v630, %v631
    %v633 = vrot.slane %v54, 2
    %v634 = vsel %vm579, %v631, %v633
    %v635 = vrot.slane %v55, 2
    %v636 = vrot.slane %v56, 2
    %v637 = vsel %vm579, %v635, %v636
    %v638 = vrot.slane %v57, 2
    %v639 = vsel %vm579, %v636, %v638
    %v640 = vrot.slane %v58, 2
    %v641 = vrot.slane %v59, 2
    %v642 = vsel %vm579, %v640, %v641
    %v643 = vrot.slane %v60, 2
    %v644 = vsel %vm579, %v641, %v643
    %v645 = vrot.slane %v61, 2
    %v646 = vrot.slane %v62, 2
    %v647 = vsel %vm579, %v645, %v646
    %v648 = vrot.slane %v63, 2
    %v649 = vsel %vm579, %v646, %v648
    %v650 = vrot.slane %v64, 2
    %v651 = vrot.slane %v65, 2
    %v652 = vsel %vm579, %v650, %v651
    %v653 = vrot.slane %v66, 2
    %v654 = vsel %vm579, %v651, %v653
    %v655 = vrot.slane %v67, 2
    %v656 = vrot.slane %v68, 2
    %v657 = vsel %vm579, %v655, %v656
    %v658 = vrot.slane %v69, 2
    %v659 = vsel %vm579, %v656, %v658
    %v660 = vrot.slane %v76, 2
    %v661 = vrot.slane %v77, 2
    %v662 = vsel %vm579, %v660, %v661
    %v663 = vrot.slane %v78, 2
    %v664 = vsel %vm579, %v661, %v663
    %v665 = vrot.slane %v79, 2
    %v666 = vrot.slane %v80, 2
    %v667 = vsel %vm579, %v665, %v666
    %v668 = vrot.slane %v81, 2
    %v669 = vsel %vm579, %v666, %v668
    %v670 = vrot.slane %v82, 2
    %v671 = vrot.slane %v83, 2
    %v672 = vsel %vm579, %v670, %v671
    %v673 = vrot.slane %v84, 2
    %v674 = vsel %vm579, %v671, %v673
    %v675 = vrot.slane %v85, 2
    %v676 = vrot.slane %v86, 2
    %v677 = vsel %vm579, %v675, %v676
    %v678 = vrot.slane %v87, 2
    %v679 = vsel %vm579, %v676, %v678
    %v680 = vrot.slane %v88, 2
    %v681 = vrot.slane %v89, 2
    %v682 = vsel %vm579, %v680, %v681
    %v683 = vrot.slane %v90, 2
    %v684 = vsel %vm579, %v681, %v683
    %v685 = vrot.slane %v91, 2
    %v686 = vrot.slane %v92, 2
    %v687 = vsel %vm579, %v685, %v686
    %v688 = vrot.slane %v93, 2
    %v689 = vsel %vm579, %v686, %v688
    %v690 = vrot.slane %v94, 2
    %v691 = vrot.slane %v95, 2
    %v692 = vsel %vm579, %v690, %v691
    %v693 = vrot.slane %v96, 2
    %v694 = vsel %vm579, %v691, %v693
    %v695 = vrot.slane %v97, 2
    %v696 = vrot.slane %v98, 2
    %v697 = vsel %vm579, %v695, %v696
    %v698 = vrot.slane %v99, 2
    %v699 = vsel %vm579, %v696, %v698
    %v700 = vrot.slane %v100, 2
    %v701 = vrot.slane %v101, 2
    %v702 = vsel %vm579, %v700, %v701
    %v703 = vrot.slane %v102, 2
    %v704 = vsel %vm579, %v701, %v703
    %v705 = vrot.slane %v103, 2
    %v706 = vrot.slane %v104, 2
    %v707 = vsel %vm579, %v705, %v706
    %v708 = vrot.slane %v105, 2
    %v709 = vsel %vm579, %v706, %v708
    %v710 = vrot.slane %v106, 2
    %v711 = vrot.slane %v107, 2
    %v712 = vsel %vm579, %v710, %v711
    %v713 = vrot.slane %v108, 2
    %v714 = vsel %vm579, %v711, %v713
    %v715 = vrot.slane %v109, 2
    %v716 = vrot.slane %v110, 2
    %v717 = vsel %vm579, %v715, %v716
    %v718 = vrot.slane %v111, 2
    %v719 = vsel %vm579, %v716, %v718
    %v720 = vrot.slane %v112, 2
    %v721 = vrot.slane %v113, 2
    %v722 = vsel %vm579, %v720, %v721
    %v723 = vrot.slane %v114, 2
    %v724 = vsel %vm579, %v721, %v723
    %v725 = vrot.slane %v115, 2
    %v726 = vrot.slane %v116, 2
    %v727 = vsel %vm579, %v725, %v726
    %v728 = vrot.slane %v117, 2
    %v729 = vsel %vm579, %v726, %v728
    %v730 = vrot.slane %v118, 2
    %v731 = vrot.slane %v119, 2
    %v732 = vsel %vm579, %v730, %v731
    %v733 = vrot.slane %v120, 2
    %v734 = vsel %vm579, %v731, %v733
    %v735 = vrot.slane %v121, 2
    %v736 = vrot.slane %v122, 2
    %v737 = vsel %vm579, %v735, %v736
    %v738 = vrot.slane %v123, 2
    %v739 = vsel %vm579, %v736, %v738
    %740 = vrot.lane.b32.xlu0 %v582, 16
    %v741 = vpop.permute.xlu0 %740
    %742 = vrot.lane.b32.xlu0 %v584, 16
    %v743 = vpop.permute.xlu0 %742
    %744 = vrot.lane.b32.xlu0 %v587, 16
    %v745 = vpop.permute.xlu0 %744
    %746 = vrot.lane.b32.xlu0 %v589, 16
    %v747 = vpop.permute.xlu0 %746
    %748 = vrot.lane.b32.xlu0 %v592, 16
    %v749 = vpop.permute.xlu0 %748
    %750 = vrot.lane.b32.xlu0 %v594, 16
    %v751 = vpop.permute.xlu0 %750
    %752 = vrot.lane.b32.xlu0 %v597, 16
    %v753 = vpop.permute.xlu0 %752
    %754 = vrot.lane.b32.xlu0 %v599, 16
    %v755 = vpop.permute.xlu0 %754
    %756 = vrot.lane.b32.xlu0 %v602, 16
    %v757 = vpop.permute.xlu0 %756
    %758 = vrot.lane.b32.xlu0 %v604, 16
    %v759 = vpop.permute.xlu0 %758
    %760 = vrot.lane.b32.xlu0 %v607, 16
    %v761 = vpop.permute.xlu0 %760
    %762 = vrot.lane.b32.xlu0 %v609, 16
    %v763 = vpop.permute.xlu0 %762
    %764 = vrot.lane.b32.xlu0 %v612, 16
    %v765 = vpop.permute.xlu0 %764
    %766 = vrot.lane.b32.xlu0 %v614, 16
    %v767 = vpop.permute.xlu0 %766
    %768 = vrot.lane.b32.xlu0 %v617, 16
    %v769 = vpop.permute.xlu0 %768
    %770 = vrot.lane.b32.xlu0 %v619, 16
    %v771 = vpop.permute.xlu0 %770
    %772 = vrot.lane.b32.xlu0 %v622, 16
    %v773 = vpop.permute.xlu0 %772
    %774 = vrot.lane.b32.xlu0 %v624, 16
    %v775 = vpop.permute.xlu0 %774
    %776 = vrot.lane.b32.xlu0 %v627, 16
    %v777 = vpop.permute.xlu0 %776
    %778 = vrot.lane.b32.xlu0 %v629, 16
    %v779 = vpop.permute.xlu0 %778
    %780 = vrot.lane.b32.xlu0 %v632, 16
    %v781 = vpop.permute.xlu0 %780
    %782 = vrot.lane.b32.xlu0 %v634, 16
    %v783 = vpop.permute.xlu0 %782
    %784 = vrot.lane.b32.xlu0 %v637, 16
    %v785 = vpop.permute.xlu0 %784
    %786 = vrot.lane.b32.xlu0 %v639, 16
    %v787 = vpop.permute.xlu0 %786
    %788 = vrot.lane.b32.xlu0 %v642, 16
    %v789 = vpop.permute.xlu0 %788
    %790 = vrot.lane.b32.xlu0 %v644, 16
    %v791 = vpop.permute.xlu0 %790
    %792 = vrot.lane.b32.xlu0 %v647, 16
    %v793 = vpop.permute.xlu0 %792
    %794 = vrot.lane.b32.xlu0 %v649, 16
    %v795 = vpop.permute.xlu0 %794
    %796 = vrot.lane.b32.xlu0 %v652, 16
    %v797 = vpop.permute.xlu0 %796
    %798 = vrot.lane.b32.xlu0 %v654, 16
    %v799 = vpop.permute.xlu0 %798
    %800 = vrot.lane.b32.xlu0 %v657, 16
    %v801 = vpop.permute.xlu0 %800
    %802 = vrot.lane.b32.xlu0 %v659, 16
    %v803 = vpop.permute.xlu0 %802
    %804 = vrot.lane.b32.xlu0 %v662, 16
    %v805 = vpop.permute.xlu0 %804
    %806 = vrot.lane.b32.xlu0 %v664, 16
    %v807 = vpop.permute.xlu0 %806
    %808 = vrot.lane.b32.xlu0 %v667, 16
    %v809 = vpop.permute.xlu0 %808
    %810 = vrot.lane.b32.xlu0 %v669, 16
    %v811 = vpop.permute.xlu0 %810
    %812 = vrot.lane.b32.xlu0 %v672, 16
    %v813 = vpop.permute.xlu0 %812
    %814 = vrot.lane.b32.xlu0 %v674, 16
    %v815 = vpop.permute.xlu0 %814
    %816 = vrot.lane.b32.xlu0 %v677, 16
    %v817 = vpop.permute.xlu0 %816
    %818 = vrot.lane.b32.xlu0 %v679, 16
    %v819 = vpop.permute.xlu0 %818
    %820 = vrot.lane.b32.xlu0 %v682, 16
    %v821 = vpop.permute.xlu0 %820
    %822 = vrot.lane.b32.xlu0 %v684, 16
    %v823 = vpop.permute.xlu0 %822
    %824 = vrot.lane.b32.xlu0 %v687, 16
    %v825 = vpop.permute.xlu0 %824
    %826 = vrot.lane.b32.xlu0 %v689, 16
    %v827 = vpop.permute.xlu0 %826
    %828 = vrot.lane.b32.xlu0 %v692, 16
    %v829 = vpop.permute.xlu0 %828
    %830 = vrot.lane.b32.xlu0 %v694, 16
    %v831 = vpop.permute.xlu0 %830
    %832 = vrot.lane.b32.xlu0 %v697, 16
    %v833 = vpop.permute.xlu0 %832
    %834 = vrot.lane.b32.xlu0 %v699, 16
    %v835 = vpop.permute.xlu0 %834
    %836 = vrot.lane.b32.xlu0 %v702, 16
    %v837 = vpop.permute.xlu0 %836
    %838 = vrot.lane.b32.xlu0 %v704, 16
    %v839 = vpop.permute.xlu0 %838
    %840 = vrot.lane.b32.xlu0 %v707, 16
    %v841 = vpop.permute.xlu0 %840
    %842 = vrot.lane.b32.xlu0 %v709, 16
    %v843 = vpop.permute.xlu0 %842
    %844 = vrot.lane.b32.xlu0 %v712, 16
    %v845 = vpop.permute.xlu0 %844
    %846 = vrot.lane.b32.xlu0 %v714, 16
    %v847 = vpop.permute.xlu0 %846
    %848 = vrot.lane.b32.xlu0 %v717, 16
    %v849 = vpop.permute.xlu0 %848
    %850 = vrot.lane.b32.xlu0 %v719, 16
    %v851 = vpop.permute.xlu0 %850
    %852 = vrot.lane.b32.xlu0 %v722, 16
    %v853 = vpop.permute.xlu0 %852
    %854 = vrot.lane.b32.xlu0 %v724, 16
    %v855 = vpop.permute.xlu0 %854
    %856 = vrot.lane.b32.xlu0 %v727, 16
    %v857 = vpop.permute.xlu0 %856
    %858 = vrot.lane.b32.xlu0 %v729, 16
    %v859 = vpop.permute.xlu0 %858
    %860 = vrot.lane.b32.xlu0 %v732, 16
    %v861 = vpop.permute.xlu0 %860
    %862 = vrot.lane.b32.xlu0 %v734, 16
    %v863 = vpop.permute.xlu0 %862
    %864 = vrot.lane.b32.xlu0 %v737, 16
    %v865 = vpop.permute.xlu0 %864
    %866 = vrot.lane.b32.xlu0 %v739, 16
    %v867 = vpop.permute.xlu0 %866
    %936 = vrot.lane.b32.xlu0 %v25, 24
    %v937 = vpop.permute.xlu0 %936
    %938 = vrot.lane.b32.xlu0 %v26, 24
    %v939 = vpop.permute.xlu0 %938
    %940 = vrot.lane.b32.xlu0 %v28, 24
    %v941 = vpop.permute.xlu0 %940
    %942 = vrot.lane.b32.xlu0 %v29, 24
    %v943 = vpop.permute.xlu0 %942
    %944 = vrot.lane.b32.xlu0 %v31, 24
    %v945 = vpop.permute.xlu0 %944
    %946 = vrot.lane.b32.xlu0 %v32, 24
    %v947 = vpop.permute.xlu0 %946
    %948 = vrot.lane.b32.xlu0 %v34, 24
    %v949 = vpop.permute.xlu0 %948
    %950 = vrot.lane.b32.xlu0 %v35, 24
    %v951 = vpop.permute.xlu0 %950
    %952 = vrot.lane.b32.xlu0 %v37, 24
    %v953 = vpop.permute.xlu0 %952
    %954 = vrot.lane.b32.xlu0 %v38, 24
    %v955 = vpop.permute.xlu0 %954
    %956 = vrot.lane.b32.xlu0 %v40, 24
    %v957 = vpop.permute.xlu0 %956
    %958 = vrot.lane.b32.xlu0 %v41, 24
    %v959 = vpop.permute.xlu0 %958
    %960 = vrot.lane.b32.xlu0 %v43, 24
    %v961 = vpop.permute.xlu0 %960
    %962 = vrot.lane.b32.xlu0 %v44, 24
    %v963 = vpop.permute.xlu0 %962
    %964 = vrot.lane.b32.xlu0 %v46, 24
    %v965 = vpop.permute.xlu0 %964
    %966 = vrot.lane.b32.xlu0 %v47, 24
    %v967 = vpop.permute.xlu0 %966
    %968 = vrot.lane.b32.xlu0 %v49, 24
    %v969 = vpop.permute.xlu0 %968
    %970 = vrot.lane.b32.xlu0 %v50, 24
    %v971 = vpop.permute.xlu0 %970
    %972 = vrot.lane.b32.xlu0 %v52, 24
    %v973 = vpop.permute.xlu0 %972
    %974 = vrot.lane.b32.xlu0 %v53, 24
    %v975 = vpop.permute.xlu0 %974
    %976 = vrot.lane.b32.xlu0 %v55, 24
    %v977 = vpop.permute.xlu0 %976
    %978 = vrot.lane.b32.xlu0 %v56, 24
    %v979 = vpop.permute.xlu0 %978
    %980 = vrot.lane.b32.xlu0 %v58, 24
    %v981 = vpop.permute.xlu0 %980
    %982 = vrot.lane.b32.xlu0 %v59, 24
    %v983 = vpop.permute.xlu0 %982
    %984 = vrot.lane.b32.xlu0 %v61, 24
    %v985 = vpop.permute.xlu0 %984
    %986 = vrot.lane.b32.xlu0 %v62, 24
    %v987 = vpop.permute.xlu0 %986
    %988 = vrot.lane.b32.xlu0 %v64, 24
    %v989 = vpop.permute.xlu0 %988
    %990 = vrot.lane.b32.xlu0 %v65, 24
    %v991 = vpop.permute.xlu0 %990
    %992 = vrot.lane.b32.xlu0 %v67, 24
    %v993 = vpop.permute.xlu0 %992
    %994 = vrot.lane.b32.xlu0 %v68, 24
    %v995 = vpop.permute.xlu0 %994
    %996 = vrot.lane.b32.xlu0 %v70, 24
    %v997 = vpop.permute.xlu0 %996
    %998 = vrot.lane.b32.xlu0 %v71, 24
    %v999 = vpop.permute.xlu0 %998
    %1000 = vrot.lane.b32.xlu0 %v79, 24
    %v1001 = vpop.permute.xlu0 %1000
    %1002 = vrot.lane.b32.xlu0 %v80, 24
    %v1003 = vpop.permute.xlu0 %1002
    %1004 = vrot.lane.b32.xlu0 %v82, 24
    %v1005 = vpop.permute.xlu0 %1004
    %1006 = vrot.lane.b32.xlu0 %v83, 24
    %v1007 = vpop.permute.xlu0 %1006
    %1008 = vrot.lane.b32.xlu0 %v85, 24
    %v1009 = vpop.permute.xlu0 %1008
    %1010 = vrot.lane.b32.xlu0 %v86, 24
    %v1011 = vpop.permute.xlu0 %1010
    %1012 = vrot.lane.b32.xlu0 %v88, 24
    %v1013 = vpop.permute.xlu0 %1012
    %1014 = vrot.lane.b32.xlu0 %v89, 24
    %v1015 = vpop.permute.xlu0 %1014
    %1016 = vrot.lane.b32.xlu0 %v91, 24
    %v1017 = vpop.permute.xlu0 %1016
    %1018 = vrot.lane.b32.xlu0 %v92, 24
    %v1019 = vpop.permute.xlu0 %1018
    %1020 = vrot.lane.b32.xlu0 %v94, 24
    %v1021 = vpop.permute.xlu0 %1020
    %1022 = vrot.lane.b32.xlu0 %v95, 24
    %v1023 = vpop.permute.xlu0 %1022
    %1024 = vrot.lane.b32.xlu0 %v97, 24
    %v1025 = vpop.permute.xlu0 %1024
    %1026 = vrot.lane.b32.xlu0 %v98, 24
    %v1027 = vpop.permute.xlu0 %1026
    %1028 = vrot.lane.b32.xlu0 %v100, 24
    %v1029 = vpop.permute.xlu0 %1028
    %1030 = vrot.lane.b32.xlu0 %v101, 24
    %v1031 = vpop.permute.xlu0 %1030
    %1032 = vrot.lane.b32.xlu0 %v103, 24
    %v1033 = vpop.permute.xlu0 %1032
    %1034 = vrot.lane.b32.xlu0 %v104, 24
    %v1035 = vpop.permute.xlu0 %1034
    %1036 = vrot.lane.b32.xlu0 %v106, 24
    %v1037 = vpop.permute.xlu0 %1036
    %1038 = vrot.lane.b32.xlu0 %v107, 24
    %v1039 = vpop.permute.xlu0 %1038
    %1040 = vrot.lane.b32.xlu0 %v109, 24
    %v1041 = vpop.permute.xlu0 %1040
    %1042 = vrot.lane.b32.xlu0 %v110, 24
    %v1043 = vpop.permute.xlu0 %1042
    %1044 = vrot.lane.b32.xlu0 %v112, 24
    %v1045 = vpop.permute.xlu0 %1044
    %1046 = vrot.lane.b32.xlu0 %v113, 24
    %v1047 = vpop.permute.xlu0 %1046
    %1048 = vrot.lane.b32.xlu0 %v115, 24
    %v1049 = vpop.permute.xlu0 %1048
    %1050 = vrot.lane.b32.xlu0 %v116, 24
    %v1051 = vpop.permute.xlu0 %1050
    %1052 = vrot.lane.b32.xlu0 %v118, 24
    %v1053 = vpop.permute.xlu0 %1052
    %1054 = vrot.lane.b32.xlu0 %v119, 24
    %v1055 = vpop.permute.xlu0 %1054
    %1056 = vrot.lane.b32.xlu0 %v121, 24
    %v1057 = vpop.permute.xlu0 %1056
    %1058 = vrot.lane.b32.xlu0 %v122, 24
    %v1059 = vpop.permute.xlu0 %1058
    %1060 = vrot.lane.b32.xlu0 %v124, 24
    %v1061 = vpop.permute.xlu0 %1060
    %1062 = vrot.lane.b32.xlu0 %v125, 24
    %v1063 = vpop.permute.xlu0 %1062
    %v1130 = vrot.slane %v70, 1
    %v1131 = vrot.slane %v71, 1
    %v1132 = vsel %vm226, %v1130, %v1131
    %v1133 = vrot.slane %v72, 1
    %v1134 = vsel %vm226, %v1131, %v1133
    %v1135 = vrot.slane %v124, 1
    %v1136 = vrot.slane %v125, 1
    %v1137 = vsel %vm226, %v1135, %v1136
    %v1138 = vrot.slane %v126, 1
    %v1139 = vsel %vm226, %v1136, %v1138
    %1140 = vrot.lane.b32.xlu0 %v234, 32
    %v1141 = vpop.permute.xlu0 %1140
    %1142 = vrot.lane.b32.xlu0 %v236, 32
    %v1143 = vpop.permute.xlu0 %1142
    %1144 = vrot.lane.b32.xlu0 %v239, 32
    %v1145 = vpop.permute.xlu0 %1144
    %1146 = vrot.lane.b32.xlu0 %v241, 32
    %v1147 = vpop.permute.xlu0 %1146
    %1148 = vrot.lane.b32.xlu0 %v244, 32
    %v1149 = vpop.permute.xlu0 %1148
    %1150 = vrot.lane.b32.xlu0 %v246, 32
    %v1151 = vpop.permute.xlu0 %1150
    %1152 = vrot.lane.b32.xlu0 %v249, 32
    %v1153 = vpop.permute.xlu0 %1152
    %1154 = vrot.lane.b32.xlu0 %v251, 32
    %v1155 = vpop.permute.xlu0 %1154
    %1156 = vrot.lane.b32.xlu0 %v254, 32
    %v1157 = vpop.permute.xlu0 %1156
    %1158 = vrot.lane.b32.xlu0 %v256, 32
    %v1159 = vpop.permute.xlu0 %1158
    %1160 = vrot.lane.b32.xlu0 %v259, 32
    %v1161 = vpop.permute.xlu0 %1160
    %1162 = vrot.lane.b32.xlu0 %v261, 32
    %v1163 = vpop.permute.xlu0 %1162
    %1164 = vrot.lane.b32.xlu0 %v264, 32
    %v1165 = vpop.permute.xlu0 %1164
    %1166 = vrot.lane.b32.xlu0 %v266, 32
    %v1167 = vpop.permute.xlu0 %1166
    %1168 = vrot.lane.b32.xlu0 %v269, 32
    %v1169 = vpop.permute.xlu0 %1168
    %1170 = vrot.lane.b32.xlu0 %v271, 32
    %v1171 = vpop.permute.xlu0 %1170
    %1172 = vrot.lane.b32.xlu0 %v274, 32
    %v1173 = vpop.permute.xlu0 %1172
    %1174 = vrot.lane.b32.xlu0 %v276, 32
    %v1175 = vpop.permute.xlu0 %1174
    %1176 = vrot.lane.b32.xlu0 %v279, 32
    %v1177 = vpop.permute.xlu0 %1176
    %1178 = vrot.lane.b32.xlu0 %v281, 32
    %v1179 = vpop.permute.xlu0 %1178
    %1180 = vrot.lane.b32.xlu0 %v284, 32
    %v1181 = vpop.permute.xlu0 %1180
    %1182 = vrot.lane.b32.xlu0 %v286, 32
    %v1183 = vpop.permute.xlu0 %1182
    %1184 = vrot.lane.b32.xlu0 %v289, 32
    %v1185 = vpop.permute.xlu0 %1184
    %1186 = vrot.lane.b32.xlu0 %v291, 32
    %v1187 = vpop.permute.xlu0 %1186
    %1188 = vrot.lane.b32.xlu0 %v294, 32
    %v1189 = vpop.permute.xlu0 %1188
    %1190 = vrot.lane.b32.xlu0 %v296, 32
    %v1191 = vpop.permute.xlu0 %1190
    %1192 = vrot.lane.b32.xlu0 %v299, 32
    %v1193 = vpop.permute.xlu0 %1192
    %1194 = vrot.lane.b32.xlu0 %v301, 32
    %v1195 = vpop.permute.xlu0 %1194
    %1196 = vrot.lane.b32.xlu0 %v304, 32
    %v1197 = vpop.permute.xlu0 %1196
    %1198 = vrot.lane.b32.xlu0 %v306, 32
    %v1199 = vpop.permute.xlu0 %1198
    %1200 = vrot.lane.b32.xlu0 %v1132, 32
    %v1201 = vpop.permute.xlu0 %1200
    %1202 = vrot.lane.b32.xlu0 %v1134, 32
    %v1203 = vpop.permute.xlu0 %1202
    %1204 = vrot.lane.b32.xlu0 %v314, 32
    %v1205 = vpop.permute.xlu0 %1204
    %1206 = vrot.lane.b32.xlu0 %v316, 32
    %v1207 = vpop.permute.xlu0 %1206
    %1208 = vrot.lane.b32.xlu0 %v319, 32
    %v1209 = vpop.permute.xlu0 %1208
    %1210 = vrot.lane.b32.xlu0 %v321, 32
    %v1211 = vpop.permute.xlu0 %1210
    %1212 = vrot.lane.b32.xlu0 %v324, 32
    %v1213 = vpop.permute.xlu0 %1212
    %1214 = vrot.lane.b32.xlu0 %v326, 32
    %v1215 = vpop.permute.xlu0 %1214
    %1216 = vrot.lane.b32.xlu0 %v329, 32
    %v1217 = vpop.permute.xlu0 %1216
    %1218 = vrot.lane.b32.xlu0 %v331, 32
    %v1219 = vpop.permute.xlu0 %1218
    %1220 = vrot.lane.b32.xlu0 %v334, 32
    %v1221 = vpop.permute.xlu0 %1220
    %1222 = vrot.lane.b32.xlu0 %v336, 32
    %v1223 = vpop.permute.xlu0 %1222
    %1224 = vrot.lane.b32.xlu0 %v339, 32
    %v1225 = vpop.permute.xlu0 %1224
    %1226 = vrot.lane.b32.xlu0 %v341, 32
    %v1227 = vpop.permute.xlu0 %1226
    %1228 = vrot.lane.b32.xlu0 %v344, 32
    %v1229 = vpop.permute.xlu0 %1228
    %1230 = vrot.lane.b32.xlu0 %v346, 32
    %v1231 = vpop.permute.xlu0 %1230
    %1232 = vrot.lane.b32.xlu0 %v349, 32
    %v1233 = vpop.permute.xlu0 %1232
    %1234 = vrot.lane.b32.xlu0 %v351, 32
    %v1235 = vpop.permute.xlu0 %1234
    %1236 = vrot.lane.b32.xlu0 %v354, 32
    %v1237 = vpop.permute.xlu0 %1236
    %1238 = vrot.lane.b32.xlu0 %v356, 32
    %v1239 = vpop.permute.xlu0 %1238
    %1240 = vrot.lane.b32.xlu0 %v359, 32
    %v1241 = vpop.permute.xlu0 %1240
    %1242 = vrot.lane.b32.xlu0 %v361, 32
    %v1243 = vpop.permute.xlu0 %1242
    %1244 = vrot.lane.b32.xlu0 %v364, 32
    %v1245 = vpop.permute.xlu0 %1244
    %1246 = vrot.lane.b32.xlu0 %v366, 32
    %v1247 = vpop.permute.xlu0 %1246
    %1248 = vrot.lane.b32.xlu0 %v369, 32
    %v1249 = vpop.permute.xlu0 %1248
    %1250 = vrot.lane.b32.xlu0 %v371, 32
    %v1251 = vpop.permute.xlu0 %1250
    %1252 = vrot.lane.b32.xlu0 %v374, 32
    %v1253 = vpop.permute.xlu0 %1252
    %1254 = vrot.lane.b32.xlu0 %v376, 32
    %v1255 = vpop.permute.xlu0 %1254
    %1256 = vrot.lane.b32.xlu0 %v379, 32
    %v1257 = vpop.permute.xlu0 %1256
    %1258 = vrot.lane.b32.xlu0 %v381, 32
    %v1259 = vpop.permute.xlu0 %1258
    %1260 = vrot.lane.b32.xlu0 %v384, 32
    %v1261 = vpop.permute.xlu0 %1260
    %1262 = vrot.lane.b32.xlu0 %v386, 32
    %v1263 = vpop.permute.xlu0 %1262
    %1264 = vrot.lane.b32.xlu0 %v1137, 32
    %v1265 = vpop.permute.xlu0 %1264
    %1266 = vrot.lane.b32.xlu0 %v1139, 32
    %v1267 = vpop.permute.xlu0 %1266
    %v1332 = vrot.slane %v70, 2
    %v1333 = vrot.slane %v71, 2
    %v1334 = vsel %vm579, %v1332, %v1333
    %v1335 = vrot.slane %v72, 2
    %v1336 = vsel %vm579, %v1333, %v1335
    %v1337 = vrot.slane %v124, 2
    %v1338 = vrot.slane %v125, 2
    %v1339 = vsel %vm579, %v1337, %v1338
    %v1340 = vrot.slane %v126, 2
    %v1341 = vsel %vm579, %v1338, %v1340
    %1342 = vrot.lane.b32.xlu0 %v587, 40
    %v1343 = vpop.permute.xlu0 %1342
    %1344 = vrot.lane.b32.xlu0 %v589, 40
    %v1345 = vpop.permute.xlu0 %1344
    %1346 = vrot.lane.b32.xlu0 %v592, 40
    %v1347 = vpop.permute.xlu0 %1346
    %1348 = vrot.lane.b32.xlu0 %v594, 40
    %v1349 = vpop.permute.xlu0 %1348
    %1350 = vrot.lane.b32.xlu0 %v597, 40
    %v1351 = vpop.permute.xlu0 %1350
    %1352 = vrot.lane.b32.xlu0 %v599, 40
    %v1353 = vpop.permute.xlu0 %1352
    %1354 = vrot.lane.b32.xlu0 %v602, 40
    %v1355 = vpop.permute.xlu0 %1354
    %1356 = vrot.lane.b32.xlu0 %v604, 40
    %v1357 = vpop.permute.xlu0 %1356
    %1358 = vrot.lane.b32.xlu0 %v607, 40
    %v1359 = vpop.permute.xlu0 %1358
    %1360 = vrot.lane.b32.xlu0 %v609, 40
    %v1361 = vpop.permute.xlu0 %1360
    %1362 = vrot.lane.b32.xlu0 %v612, 40
    %v1363 = vpop.permute.xlu0 %1362
    %1364 = vrot.lane.b32.xlu0 %v614, 40
    %v1365 = vpop.permute.xlu0 %1364
    %1366 = vrot.lane.b32.xlu0 %v617, 40
    %v1367 = vpop.permute.xlu0 %1366
    %1368 = vrot.lane.b32.xlu0 %v619, 40
    %v1369 = vpop.permute.xlu0 %1368
    %1370 = vrot.lane.b32.xlu0 %v622, 40
    %v1371 = vpop.permute.xlu0 %1370
    %1372 = vrot.lane.b32.xlu0 %v624, 40
    %v1373 = vpop.permute.xlu0 %1372
    %1374 = vrot.lane.b32.xlu0 %v627, 40
    %v1375 = vpop.permute.xlu0 %1374
    %1376 = vrot.lane.b32.xlu0 %v629, 40
    %v1377 = vpop.permute.xlu0 %1376
    %1378 = vrot.lane.b32.xlu0 %v632, 40
    %v1379 = vpop.permute.xlu0 %1378
    %1380 = vrot.lane.b32.xlu0 %v634, 40
    %v1381 = vpop.permute.xlu0 %1380
    %1382 = vrot.lane.b32.xlu0 %v637, 40
    %v1383 = vpop.permute.xlu0 %1382
    %1384 = vrot.lane.b32.xlu0 %v639, 40
    %v1385 = vpop.permute.xlu0 %1384
    %1386 = vrot.lane.b32.xlu0 %v642, 40
    %v1387 = vpop.permute.xlu0 %1386
    %1388 = vrot.lane.b32.xlu0 %v644, 40
    %v1389 = vpop.permute.xlu0 %1388
    %1390 = vrot.lane.b32.xlu0 %v647, 40
    %v1391 = vpop.permute.xlu0 %1390
    %1392 = vrot.lane.b32.xlu0 %v649, 40
    %v1393 = vpop.permute.xlu0 %1392
    %1394 = vrot.lane.b32.xlu0 %v652, 40
    %v1395 = vpop.permute.xlu0 %1394
    %1396 = vrot.lane.b32.xlu0 %v654, 40
    %v1397 = vpop.permute.xlu0 %1396
    %1398 = vrot.lane.b32.xlu0 %v657, 40
    %v1399 = vpop.permute.xlu0 %1398
    %1400 = vrot.lane.b32.xlu0 %v659, 40
    %v1401 = vpop.permute.xlu0 %1400
    %1402 = vrot.lane.b32.xlu0 %v1334, 40
    %v1403 = vpop.permute.xlu0 %1402
    %1404 = vrot.lane.b32.xlu0 %v1336, 40
    %v1405 = vpop.permute.xlu0 %1404
    %1406 = vrot.lane.b32.xlu0 %v667, 40
    %v1407 = vpop.permute.xlu0 %1406
    %1408 = vrot.lane.b32.xlu0 %v669, 40
    %v1409 = vpop.permute.xlu0 %1408
    %1410 = vrot.lane.b32.xlu0 %v672, 40
    %v1411 = vpop.permute.xlu0 %1410
    %1412 = vrot.lane.b32.xlu0 %v674, 40
    %v1413 = vpop.permute.xlu0 %1412
    %1414 = vrot.lane.b32.xlu0 %v677, 40
    %v1415 = vpop.permute.xlu0 %1414
    %1416 = vrot.lane.b32.xlu0 %v679, 40
    %v1417 = vpop.permute.xlu0 %1416
    %1418 = vrot.lane.b32.xlu0 %v682, 40
    %v1419 = vpop.permute.xlu0 %1418
    %1420 = vrot.lane.b32.xlu0 %v684, 40
    %v1421 = vpop.permute.xlu0 %1420
    %1422 = vrot.lane.b32.xlu0 %v687, 40
    %v1423 = vpop.permute.xlu0 %1422
    %1424 = vrot.lane.b32.xlu0 %v689, 40
    %v1425 = vpop.permute.xlu0 %1424
    %1426 = vrot.lane.b32.xlu0 %v692, 40
    %v1427 = vpop.permute.xlu0 %1426
    %1428 = vrot.lane.b32.xlu0 %v694, 40
    %v1429 = vpop.permute.xlu0 %1428
    %1430 = vrot.lane.b32.xlu0 %v697, 40
    %v1431 = vpop.permute.xlu0 %1430
    %1432 = vrot.lane.b32.xlu0 %v699, 40
    %v1433 = vpop.permute.xlu0 %1432
    %1434 = vrot.lane.b32.xlu0 %v702, 40
    %v1435 = vpop.permute.xlu0 %1434
    %1436 = vrot.lane.b32.xlu0 %v704, 40
    %v1437 = vpop.permute.xlu0 %1436
    %1438 = vrot.lane.b32.xlu0 %v707, 40
    %v1439 = vpop.permute.xlu0 %1438
    %1440 = vrot.lane.b32.xlu0 %v709, 40
    %v1441 = vpop.permute.xlu0 %1440
    %1442 = vrot.lane.b32.xlu0 %v712, 40
    %v1443 = vpop.permute.xlu0 %1442
    %1444 = vrot.lane.b32.xlu0 %v714, 40
    %v1445 = vpop.permute.xlu0 %1444
    %1446 = vrot.lane.b32.xlu0 %v717, 40
    %v1447 = vpop.permute.xlu0 %1446
    %1448 = vrot.lane.b32.xlu0 %v719, 40
    %v1449 = vpop.permute.xlu0 %1448
    %1450 = vrot.lane.b32.xlu0 %v722, 40
    %v1451 = vpop.permute.xlu0 %1450
    %1452 = vrot.lane.b32.xlu0 %v724, 40
    %v1453 = vpop.permute.xlu0 %1452
    %1454 = vrot.lane.b32.xlu0 %v727, 40
    %v1455 = vpop.permute.xlu0 %1454
    %1456 = vrot.lane.b32.xlu0 %v729, 40
    %v1457 = vpop.permute.xlu0 %1456
    %1458 = vrot.lane.b32.xlu0 %v732, 40
    %v1459 = vpop.permute.xlu0 %1458
    %1460 = vrot.lane.b32.xlu0 %v734, 40
    %v1461 = vpop.permute.xlu0 %1460
    %1462 = vrot.lane.b32.xlu0 %v737, 40
    %v1463 = vpop.permute.xlu0 %1462
    %1464 = vrot.lane.b32.xlu0 %v739, 40
    %v1465 = vpop.permute.xlu0 %1464
    %1466 = vrot.lane.b32.xlu0 %v1339, 40
    %v1467 = vpop.permute.xlu0 %1466
    %1468 = vrot.lane.b32.xlu0 %v1341, 40
    %v1469 = vpop.permute.xlu0 %1468
    %1538 = vrot.lane.b32.xlu0 %v28, 48
    %v1539 = vpop.permute.xlu0 %1538
    %1540 = vrot.lane.b32.xlu0 %v29, 48
    %v1541 = vpop.permute.xlu0 %1540
    %1542 = vrot.lane.b32.xlu0 %v31, 48
    %v1543 = vpop.permute.xlu0 %1542
    %1544 = vrot.lane.b32.xlu0 %v32, 48
    %v1545 = vpop.permute.xlu0 %1544
    %1546 = vrot.lane.b32.xlu0 %v34, 48
    %v1547 = vpop.permute.xlu0 %1546
    %1548 = vrot.lane.b32.xlu0 %v35, 48
    %v1549 = vpop.permute.xlu0 %1548
    %1550 = vrot.lane.b32.xlu0 %v37, 48
    %v1551 = vpop.permute.xlu0 %1550
    %1552 = vrot.lane.b32.xlu0 %v38, 48
    %v1553 = vpop.permute.xlu0 %1552
    %1554 = vrot.lane.b32.xlu0 %v40, 48
    %v1555 = vpop.permute.xlu0 %1554
    %1556 = vrot.lane.b32.xlu0 %v41, 48
    %v1557 = vpop.permute.xlu0 %1556
    %1558 = vrot.lane.b32.xlu0 %v43, 48
    %v1559 = vpop.permute.xlu0 %1558
    %1560 = vrot.lane.b32.xlu0 %v44, 48
    %v1561 = vpop.permute.xlu0 %1560
    %1562 = vrot.lane.b32.xlu0 %v46, 48
    %v1563 = vpop.permute.xlu0 %1562
    %1564 = vrot.lane.b32.xlu0 %v47, 48
    %v1565 = vpop.permute.xlu0 %1564
    %1566 = vrot.lane.b32.xlu0 %v49, 48
    %v1567 = vpop.permute.xlu0 %1566
    %1568 = vrot.lane.b32.xlu0 %v50, 48
    %v1569 = vpop.permute.xlu0 %1568
    %1570 = vrot.lane.b32.xlu0 %v52, 48
    %v1571 = vpop.permute.xlu0 %1570
    %1572 = vrot.lane.b32.xlu0 %v53, 48
    %v1573 = vpop.permute.xlu0 %1572
    %1574 = vrot.lane.b32.xlu0 %v55, 48
    %v1575 = vpop.permute.xlu0 %1574
    %1576 = vrot.lane.b32.xlu0 %v56, 48
    %v1577 = vpop.permute.xlu0 %1576
    %1578 = vrot.lane.b32.xlu0 %v58, 48
    %v1579 = vpop.permute.xlu0 %1578
    %1580 = vrot.lane.b32.xlu0 %v59, 48
    %v1581 = vpop.permute.xlu0 %1580
    %1582 = vrot.lane.b32.xlu0 %v61, 48
    %v1583 = vpop.permute.xlu0 %1582
    %1584 = vrot.lane.b32.xlu0 %v62, 48
    %v1585 = vpop.permute.xlu0 %1584
    %1586 = vrot.lane.b32.xlu0 %v64, 48
    %v1587 = vpop.permute.xlu0 %1586
    %1588 = vrot.lane.b32.xlu0 %v65, 48
    %v1589 = vpop.permute.xlu0 %1588
    %1590 = vrot.lane.b32.xlu0 %v67, 48
    %v1591 = vpop.permute.xlu0 %1590
    %1592 = vrot.lane.b32.xlu0 %v68, 48
    %v1593 = vpop.permute.xlu0 %1592
    %1594 = vrot.lane.b32.xlu0 %v70, 48
    %v1595 = vpop.permute.xlu0 %1594
    %1596 = vrot.lane.b32.xlu0 %v71, 48
    %v1597 = vpop.permute.xlu0 %1596
    %1598 = vrot.lane.b32.xlu0 %v73, 48
    %v1599 = vpop.permute.xlu0 %1598
    %1600 = vrot.lane.b32.xlu0 %v74, 48
    %v1601 = vpop.permute.xlu0 %1600
    %1602 = vrot.lane.b32.xlu0 %v82, 48
    %v1603 = vpop.permute.xlu0 %1602
    %1604 = vrot.lane.b32.xlu0 %v83, 48
    %v1605 = vpop.permute.xlu0 %1604
    %1606 = vrot.lane.b32.xlu0 %v85, 48
    %v1607 = vpop.permute.xlu0 %1606
    %1608 = vrot.lane.b32.xlu0 %v86, 48
    %v1609 = vpop.permute.xlu0 %1608
    %1610 = vrot.lane.b32.xlu0 %v88, 48
    %v1611 = vpop.permute.xlu0 %1610
    %1612 = vrot.lane.b32.xlu0 %v89, 48
    %v1613 = vpop.permute.xlu0 %1612
    %1614 = vrot.lane.b32.xlu0 %v91, 48
    %v1615 = vpop.permute.xlu0 %1614
    %1616 = vrot.lane.b32.xlu0 %v92, 48
    %v1617 = vpop.permute.xlu0 %1616
    %1618 = vrot.lane.b32.xlu0 %v94, 48
    %v1619 = vpop.permute.xlu0 %1618
    %1620 = vrot.lane.b32.xlu0 %v95, 48
    %v1621 = vpop.permute.xlu0 %1620
    %1622 = vrot.lane.b32.xlu0 %v97, 48
    %v1623 = vpop.permute.xlu0 %1622
    %1624 = vrot.lane.b32.xlu0 %v98, 48
    %v1625 = vpop.permute.xlu0 %1624
    %1626 = vrot.lane.b32.xlu0 %v100, 48
    %v1627 = vpop.permute.xlu0 %1626
    %1628 = vrot.lane.b32.xlu0 %v101, 48
    %v1629 = vpop.permute.xlu0 %1628
    %1630 = vrot.lane.b32.xlu0 %v103, 48
    %v1631 = vpop.permute.xlu0 %1630
    %1632 = vrot.lane.b32.xlu0 %v104, 48
    %v1633 = vpop.permute.xlu0 %1632
    %1634 = vrot.lane.b32.xlu0 %v106, 48
    %v1635 = vpop.permute.xlu0 %1634
    %1636 = vrot.lane.b32.xlu0 %v107, 48
    %v1637 = vpop.permute.xlu0 %1636
    %1638 = vrot.lane.b32.xlu0 %v109, 48
    %v1639 = vpop.permute.xlu0 %1638
    %1640 = vrot.lane.b32.xlu0 %v110, 48
    %v1641 = vpop.permute.xlu0 %1640
    %1642 = vrot.lane.b32.xlu0 %v112, 48
    %v1643 = vpop.permute.xlu0 %1642
    %1644 = vrot.lane.b32.xlu0 %v113, 48
    %v1645 = vpop.permute.xlu0 %1644
    %1646 = vrot.lane.b32.xlu0 %v115, 48
    %v1647 = vpop.permute.xlu0 %1646
    %1648 = vrot.lane.b32.xlu0 %v116, 48
    %v1649 = vpop.permute.xlu0 %1648
    %1650 = vrot.lane.b32.xlu0 %v118, 48
    %v1651 = vpop.permute.xlu0 %1650
    %1652 = vrot.lane.b32.xlu0 %v119, 48
    %v1653 = vpop.permute.xlu0 %1652
    %1654 = vrot.lane.b32.xlu0 %v121, 48
    %v1655 = vpop.permute.xlu0 %1654
    %1656 = vrot.lane.b32.xlu0 %v122, 48
    %v1657 = vpop.permute.xlu0 %1656
    %1658 = vrot.lane.b32.xlu0 %v124, 48
    %v1659 = vpop.permute.xlu0 %1658
    %1660 = vrot.lane.b32.xlu0 %v125, 48
    %v1661 = vpop.permute.xlu0 %1660
    %1662 = vrot.lane.b32.xlu0 %v127, 48
    %v1663 = vpop.permute.xlu0 %1662
    %1664 = vrot.lane.b32.xlu0 %v128, 48
    %v1665 = vpop.permute.xlu0 %1664
    %v1732 = vrot.slane %v73, 1
    %v1733 = vrot.slane %v74, 1
    %v1734 = vsel %vm226, %v1732, %v1733
    %v1735 = vrot.slane %v75, 1
    %v1736 = vsel %vm226, %v1733, %v1735
    %v1737 = vrot.slane %v127, 1
    %v1738 = vrot.slane %v128, 1
    %v1739 = vsel %vm226, %v1737, %v1738
    %v1740 = vrot.slane %v129, 1
    %v1741 = vsel %vm226, %v1738, %v1740
    %1742 = vrot.lane.b32.xlu0 %v239, 56
    %v1743 = vpop.permute.xlu0 %1742
    %1744 = vrot.lane.b32.xlu0 %v241, 56
    %v1745 = vpop.permute.xlu0 %1744
    %1746 = vrot.lane.b32.xlu0 %v244, 56
    %v1747 = vpop.permute.xlu0 %1746
    %1748 = vrot.lane.b32.xlu0 %v246, 56
    %v1749 = vpop.permute.xlu0 %1748
    %1750 = vrot.lane.b32.xlu0 %v249, 56
    %v1751 = vpop.permute.xlu0 %1750
    %1752 = vrot.lane.b32.xlu0 %v251, 56
    %v1753 = vpop.permute.xlu0 %1752
    %1754 = vrot.lane.b32.xlu0 %v254, 56
    %v1755 = vpop.permute.xlu0 %1754
    %1756 = vrot.lane.b32.xlu0 %v256, 56
    %v1757 = vpop.permute.xlu0 %1756
    %1758 = vrot.lane.b32.xlu0 %v259, 56
    %v1759 = vpop.permute.xlu0 %1758
    %1760 = vrot.lane.b32.xlu0 %v261, 56
    %v1761 = vpop.permute.xlu0 %1760
    %1762 = vrot.lane.b32.xlu0 %v264, 56
    %v1763 = vpop.permute.xlu0 %1762
    %1764 = vrot.lane.b32.xlu0 %v266, 56
    %v1765 = vpop.permute.xlu0 %1764
    %1766 = vrot.lane.b32.xlu0 %v269, 56
    %v1767 = vpop.permute.xlu0 %1766
    %1768 = vrot.lane.b32.xlu0 %v271, 56
    %v1769 = vpop.permute.xlu0 %1768
    %1770 = vrot.lane.b32.xlu0 %v274, 56
    %v1771 = vpop.permute.xlu0 %1770
    %1772 = vrot.lane.b32.xlu0 %v276, 56
    %v1773 = vpop.permute.xlu0 %1772
    %1774 = vrot.lane.b32.xlu0 %v279, 56
    %v1775 = vpop.permute.xlu0 %1774
    %1776 = vrot.lane.b32.xlu0 %v281, 56
    %v1777 = vpop.permute.xlu0 %1776
    %1778 = vrot.lane.b32.xlu0 %v284, 56
    %v1779 = vpop.permute.xlu0 %1778
    %1780 = vrot.lane.b32.xlu0 %v286, 56
    %v1781 = vpop.permute.xlu0 %1780
    %1782 = vrot.lane.b32.xlu0 %v289, 56
    %v1783 = vpop.permute.xlu0 %1782
    %1784 = vrot.lane.b32.xlu0 %v291, 56
    %v1785 = vpop.permute.xlu0 %1784
    %1786 = vrot.lane.b32.xlu0 %v294, 56
    %v1787 = vpop.permute.xlu0 %1786
    %1788 = vrot.lane.b32.xlu0 %v296, 56
    %v1789 = vpop.permute.xlu0 %1788
    %1790 = vrot.lane.b32.xlu0 %v299, 56
    %v1791 = vpop.permute.xlu0 %1790
    %1792 = vrot.lane.b32.xlu0 %v301, 56
    %v1793 = vpop.permute.xlu0 %1792
    %1794 = vrot.lane.b32.xlu0 %v304, 56
    %v1795 = vpop.permute.xlu0 %1794
    %1796 = vrot.lane.b32.xlu0 %v306, 56
    %v1797 = vpop.permute.xlu0 %1796
    %1798 = vrot.lane.b32.xlu0 %v1132, 56
    %v1799 = vpop.permute.xlu0 %1798
    %1800 = vrot.lane.b32.xlu0 %v1134, 56
    %v1801 = vpop.permute.xlu0 %1800
    %1802 = vrot.lane.b32.xlu0 %v1734, 56
    %v1803 = vpop.permute.xlu0 %1802
    %1804 = vrot.lane.b32.xlu0 %v1736, 56
    %v1805 = vpop.permute.xlu0 %1804
    %1806 = vrot.lane.b32.xlu0 %v319, 56
    %v1807 = vpop.permute.xlu0 %1806
    %1808 = vrot.lane.b32.xlu0 %v321, 56
    %v1809 = vpop.permute.xlu0 %1808
    %1810 = vrot.lane.b32.xlu0 %v324, 56
    %v1811 = vpop.permute.xlu0 %1810
    %1812 = vrot.lane.b32.xlu0 %v326, 56
    %v1813 = vpop.permute.xlu0 %1812
    %1814 = vrot.lane.b32.xlu0 %v329, 56
    %v1815 = vpop.permute.xlu0 %1814
    %1816 = vrot.lane.b32.xlu0 %v331, 56
    %v1817 = vpop.permute.xlu0 %1816
    %1818 = vrot.lane.b32.xlu0 %v334, 56
    %v1819 = vpop.permute.xlu0 %1818
    %1820 = vrot.lane.b32.xlu0 %v336, 56
    %v1821 = vpop.permute.xlu0 %1820
    %1822 = vrot.lane.b32.xlu0 %v339, 56
    %v1823 = vpop.permute.xlu0 %1822
    %1824 = vrot.lane.b32.xlu0 %v341, 56
    %v1825 = vpop.permute.xlu0 %1824
    %1826 = vrot.lane.b32.xlu0 %v344, 56
    %v1827 = vpop.permute.xlu0 %1826
    %1828 = vrot.lane.b32.xlu0 %v346, 56
    %v1829 = vpop.permute.xlu0 %1828
    %1830 = vrot.lane.b32.xlu0 %v349, 56
    %v1831 = vpop.permute.xlu0 %1830
    %1832 = vrot.lane.b32.xlu0 %v351, 56
    %v1833 = vpop.permute.xlu0 %1832
    %1834 = vrot.lane.b32.xlu0 %v354, 56
    %v1835 = vpop.permute.xlu0 %1834
    %1836 = vrot.lane.b32.xlu0 %v356, 56
    %v1837 = vpop.permute.xlu0 %1836
    %1838 = vrot.lane.b32.xlu0 %v359, 56
    %v1839 = vpop.permute.xlu0 %1838
    %1840 = vrot.lane.b32.xlu0 %v361, 56
    %v1841 = vpop.permute.xlu0 %1840
    %1842 = vrot.lane.b32.xlu0 %v364, 56
    %v1843 = vpop.permute.xlu0 %1842
    %1844 = vrot.lane.b32.xlu0 %v366, 56
    %v1845 = vpop.permute.xlu0 %1844
    %1846 = vrot.lane.b32.xlu0 %v369, 56
    %v1847 = vpop.permute.xlu0 %1846
    %1848 = vrot.lane.b32.xlu0 %v371, 56
    %v1849 = vpop.permute.xlu0 %1848
    %1850 = vrot.lane.b32.xlu0 %v374, 56
    %v1851 = vpop.permute.xlu0 %1850
    %1852 = vrot.lane.b32.xlu0 %v376, 56
    %v1853 = vpop.permute.xlu0 %1852
    %1854 = vrot.lane.b32.xlu0 %v379, 56
    %v1855 = vpop.permute.xlu0 %1854
    %1856 = vrot.lane.b32.xlu0 %v381, 56
    %v1857 = vpop.permute.xlu0 %1856
    %1858 = vrot.lane.b32.xlu0 %v384, 56
    %v1859 = vpop.permute.xlu0 %1858
    %1860 = vrot.lane.b32.xlu0 %v386, 56
    %v1861 = vpop.permute.xlu0 %1860
    %1862 = vrot.lane.b32.xlu0 %v1137, 56
    %v1863 = vpop.permute.xlu0 %1862
    %1864 = vrot.lane.b32.xlu0 %v1139, 56
    %v1865 = vpop.permute.xlu0 %1864
    %1866 = vrot.lane.b32.xlu0 %v1739, 56
    %v1867 = vpop.permute.xlu0 %1866
    %1868 = vrot.lane.b32.xlu0 %v1741, 56
    %v1869 = vpop.permute.xlu0 %1868
    %v1934 = vrot.slane %v73, 2
    %v1935 = vrot.slane %v74, 2
    %v1936 = vsel %vm579, %v1934, %v1935
    %v1937 = vrot.slane %v75, 2
    %v1938 = vsel %vm579, %v1935, %v1937
    %v1939 = vrot.slane %v127, 2
    %v1940 = vrot.slane %v128, 2
    %v1941 = vsel %vm579, %v1939, %v1940
    %v1942 = vrot.slane %v129, 2
    %v1943 = vsel %vm579, %v1940, %v1942
    %1944 = vrot.lane.b32.xlu0 %v592, 64
    %v1945 = vpop.permute.xlu0 %1944
    %1946 = vrot.lane.b32.xlu0 %v594, 64
    %v1947 = vpop.permute.xlu0 %1946
    %1948 = vrot.lane.b32.xlu0 %v597, 64
    %v1949 = vpop.permute.xlu0 %1948
    %1950 = vrot.lane.b32.xlu0 %v599, 64
    %v1951 = vpop.permute.xlu0 %1950
    %1952 = vrot.lane.b32.xlu0 %v602, 64
    %v1953 = vpop.permute.xlu0 %1952
    %1954 = vrot.lane.b32.xlu0 %v604, 64
    %v1955 = vpop.permute.xlu0 %1954
    %1956 = vrot.lane.b32.xlu0 %v607, 64
    %v1957 = vpop.permute.xlu0 %1956
    %1958 = vrot.lane.b32.xlu0 %v609, 64
    %v1959 = vpop.permute.xlu0 %1958
    %1960 = vrot.lane.b32.xlu0 %v612, 64
    %v1961 = vpop.permute.xlu0 %1960
    %1962 = vrot.lane.b32.xlu0 %v614, 64
    %v1963 = vpop.permute.xlu0 %1962
    %1964 = vrot.lane.b32.xlu0 %v617, 64
    %v1965 = vpop.permute.xlu0 %1964
    %1966 = vrot.lane.b32.xlu0 %v619, 64
    %v1967 = vpop.permute.xlu0 %1966
    %1968 = vrot.lane.b32.xlu0 %v622, 64
    %v1969 = vpop.permute.xlu0 %1968
    %1970 = vrot.lane.b32.xlu0 %v624, 64
    %v1971 = vpop.permute.xlu0 %1970
    %1972 = vrot.lane.b32.xlu0 %v627, 64
    %v1973 = vpop.permute.xlu0 %1972
    %1974 = vrot.lane.b32.xlu0 %v629, 64
    %v1975 = vpop.permute.xlu0 %1974
    %1976 = vrot.lane.b32.xlu0 %v632, 64
    %v1977 = vpop.permute.xlu0 %1976
    %1978 = vrot.lane.b32.xlu0 %v634, 64
    %v1979 = vpop.permute.xlu0 %1978
    %1980 = vrot.lane.b32.xlu0 %v637, 64
    %v1981 = vpop.permute.xlu0 %1980
    %1982 = vrot.lane.b32.xlu0 %v639, 64
    %v1983 = vpop.permute.xlu0 %1982
    %1984 = vrot.lane.b32.xlu0 %v642, 64
    %v1985 = vpop.permute.xlu0 %1984
    %1986 = vrot.lane.b32.xlu0 %v644, 64
    %v1987 = vpop.permute.xlu0 %1986
    %1988 = vrot.lane.b32.xlu0 %v647, 64
    %v1989 = vpop.permute.xlu0 %1988
    %1990 = vrot.lane.b32.xlu0 %v649, 64
    %v1991 = vpop.permute.xlu0 %1990
    %1992 = vrot.lane.b32.xlu0 %v652, 64
    %v1993 = vpop.permute.xlu0 %1992
    %1994 = vrot.lane.b32.xlu0 %v654, 64
    %v1995 = vpop.permute.xlu0 %1994
    %1996 = vrot.lane.b32.xlu0 %v657, 64
    %v1997 = vpop.permute.xlu0 %1996
    %1998 = vrot.lane.b32.xlu0 %v659, 64
    %v1999 = vpop.permute.xlu0 %1998
    %2000 = vrot.lane.b32.xlu0 %v1334, 64
    %v2001 = vpop.permute.xlu0 %2000
    %2002 = vrot.lane.b32.xlu0 %v1336, 64
    %v2003 = vpop.permute.xlu0 %2002
    %2004 = vrot.lane.b32.xlu0 %v1936, 64
    %v2005 = vpop.permute.xlu0 %2004
    %2006 = vrot.lane.b32.xlu0 %v1938, 64
    %v2007 = vpop.permute.xlu0 %2006
    %2008 = vrot.lane.b32.xlu0 %v672, 64
    %v2009 = vpop.permute.xlu0 %2008
    %2010 = vrot.lane.b32.xlu0 %v674, 64
    %v2011 = vpop.permute.xlu0 %2010
    %2012 = vrot.lane.b32.xlu0 %v677, 64
    %v2013 = vpop.permute.xlu0 %2012
    %2014 = vrot.lane.b32.xlu0 %v679, 64
    %v2015 = vpop.permute.xlu0 %2014
    %2016 = vrot.lane.b32.xlu0 %v682, 64
    %v2017 = vpop.permute.xlu0 %2016
    %2018 = vrot.lane.b32.xlu0 %v684, 64
    %v2019 = vpop.permute.xlu0 %2018
    %2020 = vrot.lane.b32.xlu0 %v687, 64
    %v2021 = vpop.permute.xlu0 %2020
    %2022 = vrot.lane.b32.xlu0 %v689, 64
    %v2023 = vpop.permute.xlu0 %2022
    %2024 = vrot.lane.b32.xlu0 %v692, 64
    %v2025 = vpop.permute.xlu0 %2024
    %2026 = vrot.lane.b32.xlu0 %v694, 64
    %v2027 = vpop.permute.xlu0 %2026
    %2028 = vrot.lane.b32.xlu0 %v697, 64
    %v2029 = vpop.permute.xlu0 %2028
    %2030 = vrot.lane.b32.xlu0 %v699, 64
    %v2031 = vpop.permute.xlu0 %2030
    %2032 = vrot.lane.b32.xlu0 %v702, 64
    %v2033 = vpop.permute.xlu0 %2032
    %2034 = vrot.lane.b32.xlu0 %v704, 64
    %v2035 = vpop.permute.xlu0 %2034
    %2036 = vrot.lane.b32.xlu0 %v707, 64
    %v2037 = vpop.permute.xlu0 %2036
    %2038 = vrot.lane.b32.xlu0 %v709, 64
    %v2039 = vpop.permute.xlu0 %2038
    %2040 = vrot.lane.b32.xlu0 %v712, 64
    %v2041 = vpop.permute.xlu0 %2040
    %2042 = vrot.lane.b32.xlu0 %v714, 64
    %v2043 = vpop.permute.xlu0 %2042
    %2044 = vrot.lane.b32.xlu0 %v717, 64
    %v2045 = vpop.permute.xlu0 %2044
    %2046 = vrot.lane.b32.xlu0 %v719, 64
    %v2047 = vpop.permute.xlu0 %2046
    %2048 = vrot.lane.b32.xlu0 %v722, 64
    %v2049 = vpop.permute.xlu0 %2048
    %2050 = vrot.lane.b32.xlu0 %v724, 64
    %v2051 = vpop.permute.xlu0 %2050
    %2052 = vrot.lane.b32.xlu0 %v727, 64
    %v2053 = vpop.permute.xlu0 %2052
    %2054 = vrot.lane.b32.xlu0 %v729, 64
    %v2055 = vpop.permute.xlu0 %2054
    %2056 = vrot.lane.b32.xlu0 %v732, 64
    %v2057 = vpop.permute.xlu0 %2056
    %2058 = vrot.lane.b32.xlu0 %v734, 64
    %v2059 = vpop.permute.xlu0 %2058
    %2060 = vrot.lane.b32.xlu0 %v737, 64
    %v2061 = vpop.permute.xlu0 %2060
    %2062 = vrot.lane.b32.xlu0 %v739, 64
    %v2063 = vpop.permute.xlu0 %2062
    %2064 = vrot.lane.b32.xlu0 %v1339, 64
    %v2065 = vpop.permute.xlu0 %2064
    %2066 = vrot.lane.b32.xlu0 %v1341, 64
    %v2067 = vpop.permute.xlu0 %2066
    %2068 = vrot.lane.b32.xlu0 %v1941, 64
    %v2069 = vpop.permute.xlu0 %2068
    %2070 = vrot.lane.b32.xlu0 %v1943, 64
    %v2071 = vpop.permute.xlu0 %2070
    %vm2136 = vcmask 64512
    %v2137 = vsel %vm2136, %v22, %v388
    %v2138 = vsel %vm2136, %v23, %v390
    %v2139 = vsel %vm2136, %v25, %v392
    %v2140 = vsel %vm2136, %v26, %v394
    %v2141 = vsel %vm2136, %v28, %v396
    %v2142 = vsel %vm2136, %v29, %v398
    %v2143 = vsel %vm2136, %v31, %v400
    %v2144 = vsel %vm2136, %v32, %v402
    %v2145 = vsel %vm2136, %v34, %v404
    %v2146 = vsel %vm2136, %v35, %v406
    %v2147 = vsel %vm2136, %v37, %v408
    %v2148 = vsel %vm2136, %v38, %v410
    %v2149 = vsel %vm2136, %v40, %v412
    %v2150 = vsel %vm2136, %v41, %v414
    %v2151 = vsel %vm2136, %v43, %v416
    %v2152 = vsel %vm2136, %v44, %v418
    %v2153 = vsel %vm2136, %v46, %v420
    %v2154 = vsel %vm2136, %v47, %v422
    %v2155 = vsel %vm2136, %v49, %v424
    %v2156 = vsel %vm2136, %v50, %v426
    %v2157 = vsel %vm2136, %v52, %v428
    %v2158 = vsel %vm2136, %v53, %v430
    %v2159 = vsel %vm2136, %v55, %v432
    %v2160 = vsel %vm2136, %v56, %v434
    %v2161 = vsel %vm2136, %v58, %v436
    %v2162 = vsel %vm2136, %v59, %v438
    %v2163 = vsel %vm2136, %v61, %v440
    %v2164 = vsel %vm2136, %v62, %v442
    %v2165 = vsel %vm2136, %v64, %v444
    %v2166 = vsel %vm2136, %v65, %v446
    %v2167 = vsel %vm2136, %v67, %v448
    %v2168 = vsel %vm2136, %v68, %v450
    %v2169 = vsel %vm2136, %v76, %v452
    %v2170 = vsel %vm2136, %v77, %v454
    %v2171 = vsel %vm2136, %v79, %v456
    %v2172 = vsel %vm2136, %v80, %v458
    %v2173 = vsel %vm2136, %v82, %v460
    %v2174 = vsel %vm2136, %v83, %v462
    %v2175 = vsel %vm2136, %v85, %v464
    %v2176 = vsel %vm2136, %v86, %v466
    %v2177 = vsel %vm2136, %v88, %v468
    %v2178 = vsel %vm2136, %v89, %v470
    %v2179 = vsel %vm2136, %v91, %v472
    %v2180 = vsel %vm2136, %v92, %v474
    %v2181 = vsel %vm2136, %v94, %v476
    %v2182 = vsel %vm2136, %v95, %v478
    %v2183 = vsel %vm2136, %v97, %v480
    %v2184 = vsel %vm2136, %v98, %v482
    %v2185 = vsel %vm2136, %v100, %v484
    %v2186 = vsel %vm2136, %v101, %v486
    %v2187 = vsel %vm2136, %v103, %v488
    %v2188 = vsel %vm2136, %v104, %v490
    %v2189 = vsel %vm2136, %v106, %v492
    %v2190 = vsel %vm2136, %v107, %v494
    %v2191 = vsel %vm2136, %v109, %v496
    %v2192 = vsel %vm2136, %v110, %v498
    %v2193 = vsel %vm2136, %v112, %v500
    %v2194 = vsel %vm2136, %v113, %v502
    %v2195 = vsel %vm2136, %v115, %v504
    %v2196 = vsel %vm2136, %v116, %v506
    %v2197 = vsel %vm2136, %v118, %v508
    %v2198 = vsel %vm2136, %v119, %v510
    %v2199 = vsel %vm2136, %v121, %v512
    %v2200 = vsel %vm2136, %v122, %v514
    %vm2201 = vcmask 130048
    %v2202 = vsel %vm2201, %v2137, %v741
    %v2203 = vsel %vm2201, %v2138, %v743
    %v2204 = vsel %vm2201, %v2139, %v745
    %v2205 = vsel %vm2201, %v2140, %v747
    %v2206 = vsel %vm2201, %v2141, %v749
    %v2207 = vsel %vm2201, %v2142, %v751
    %v2208 = vsel %vm2201, %v2143, %v753
    %v2209 = vsel %vm2201, %v2144, %v755
    %v2210 = vsel %vm2201, %v2145, %v757
    %v2211 = vsel %vm2201, %v2146, %v759
    %v2212 = vsel %vm2201, %v2147, %v761
    %v2213 = vsel %vm2201, %v2148, %v763
    %v2214 = vsel %vm2201, %v2149, %v765
    %v2215 = vsel %vm2201, %v2150, %v767
    %v2216 = vsel %vm2201, %v2151, %v769
    %v2217 = vsel %vm2201, %v2152, %v771
    %v2218 = vsel %vm2201, %v2153, %v773
    %v2219 = vsel %vm2201, %v2154, %v775
    %v2220 = vsel %vm2201, %v2155, %v777
    %v2221 = vsel %vm2201, %v2156, %v779
    %v2222 = vsel %vm2201, %v2157, %v781
    %v2223 = vsel %vm2201, %v2158, %v783
    %v2224 = vsel %vm2201, %v2159, %v785
    %v2225 = vsel %vm2201, %v2160, %v787
    %v2226 = vsel %vm2201, %v2161, %v789
    %v2227 = vsel %vm2201, %v2162, %v791
    %v2228 = vsel %vm2201, %v2163, %v793
    %v2229 = vsel %vm2201, %v2164, %v795
    %v2230 = vsel %vm2201, %v2165, %v797
    %v2231 = vsel %vm2201, %v2166, %v799
    %v2232 = vsel %vm2201, %v2167, %v801
    %v2233 = vsel %vm2201, %v2168, %v803
    %v2234 = vsel %vm2201, %v2169, %v805
    %v2235 = vsel %vm2201, %v2170, %v807
    %v2236 = vsel %vm2201, %v2171, %v809
    %v2237 = vsel %vm2201, %v2172, %v811
    %v2238 = vsel %vm2201, %v2173, %v813
    %v2239 = vsel %vm2201, %v2174, %v815
    %v2240 = vsel %vm2201, %v2175, %v817
    %v2241 = vsel %vm2201, %v2176, %v819
    %v2242 = vsel %vm2201, %v2177, %v821
    %v2243 = vsel %vm2201, %v2178, %v823
    %v2244 = vsel %vm2201, %v2179, %v825
    %v2245 = vsel %vm2201, %v2180, %v827
    %v2246 = vsel %vm2201, %v2181, %v829
    %v2247 = vsel %vm2201, %v2182, %v831
    %v2248 = vsel %vm2201, %v2183, %v833
    %v2249 = vsel %vm2201, %v2184, %v835
    %v2250 = vsel %vm2201, %v2185, %v837
    %v2251 = vsel %vm2201, %v2186, %v839
    %v2252 = vsel %vm2201, %v2187, %v841
    %v2253 = vsel %vm2201, %v2188, %v843
    %v2254 = vsel %vm2201, %v2189, %v845
    %v2255 = vsel %vm2201, %v2190, %v847
    %v2256 = vsel %vm2201, %v2191, %v849
    %v2257 = vsel %vm2201, %v2192, %v851
    %v2258 = vsel %vm2201, %v2193, %v853
    %v2259 = vsel %vm2201, %v2194, %v855
    %v2260 = vsel %vm2201, %v2195, %v857
    %v2261 = vsel %vm2201, %v2196, %v859
    %v2262 = vsel %vm2201, %v2197, %v861
    %v2263 = vsel %vm2201, %v2198, %v863
    %v2264 = vsel %vm2201, %v2199, %v865
    %v2265 = vsel %vm2201, %v2200, %v867
    %vm2266 = vcmask 195584
    %v2267 = vsel %vm2266, %v2202, %v937
    %v2268 = vsel %vm2266, %v2203, %v939
    %v2269 = vsel %vm2266, %v2204, %v941
    %v2270 = vsel %vm2266, %v2205, %v943
    %v2271 = vsel %vm2266, %v2206, %v945
    %v2272 = vsel %vm2266, %v2207, %v947
    %v2273 = vsel %vm2266, %v2208, %v949
    %v2274 = vsel %vm2266, %v2209, %v951
    %v2275 = vsel %vm2266, %v2210, %v953
    %v2276 = vsel %vm2266, %v2211, %v955
    %v2277 = vsel %vm2266, %v2212, %v957
    %v2278 = vsel %vm2266, %v2213, %v959
    %v2279 = vsel %vm2266, %v2214, %v961
    %v2280 = vsel %vm2266, %v2215, %v963
    %v2281 = vsel %vm2266, %v2216, %v965
    %v2282 = vsel %vm2266, %v2217, %v967
    %v2283 = vsel %vm2266, %v2218, %v969
    %v2284 = vsel %vm2266, %v2219, %v971
    %v2285 = vsel %vm2266, %v2220, %v973
    %v2286 = vsel %vm2266, %v2221, %v975
    %v2287 = vsel %vm2266, %v2222, %v977
    %v2288 = vsel %vm2266, %v2223, %v979
    %v2289 = vsel %vm2266, %v2224, %v981
    %v2290 = vsel %vm2266, %v2225, %v983
    %v2291 = vsel %vm2266, %v2226, %v985
    %v2292 = vsel %vm2266, %v2227, %v987
    %v2293 = vsel %vm2266, %v2228, %v989
    %v2294 = vsel %vm2266, %v2229, %v991
    %v2295 = vsel %vm2266, %v2230, %v993
    %v2296 = vsel %vm2266, %v2231, %v995
    %v2297 = vsel %vm2266, %v2232, %v997
    %v2298 = vsel %vm2266, %v2233, %v999
    %v2299 = vsel %vm2266, %v2234, %v1001
    %v2300 = vsel %vm2266, %v2235, %v1003
    %v2301 = vsel %vm2266, %v2236, %v1005
    %v2302 = vsel %vm2266, %v2237, %v1007
    %v2303 = vsel %vm2266, %v2238, %v1009
    %v2304 = vsel %vm2266, %v2239, %v1011
    %v2305 = vsel %vm2266, %v2240, %v1013
    %v2306 = vsel %vm2266, %v2241, %v1015
    %v2307 = vsel %vm2266, %v2242, %v1017
    %v2308 = vsel %vm2266, %v2243, %v1019
    %v2309 = vsel %vm2266, %v2244, %v1021
    %v2310 = vsel %vm2266, %v2245, %v1023
    %v2311 = vsel %vm2266, %v2246, %v1025
    %v2312 = vsel %vm2266, %v2247, %v1027
    %v2313 = vsel %vm2266, %v2248, %v1029
    %v2314 = vsel %vm2266, %v2249, %v1031
    %v2315 = vsel %vm2266, %v2250, %v1033
    %v2316 = vsel %vm2266, %v2251, %v1035
    %v2317 = vsel %vm2266, %v2252, %v1037
    %v2318 = vsel %vm2266, %v2253, %v1039
    %v2319 = vsel %vm2266, %v2254, %v1041
    %v2320 = vsel %vm2266, %v2255, %v1043
    %v2321 = vsel %vm2266, %v2256, %v1045
    %v2322 = vsel %vm2266, %v2257, %v1047
    %v2323 = vsel %vm2266, %v2258, %v1049
    %v2324 = vsel %vm2266, %v2259, %v1051
    %v2325 = vsel %vm2266, %v2260, %v1053
    %v2326 = vsel %vm2266, %v2261, %v1055
    %v2327 = vsel %vm2266, %v2262, %v1057
    %v2328 = vsel %vm2266, %v2263, %v1059
    %v2329 = vsel %vm2266, %v2264, %v1061
    %v2330 = vsel %vm2266, %v2265, %v1063
    %vm2331 = vcmask 261120
    %v2332 = vsel %vm2331, %v2267, %v1141
    %v2333 = vsel %vm2331, %v2268, %v1143
    %v2334 = vsel %vm2331, %v2269, %v1145
    %v2335 = vsel %vm2331, %v2270, %v1147
    %v2336 = vsel %vm2331, %v2271, %v1149
    %v2337 = vsel %vm2331, %v2272, %v1151
    %v2338 = vsel %vm2331, %v2273, %v1153
    %v2339 = vsel %vm2331, %v2274, %v1155
    %v2340 = vsel %vm2331, %v2275, %v1157
    %v2341 = vsel %vm2331, %v2276, %v1159
    %v2342 = vsel %vm2331, %v2277, %v1161
    %v2343 = vsel %vm2331, %v2278, %v1163
    %v2344 = vsel %vm2331, %v2279, %v1165
    %v2345 = vsel %vm2331, %v2280, %v1167
    %v2346 = vsel %vm2331, %v2281, %v1169
    %v2347 = vsel %vm2331, %v2282, %v1171
    %v2348 = vsel %vm2331, %v2283, %v1173
    %v2349 = vsel %vm2331, %v2284, %v1175
    %v2350 = vsel %vm2331, %v2285, %v1177
    %v2351 = vsel %vm2331, %v2286, %v1179
    %v2352 = vsel %vm2331, %v2287, %v1181
    %v2353 = vsel %vm2331, %v2288, %v1183
    %v2354 = vsel %vm2331, %v2289, %v1185
    %v2355 = vsel %vm2331, %v2290, %v1187
    %v2356 = vsel %vm2331, %v2291, %v1189
    %v2357 = vsel %vm2331, %v2292, %v1191
    %v2358 = vsel %vm2331, %v2293, %v1193
    %v2359 = vsel %vm2331, %v2294, %v1195
    %v2360 = vsel %vm2331, %v2295, %v1197
    %v2361 = vsel %vm2331, %v2296, %v1199
    %v2362 = vsel %vm2331, %v2297, %v1201
    %v2363 = vsel %vm2331, %v2298, %v1203
    %v2364 = vsel %vm2331, %v2299, %v1205
    %v2365 = vsel %vm2331, %v2300, %v1207
    %v2366 = vsel %vm2331, %v2301, %v1209
    %v2367 = vsel %vm2331, %v2302, %v1211
    %v2368 = vsel %vm2331, %v2303, %v1213
    %v2369 = vsel %vm2331, %v2304, %v1215
    %v2370 = vsel %vm2331, %v2305, %v1217
    %v2371 = vsel %vm2331, %v2306, %v1219
    %v2372 = vsel %vm2331, %v2307, %v1221
    %v2373 = vsel %vm2331, %v2308, %v1223
    %v2374 = vsel %vm2331, %v2309, %v1225
    %v2375 = vsel %vm2331, %v2310, %v1227
    %v2376 = vsel %vm2331, %v2311, %v1229
    %v2377 = vsel %vm2331, %v2312, %v1231
    %v2378 = vsel %vm2331, %v2313, %v1233
    %v2379 = vsel %vm2331, %v2314, %v1235
    %v2380 = vsel %vm2331, %v2315, %v1237
    %v2381 = vsel %vm2331, %v2316, %v1239
    %v2382 = vsel %vm2331, %v2317, %v1241
    %v2383 = vsel %vm2331, %v2318, %v1243
    %v2384 = vsel %vm2331, %v2319, %v1245
    %v2385 = vsel %vm2331, %v2320, %v1247
    %v2386 = vsel %vm2331, %v2321, %v1249
    %v2387 = vsel %vm2331, %v2322, %v1251
    %v2388 = vsel %vm2331, %v2323, %v1253
    %v2389 = vsel %vm2331, %v2324, %v1255
    %v2390 = vsel %vm2331, %v2325, %v1257
    %v2391 = vsel %vm2331, %v2326, %v1259
    %v2392 = vsel %vm2331, %v2327, %v1261
    %v2393 = vsel %vm2331, %v2328, %v1263
    %v2394 = vsel %vm2331, %v2329, %v1265
    %v2395 = vsel %vm2331, %v2330, %v1267
    %vm2396 = vcmask 326656
    %v2397 = vsel %vm2396, %v2332, %v1343
    %v2398 = vsel %vm2396, %v2333, %v1345
    %v2399 = vsel %vm2396, %v2334, %v1347
    %v2400 = vsel %vm2396, %v2335, %v1349
    %v2401 = vsel %vm2396, %v2336, %v1351
    %v2402 = vsel %vm2396, %v2337, %v1353
    %v2403 = vsel %vm2396, %v2338, %v1355
    %v2404 = vsel %vm2396, %v2339, %v1357
    %v2405 = vsel %vm2396, %v2340, %v1359
    %v2406 = vsel %vm2396, %v2341, %v1361
    %v2407 = vsel %vm2396, %v2342, %v1363
    %v2408 = vsel %vm2396, %v2343, %v1365
    %v2409 = vsel %vm2396, %v2344, %v1367
    %v2410 = vsel %vm2396, %v2345, %v1369
    %v2411 = vsel %vm2396, %v2346, %v1371
    %v2412 = vsel %vm2396, %v2347, %v1373
    %v2413 = vsel %vm2396, %v2348, %v1375
    %v2414 = vsel %vm2396, %v2349, %v1377
    %v2415 = vsel %vm2396, %v2350, %v1379
    %v2416 = vsel %vm2396, %v2351, %v1381
    %v2417 = vsel %vm2396, %v2352, %v1383
    %v2418 = vsel %vm2396, %v2353, %v1385
    %v2419 = vsel %vm2396, %v2354, %v1387
    %v2420 = vsel %vm2396, %v2355, %v1389
    %v2421 = vsel %vm2396, %v2356, %v1391
    %v2422 = vsel %vm2396, %v2357, %v1393
    %v2423 = vsel %vm2396, %v2358, %v1395
    %v2424 = vsel %vm2396, %v2359, %v1397
    %v2425 = vsel %vm2396, %v2360, %v1399
    %v2426 = vsel %vm2396, %v2361, %v1401
    %v2427 = vsel %vm2396, %v2362, %v1403
    %v2428 = vsel %vm2396, %v2363, %v1405
    %v2429 = vsel %vm2396, %v2364, %v1407
    %v2430 = vsel %vm2396, %v2365, %v1409
    %v2431 = vsel %vm2396, %v2366, %v1411
    %v2432 = vsel %vm2396, %v2367, %v1413
    %v2433 = vsel %vm2396, %v2368, %v1415
    %v2434 = vsel %vm2396, %v2369, %v1417
    %v2435 = vsel %vm2396, %v2370, %v1419
    %v2436 = vsel %vm2396, %v2371, %v1421
    %v2437 = vsel %vm2396, %v2372, %v1423
    %v2438 = vsel %vm2396, %v2373, %v1425
    %v2439 = vsel %vm2396, %v2374, %v1427
    %v2440 = vsel %vm2396, %v2375, %v1429
    %v2441 = vsel %vm2396, %v2376, %v1431
    %v2442 = vsel %vm2396, %v2377, %v1433
    %v2443 = vsel %vm2396, %v2378, %v1435
    %v2444 = vsel %vm2396, %v2379, %v1437
    %v2445 = vsel %vm2396, %v2380, %v1439
    %v2446 = vsel %vm2396, %v2381, %v1441
    %v2447 = vsel %vm2396, %v2382, %v1443
    %v2448 = vsel %vm2396, %v2383, %v1445
    %v2449 = vsel %vm2396, %v2384, %v1447
    %v2450 = vsel %vm2396, %v2385, %v1449
    %v2451 = vsel %vm2396, %v2386, %v1451
    %v2452 = vsel %vm2396, %v2387, %v1453
    %v2453 = vsel %vm2396, %v2388, %v1455
    %v2454 = vsel %vm2396, %v2389, %v1457
    %v2455 = vsel %vm2396, %v2390, %v1459
    %v2456 = vsel %vm2396, %v2391, %v1461
    %v2457 = vsel %vm2396, %v2392, %v1463
    %v2458 = vsel %vm2396, %v2393, %v1465
    %v2459 = vsel %vm2396, %v2394, %v1467
    %v2460 = vsel %vm2396, %v2395, %v1469
    %vm2461 = vcmask 392192
    %v2462 = vsel %vm2461, %v2397, %v1539
    %v2463 = vsel %vm2461, %v2398, %v1541
    %v2464 = vsel %vm2461, %v2399, %v1543
    %v2465 = vsel %vm2461, %v2400, %v1545
    %v2466 = vsel %vm2461, %v2401, %v1547
    %v2467 = vsel %vm2461, %v2402, %v1549
    %v2468 = vsel %vm2461, %v2403, %v1551
    %v2469 = vsel %vm2461, %v2404, %v1553
    %v2470 = vsel %vm2461, %v2405, %v1555
    %v2471 = vsel %vm2461, %v2406, %v1557
    %v2472 = vsel %vm2461, %v2407, %v1559
    %v2473 = vsel %vm2461, %v2408, %v1561
    %v2474 = vsel %vm2461, %v2409, %v1563
    %v2475 = vsel %vm2461, %v2410, %v1565
    %v2476 = vsel %vm2461, %v2411, %v1567
    %v2477 = vsel %vm2461, %v2412, %v1569
    %v2478 = vsel %vm2461, %v2413, %v1571
    %v2479 = vsel %vm2461, %v2414, %v1573
    %v2480 = vsel %vm2461, %v2415, %v1575
    %v2481 = vsel %vm2461, %v2416, %v1577
    %v2482 = vsel %vm2461, %v2417, %v1579
    %v2483 = vsel %vm2461, %v2418, %v1581
    %v2484 = vsel %vm2461, %v2419, %v1583
    %v2485 = vsel %vm2461, %v2420, %v1585
    %v2486 = vsel %vm2461, %v2421, %v1587
    %v2487 = vsel %vm2461, %v2422, %v1589
    %v2488 = vsel %vm2461, %v2423, %v1591
    %v2489 = vsel %vm2461, %v2424, %v1593
    %v2490 = vsel %vm2461, %v2425, %v1595
    %v2491 = vsel %vm2461, %v2426, %v1597
    %v2492 = vsel %vm2461, %v2427, %v1599
    %v2493 = vsel %vm2461, %v2428, %v1601
    %v2494 = vsel %vm2461, %v2429, %v1603
    %v2495 = vsel %vm2461, %v2430, %v1605
    %v2496 = vsel %vm2461, %v2431, %v1607
    %v2497 = vsel %vm2461, %v2432, %v1609
    %v2498 = vsel %vm2461, %v2433, %v1611
    %v2499 = vsel %vm2461, %v2434, %v1613
    %v2500 = vsel %vm2461, %v2435, %v1615
    %v2501 = vsel %vm2461, %v2436, %v1617
    %v2502 = vsel %vm2461, %v2437, %v1619
    %v2503 = vsel %vm2461, %v2438, %v1621
    %v2504 = vsel %vm2461, %v2439, %v1623
    %v2505 = vsel %vm2461, %v2440, %v1625
    %v2506 = vsel %vm2461, %v2441, %v1627
    %v2507 = vsel %vm2461, %v2442, %v1629
    %v2508 = vsel %vm2461, %v2443, %v1631
    %v2509 = vsel %vm2461, %v2444, %v1633
    %v2510 = vsel %vm2461, %v2445, %v1635
    %v2511 = vsel %vm2461, %v2446, %v1637
    %v2512 = vsel %vm2461, %v2447, %v1639
    %v2513 = vsel %vm2461, %v2448, %v1641
    %v2514 = vsel %vm2461, %v2449, %v1643
    %v2515 = vsel %vm2461, %v2450, %v1645
    %v2516 = vsel %vm2461, %v2451, %v1647
    %v2517 = vsel %vm2461, %v2452, %v1649
    %v2518 = vsel %vm2461, %v2453, %v1651
    %v2519 = vsel %vm2461, %v2454, %v1653
    %v2520 = vsel %vm2461, %v2455, %v1655
    %v2521 = vsel %vm2461, %v2456, %v1657
    %v2522 = vsel %vm2461, %v2457, %v1659
    %v2523 = vsel %vm2461, %v2458, %v1661
    %v2524 = vsel %vm2461, %v2459, %v1663
    %v2525 = vsel %vm2461, %v2460, %v1665
    %vm2526 = vcmask 457728
    %v2527 = vsel %vm2526, %v2462, %v1743
    %v2528 = vsel %vm2526, %v2463, %v1745
    %v2529 = vsel %vm2526, %v2464, %v1747
    %v2530 = vsel %vm2526, %v2465, %v1749
    %v2531 = vsel %vm2526, %v2466, %v1751
    %v2532 = vsel %vm2526, %v2467, %v1753
    %v2533 = vsel %vm2526, %v2468, %v1755
    %v2534 = vsel %vm2526, %v2469, %v1757
    %v2535 = vsel %vm2526, %v2470, %v1759
    %v2536 = vsel %vm2526, %v2471, %v1761
    %v2537 = vsel %vm2526, %v2472, %v1763
    %v2538 = vsel %vm2526, %v2473, %v1765
    %v2539 = vsel %vm2526, %v2474, %v1767
    %v2540 = vsel %vm2526, %v2475, %v1769
    %v2541 = vsel %vm2526, %v2476, %v1771
    %v2542 = vsel %vm2526, %v2477, %v1773
    %v2543 = vsel %vm2526, %v2478, %v1775
    %v2544 = vsel %vm2526, %v2479, %v1777
    %v2545 = vsel %vm2526, %v2480, %v1779
    %v2546 = vsel %vm2526, %v2481, %v1781
    %v2547 = vsel %vm2526, %v2482, %v1783
    %v2548 = vsel %vm2526, %v2483, %v1785
    %v2549 = vsel %vm2526, %v2484, %v1787
    %v2550 = vsel %vm2526, %v2485, %v1789
    %v2551 = vsel %vm2526, %v2486, %v1791
    %v2552 = vsel %vm2526, %v2487, %v1793
    %v2553 = vsel %vm2526, %v2488, %v1795
    %v2554 = vsel %vm2526, %v2489, %v1797
    %v2555 = vsel %vm2526, %v2490, %v1799
    %v2556 = vsel %vm2526, %v2491, %v1801
    %v2557 = vsel %vm2526, %v2492, %v1803
    %v2558 = vsel %vm2526, %v2493, %v1805
    %v2559 = vsel %vm2526, %v2494, %v1807
    %v2560 = vsel %vm2526, %v2495, %v1809
    %v2561 = vsel %vm2526, %v2496, %v1811
    %v2562 = vsel %vm2526, %v2497, %v1813
    %v2563 = vsel %vm2526, %v2498, %v1815
    %v2564 = vsel %vm2526, %v2499, %v1817
    %v2565 = vsel %vm2526, %v2500, %v1819
    %v2566 = vsel %vm2526, %v2501, %v1821
    %v2567 = vsel %vm2526, %v2502, %v1823
    %v2568 = vsel %vm2526, %v2503, %v1825
    %v2569 = vsel %vm2526, %v2504, %v1827
    %v2570 = vsel %vm2526, %v2505, %v1829
    %v2571 = vsel %vm2526, %v2506, %v1831
    %v2572 = vsel %vm2526, %v2507, %v1833
    %v2573 = vsel %vm2526, %v2508, %v1835
    %v2574 = vsel %vm2526, %v2509, %v1837
    %v2575 = vsel %vm2526, %v2510, %v1839
    %v2576 = vsel %vm2526, %v2511, %v1841
    %v2577 = vsel %vm2526, %v2512, %v1843
    %v2578 = vsel %vm2526, %v2513, %v1845
    %v2579 = vsel %vm2526, %v2514, %v1847
    %v2580 = vsel %vm2526, %v2515, %v1849
    %v2581 = vsel %vm2526, %v2516, %v1851
    %v2582 = vsel %vm2526, %v2517, %v1853
    %v2583 = vsel %vm2526, %v2518, %v1855
    %v2584 = vsel %vm2526, %v2519, %v1857
    %v2585 = vsel %vm2526, %v2520, %v1859
    %v2586 = vsel %vm2526, %v2521, %v1861
    %v2587 = vsel %vm2526, %v2522, %v1863
    %v2588 = vsel %vm2526, %v2523, %v1865
    %v2589 = vsel %vm2526, %v2524, %v1867
    %v2590 = vsel %vm2526, %v2525, %v1869
    %vm2591 = vcmask 523264
    %v2592 = vsel %vm2591, %v2527, %v1945
    %v2593 = vsel %vm2591, %v2528, %v1947
    %v2594 = vsel %vm2591, %v2529, %v1949
    %v2595 = vsel %vm2591, %v2530, %v1951
    %v2596 = vsel %vm2591, %v2531, %v1953
    %v2597 = vsel %vm2591, %v2532, %v1955
    %v2598 = vsel %vm2591, %v2533, %v1957
    %v2599 = vsel %vm2591, %v2534, %v1959
    %v2600 = vsel %vm2591, %v2535, %v1961
    %v2601 = vsel %vm2591, %v2536, %v1963
    %v2602 = vsel %vm2591, %v2537, %v1965
    %v2603 = vsel %vm2591, %v2538, %v1967
    %v2604 = vsel %vm2591, %v2539, %v1969
    %v2605 = vsel %vm2591, %v2540, %v1971
    %v2606 = vsel %vm2591, %v2541, %v1973
    %v2607 = vsel %vm2591, %v2542, %v1975
    %v2608 = vsel %vm2591, %v2543, %v1977
    %v2609 = vsel %vm2591, %v2544, %v1979
    %v2610 = vsel %vm2591, %v2545, %v1981
    %v2611 = vsel %vm2591, %v2546, %v1983
    %v2612 = vsel %vm2591, %v2547, %v1985
    %v2613 = vsel %vm2591, %v2548, %v1987
    %v2614 = vsel %vm2591, %v2549, %v1989
    %v2615 = vsel %vm2591, %v2550, %v1991
    %v2616 = vsel %vm2591, %v2551, %v1993
    %v2617 = vsel %vm2591, %v2552, %v1995
    %v2618 = vsel %vm2591, %v2553, %v1997
    %v2619 = vsel %vm2591, %v2554, %v1999
    %v2620 = vsel %vm2591, %v2555, %v2001
    %v2621 = vsel %vm2591, %v2556, %v2003
    %v2622 = vsel %vm2591, %v2557, %v2005
    %v2623 = vsel %vm2591, %v2558, %v2007
    %v2624 = vsel %vm2591, %v2559, %v2009
    %v2625 = vsel %vm2591, %v2560, %v2011
    %v2626 = vsel %vm2591, %v2561, %v2013
    %v2627 = vsel %vm2591, %v2562, %v2015
    %v2628 = vsel %vm2591, %v2563, %v2017
    %v2629 = vsel %vm2591, %v2564, %v2019
    %v2630 = vsel %vm2591, %v2565, %v2021
    %v2631 = vsel %vm2591, %v2566, %v2023
    %v2632 = vsel %vm2591, %v2567, %v2025
    %v2633 = vsel %vm2591, %v2568, %v2027
    %v2634 = vsel %vm2591, %v2569, %v2029
    %v2635 = vsel %vm2591, %v2570, %v2031
    %v2636 = vsel %vm2591, %v2571, %v2033
    %v2637 = vsel %vm2591, %v2572, %v2035
    %v2638 = vsel %vm2591, %v2573, %v2037
    %v2639 = vsel %vm2591, %v2574, %v2039
    %v2640 = vsel %vm2591, %v2575, %v2041
    %v2641 = vsel %vm2591, %v2576, %v2043
    %v2642 = vsel %vm2591, %v2577, %v2045
    %v2643 = vsel %vm2591, %v2578, %v2047
    %v2644 = vsel %vm2591, %v2579, %v2049
    %v2645 = vsel %vm2591, %v2580, %v2051
    %v2646 = vsel %vm2591, %v2581, %v2053
    %v2647 = vsel %vm2591, %v2582, %v2055
    %v2648 = vsel %vm2591, %v2583, %v2057
    %v2649 = vsel %vm2591, %v2584, %v2059
    %v2650 = vsel %vm2591, %v2585, %v2061
    %v2651 = vsel %vm2591, %v2586, %v2063
    %v2652 = vsel %vm2591, %v2587, %v2065
    %v2653 = vsel %vm2591, %v2588, %v2067
    %v2654 = vsel %vm2591, %v2589, %v2069
    %v2655 = vsel %vm2591, %v2590, %v2071
    %v2656 = vpack.c.bf16 %v2593, %v2592
    %v2657 = vpack.c.bf16 %v2595, %v2594
    %v2658 = vpack.c.bf16 %v2597, %v2596
    %v2659 = vpack.c.bf16 %v2599, %v2598
    %v2660 = vpack.c.bf16 %v2601, %v2600
    %v2661 = vpack.c.bf16 %v2603, %v2602
    %v2662 = vpack.c.bf16 %v2605, %v2604
    %v2663 = vpack.c.bf16 %v2607, %v2606
    %v2664 = vpack.c.bf16 %v2609, %v2608
    %v2665 = vpack.c.bf16 %v2611, %v2610
    %v2666 = vpack.c.bf16 %v2613, %v2612
    %v2667 = vpack.c.bf16 %v2615, %v2614
    %v2668 = vpack.c.bf16 %v2617, %v2616
    %v2669 = vpack.c.bf16 %v2619, %v2618
    %v2670 = vpack.c.bf16 %v2621, %v2620
    %v2671 = vpack.c.bf16 %v2623, %v2622
    %v2672 = vpack.c.bf16 %v2625, %v2624
    %v2673 = vpack.c.bf16 %v2627, %v2626
    %v2674 = vpack.c.bf16 %v2629, %v2628
    %v2675 = vpack.c.bf16 %v2631, %v2630
    %v2676 = vpack.c.bf16 %v2633, %v2632
    %v2677 = vpack.c.bf16 %v2635, %v2634
    %v2678 = vpack.c.bf16 %v2637, %v2636
    %v2679 = vpack.c.bf16 %v2639, %v2638
    %v2680 = vpack.c.bf16 %v2641, %v2640
    %v2681 = vpack.c.bf16 %v2643, %v2642
    %v2682 = vpack.c.bf16 %v2645, %v2644
    %v2683 = vpack.c.bf16 %v2647, %v2646
    %v2684 = vpack.c.bf16 %v2649, %v2648
    %v2685 = vpack.c.bf16 %v2651, %v2650
    %v2686 = vpack.c.bf16 %v2653, %v2652
    %v2687 = vpack.c.bf16 %v2655, %v2654
    %v2688 = vld [vmem:[%s1] sm:$0xff]
    %v2689 = vld [vmem:[%s1 + $0x8] sm:$0xff]
    %v2690 = vld [vmem:[%s1 + $0x10] sm:$0xff]
    %v2691 = vld [vmem:[%s1 + $0x18] sm:$0xff]
    %v2692 = vld [vmem:[%s1 + $0x20] sm:$0xff]
    %v2693 = vld [vmem:[%s1 + $0x28] sm:$0xff]
    %v2694 = vld [vmem:[%s1 + $0x30] sm:$0xff]
    %v2695 = vld [vmem:[%s1 + $0x38] sm:$0xff]
    %v2696 = vld [vmem:[%s1 + $0x40] sm:$0xff]
    %v2697 = vpack.c.bf16 %v2689, %v2688
    %v2698 = vpack.c.bf16 %v2691, %v2690
    %v2699 = vpack.c.bf16 %v2693, %v2692
    %v2700 = vpack.c.bf16 %v2695, %v2694
    %v2701 = vpack.c.bf16 %v2696, %v2696
    %v2702 = vld [vmem:[%s2] sm:$0x1]
    %v2704 = vlaneseq
    %v2705 = vshrl.u32 %v2704, 7
    %v2706 = vsub.s32 0, %v2705
    %v2707 = vrot.slane %v2702, %v2706
    %vm2709 = vcmask 588800
    %v2711 = vsel %vm2709, %v2656, 0
    %v2714 = vsel %vm2709, %v2657, 0
    %v2717 = vsel %vm2709, %v2658, 0
    %v2720 = vsel %vm2709, %v2659, 0
    %v2723 = vsel %vm2709, %v2660, 0
    %v2726 = vsel %vm2709, %v2661, 0
    %v2729 = vsel %vm2709, %v2662, 0
    %v2732 = vsel %vm2709, %v2663, 0
    %v2735 = vsel %vm2709, %v2664, 0
    %v2738 = vsel %vm2709, %v2665, 0
    %v2741 = vsel %vm2709, %v2666, 0
    %v2744 = vsel %vm2709, %v2667, 0
    %v2747 = vsel %vm2709, %v2668, 0
    %v2750 = vsel %vm2709, %v2669, 0
    %v2753 = vsel %vm2709, %v2670, 0
    %v2756 = vsel %vm2709, %v2671, 0
    %v2759 = vsel %vm2709, %v2672, 0
    %v2762 = vsel %vm2709, %v2673, 0
    %v2765 = vsel %vm2709, %v2674, 0
    %v2768 = vsel %vm2709, %v2675, 0
    %v2771 = vsel %vm2709, %v2676, 0
    %v2774 = vsel %vm2709, %v2677, 0
    %v2777 = vsel %vm2709, %v2678, 0
    %v2780 = vsel %vm2709, %v2679, 0
    %v2783 = vsel %vm2709, %v2680, 0
    %v2786 = vsel %vm2709, %v2681, 0
    %v2789 = vsel %vm2709, %v2682, 0
    %v2792 = vsel %vm2709, %v2683, 0
    %v2795 = vsel %vm2709, %v2684, 0
    %v2798 = vsel %vm2709, %v2685, 0
    %v2801 = vsel %vm2709, %v2686, 0
    %v2804 = vsel %vm2709, %v2687, 0
    %vm2806 = vcmask 1043456
    %v2808 = vsel %vm2806, %v2701, 0
    %2810 = vmatprep.subr.bf16.mxu0 0
    %2811 = vmatpush1.bf16.msra.mxu0 %v2697
    %2812 = vmatprep.subr.bf16.mxu0 0
    %2813 = vmatpush1.bf16.msra.mxu0 %v2698
    %2814 = vmatprep.subr.bf16.mxu0 0
    %2815 = vmatpush1.bf16.msra.mxu0 %v2699
    %2816 = vmatprep.subr.bf16.mxu0 0
    %2817 = vmatpush1.bf16.msra.mxu0 %v2700
    %2818 = vmatprep.subr.bf16.mxu0 0
    %2819 = vmatpush1.bf16.msra.mxu0 %v2808
    %2820 = vmatprep.subr.bf16.mxu0 0
    %2821 = vmatpush1.bf16.msra.mxu0 0
    %2822 = vmatprep.subr.bf16.mxu0 0
    %2823 = vmatpush1.bf16.msra.mxu0 0
    %2824 = vmatprep.subr.bf16.mxu0 0
    %2825 = vmatpush1.bf16.msra.mxu0 0
    %2826 = vmatprep.subr.bf16.mxu0 0
    %2827 = vmatpush1.bf16.msra.mxu0 0
    %2828 = vmatprep.subr.bf16.mxu0 0
    %2829 = vmatpush1.bf16.msra.mxu0 0
    %2830 = vmatprep.subr.bf16.mxu0 0
    %2831 = vmatpush1.bf16.msra.mxu0 0
    %2832 = vmatprep.subr.bf16.mxu0 0
    %2833 = vmatpush1.bf16.msra.mxu0 0
    %2834 = vmatprep.subr.bf16.mxu0 0
    %2835 = vmatpush1.bf16.msra.mxu0 0
    %2836 = vmatprep.subr.bf16.mxu0 0
    %2837 = vmatpush1.bf16.msra.mxu0 0
    %2838 = vmatprep.subr.bf16.mxu0 0
    %2839 = vmatpush1.bf16.msra.mxu0 0
    %2840 = vmatprep.subr.bf16.mxu0 0
    %2841 = vmatpush1.bf16.msra.mxu0 0
    %2842 = vmatprep.mubr.bf16.mxu0 0
    %2843 = vmatmul.mubr.bf16.gmra.mrb[0].mxu0 %v2711
    %v2844 = vpop.f32.mrb[0].mxu0
    %v2845 = vadd.f32 %v2707, %v2844
    %v2846 = vpop.f32.mrb[0].mxu0
    %v2847 = vpop.f32.mrb[0].mxu0
    %v2848 = vadd.f32 %v2707, %v2847
    %v2849 = vpop.f32.mrb[0].mxu0
    %2850 = vmatprep.mubr.bf16.mxu0 0
    %2851 = vmatmul.mubr.bf16.gmra.mrb[0].mxu0 %v2714
    %v2852 = vpop.f32.mrb[0].mxu0
    %v2853 = vadd.f32 %v2707, %v2852
    %v2854 = vpop.f32.mrb[0].mxu0
    %v2855 = vpop.f32.mrb[0].mxu0
    %v2856 = vadd.f32 %v2707, %v2855
    %v2857 = vpop.f32.mrb[0].mxu0
    %2858 = vmatprep.mubr.bf16.mxu0 0
    %2859 = vmatmul.mubr.bf16.gmra.mrb[0].mxu0 %v2717
    %v2860 = vpop.f32.mrb[0].mxu0
    %v2861 = vadd.f32 %v2707, %v2860
    %v2862 = vpop.f32.mrb[0].mxu0
    %v2863 = vpop.f32.mrb[0].mxu0
    %v2864 = vadd.f32 %v2707, %v2863
    %v2865 = vpop.f32.mrb[0].mxu0
    %2866 = vmatprep.mubr.bf16.mxu0 0
    %2867 = vmatmul.mubr.bf16.gmra.mrb[0].mxu0 %v2720
    %v2868 = vpop.f32.mrb[0].mxu0
    %v2869 = vadd.f32 %v2707, %v2868
    %v2870 = vpop.f32.mrb[0].mxu0
    %v2871 = vpop.f32.mrb[0].mxu0
    %v2872 = vadd.f32 %v2707, %v2871
    %v2873 = vpop.f32.mrb[0].mxu0
    %2874 = vmatprep.mubr.bf16.mxu0 0
    %2875 = vmatmul.mubr.bf16.gmra.mrb[0].mxu0 %v2723
    %v2876 = vpop.f32.mrb[0].mxu0
    %v2877 = vadd.f32 %v2707, %v2876
    %v2878 = vpop.f32.mrb[0].mxu0
    %v2879 = vpop.f32.mrb[0].mxu0
    %v2880 = vadd.f32 %v2707, %v2879
    %v2881 = vpop.f32.mrb[0].mxu0
    %2882 = vmatprep.mubr.bf16.mxu0 0
    %2883 = vmatmul.mubr.bf16.gmra.mrb[0].mxu0 %v2726
    %v2884 = vpop.f32.mrb[0].mxu0
    %v2885 = vadd.f32 %v2707, %v2884
    %v2886 = vpop.f32.mrb[0].mxu0
    %v2887 = vpop.f32.mrb[0].mxu0
    %v2888 = vadd.f32 %v2707, %v2887
    %v2889 = vpop.f32.mrb[0].mxu0
    %2890 = vmatprep.mubr.bf16.mxu0 0
    %2891 = vmatmul.mubr.bf16.gmra.mrb[0].mxu0 %v2729
    %v2892 = vpop.f32.mrb[0].mxu0
    %v2893 = vadd.f32 %v2707, %v2892
    %v2894 = vpop.f32.mrb[0].mxu0
    %v2895 = vpop.f32.mrb[0].mxu0
    %v2896 = vadd.f32 %v2707, %v2895
    %v2897 = vpop.f32.mrb[0].mxu0
    %2898 = vmatprep.mubr.bf16.mxu0 0
    %2899 = vmatmul.mubr.bf16.gmra.mrb[0].mxu0 %v2732
    %v2900 = vpop.f32.mrb[0].mxu0
    %v2901 = vadd.f32 %v2707, %v2900
    %v2902 = vpop.f32.mrb[0].mxu0
    %v2903 = vpop.f32.mrb[0].mxu0
    %v2904 = vadd.f32 %v2707, %v2903
    %v2905 = vpop.f32.mrb[0].mxu0
    %2906 = vmatprep.mubr.bf16.mxu0 0
    %2907 = vmatmul.mubr.bf16.gmra.mrb[0].mxu0 %v2735
    %v2908 = vpop.f32.mrb[0].mxu0
    %v2909 = vadd.f32 %v2707, %v2908
    %v2910 = vpop.f32.mrb[0].mxu0
    %v2911 = vpop.f32.mrb[0].mxu0
    %v2912 = vadd.f32 %v2707, %v2911
    %v2913 = vpop.f32.mrb[0].mxu0
    %2914 = vmatprep.mubr.bf16.mxu0 0
    %2915 = vmatmul.mubr.bf16.gmra.mrb[0].mxu0 %v2738
    %v2916 = vpop.f32.mrb[0].mxu0
    %v2917 = vadd.f32 %v2707, %v2916
    %v2918 = vpop.f32.mrb[0].mxu0
    %v2919 = vpop.f32.mrb[0].mxu0
    %v2920 = vadd.f32 %v2707, %v2919
    %v2921 = vpop.f32.mrb[0].mxu0
    %2922 = vmatprep.mubr.bf16.mxu0 0
    %2923 = vmatmul.mubr.bf16.gmra.mrb[0].mxu0 %v2741
    %v2924 = vpop.f32.mrb[0].mxu0
    %v2925 = vadd.f32 %v2707, %v2924
    %v2926 = vpop.f32.mrb[0].mxu0
    %v2927 = vpop.f32.mrb[0].mxu0
    %v2928 = vadd.f32 %v2707, %v2927
    %v2929 = vpop.f32.mrb[0].mxu0
    %2930 = vmatprep.mubr.bf16.mxu0 0
    %2931 = vmatmul.mubr.bf16.gmra.mrb[0].mxu0 %v2744
    %v2932 = vpop.f32.mrb[0].mxu0
    %v2933 = vadd.f32 %v2707, %v2932
    %v2934 = vpop.f32.mrb[0].mxu0
    %v2935 = vpop.f32.mrb[0].mxu0
    %v2936 = vadd.f32 %v2707, %v2935
    %v2937 = vpop.f32.mrb[0].mxu0
    %2938 = vmatprep.mubr.bf16.mxu0 0
    %2939 = vmatmul.mubr.bf16.gmra.mrb[0].mxu0 %v2747
    %v2940 = vpop.f32.mrb[0].mxu0
    %v2941 = vadd.f32 %v2707, %v2940
    %v2942 = vpop.f32.mrb[0].mxu0
    %v2943 = vpop.f32.mrb[0].mxu0
    %v2944 = vadd.f32 %v2707, %v2943
    %v2945 = vpop.f32.mrb[0].mxu0
    %2946 = vmatprep.mubr.bf16.mxu0 0
    %2947 = vmatmul.mubr.bf16.gmra.mrb[0].mxu0 %v2750
    %v2948 = vpop.f32.mrb[0].mxu0
    %v2949 = vadd.f32 %v2707, %v2948
    %v2950 = vpop.f32.mrb[0].mxu0
    %v2951 = vpop.f32.mrb[0].mxu0
    %v2952 = vadd.f32 %v2707, %v2951
    %v2953 = vpop.f32.mrb[0].mxu0
    %2954 = vmatprep.mubr.bf16.mxu0 0
    %2955 = vmatmul.mubr.bf16.gmra.mrb[0].mxu0 %v2753
    %v2956 = vpop.f32.mrb[0].mxu0
    %v2957 = vadd.f32 %v2707, %v2956
    %v2958 = vpop.f32.mrb[0].mxu0
    %v2959 = vpop.f32.mrb[0].mxu0
    %v2960 = vadd.f32 %v2707, %v2959
    %v2961 = vpop.f32.mrb[0].mxu0
    %2962 = vmatprep.mubr.bf16.mxu0 0
    %2963 = vmatmul.mubr.bf16.gmra.mrb[0].mxu0 %v2756
    %v2964 = vpop.f32.mrb[0].mxu0
    %v2965 = vadd.f32 %v2707, %v2964
    %v2966 = vpop.f32.mrb[0].mxu0
    %v2967 = vpop.f32.mrb[0].mxu0
    %v2968 = vadd.f32 %v2707, %v2967
    %v2969 = vpop.f32.mrb[0].mxu0
    %2970 = vmatprep.mubr.bf16.mxu0 0
    %2971 = vmatmul.mubr.bf16.gmra.mrb[0].mxu0 %v2759
    %v2972 = vpop.f32.mrb[0].mxu0
    %v2973 = vadd.f32 %v2707, %v2972
    %v2974 = vpop.f32.mrb[0].mxu0
    %v2975 = vpop.f32.mrb[0].mxu0
    %v2976 = vadd.f32 %v2707, %v2975
    %v2977 = vpop.f32.mrb[0].mxu0
    %2978 = vmatprep.mubr.bf16.mxu0 0
    %2979 = vmatmul.mubr.bf16.gmra.mrb[0].mxu0 %v2762
    %v2980 = vpop.f32.mrb[0].mxu0
    %v2981 = vadd.f32 %v2707, %v2980
    %v2982 = vpop.f32.mrb[0].mxu0
    %v2983 = vpop.f32.mrb[0].mxu0
    %v2984 = vadd.f32 %v2707, %v2983
    %v2985 = vpop.f32.mrb[0].mxu0
    %2986 = vmatprep.mubr.bf16.mxu0 0
    %2987 = vmatmul.mubr.bf16.gmra.mrb[0].mxu0 %v2765
    %v2988 = vpop.f32.mrb[0].mxu0
    %v2989 = vadd.f32 %v2707, %v2988
    %v2990 = vpop.f32.mrb[0].mxu0
    %v2991 = vpop.f32.mrb[0].mxu0
    %v2992 = vadd.f32 %v2707, %v2991
    %v2993 = vpop.f32.mrb[0].mxu0
    %2994 = vmatprep.mubr.bf16.mxu0 0
    %2995 = vmatmul.mubr.bf16.gmra.mrb[0].mxu0 %v2768
    %v2996 = vpop.f32.mrb[0].mxu0
    %v2997 = vadd.f32 %v2707, %v2996
    %v2998 = vpop.f32.mrb[0].mxu0
    %v2999 = vpop.f32.mrb[0].mxu0
    %v3000 = vadd.f32 %v2707, %v2999
    %v3001 = vpop.f32.mrb[0].mxu0
    %3002 = vmatprep.mubr.bf16.mxu0 0
    %3003 = vmatmul.mubr.bf16.gmra.mrb[0].mxu0 %v2771
    %v3004 = vpop.f32.mrb[0].mxu0
    %v3005 = vadd.f32 %v2707, %v3004
    %v3006 = vpop.f32.mrb[0].mxu0
    %v3007 = vpop.f32.mrb[0].mxu0
    %v3008 = vadd.f32 %v2707, %v3007
    %v3009 = vpop.f32.mrb[0].mxu0
    %3010 = vmatprep.mubr.bf16.mxu0 0
    %3011 = vmatmul.mubr.bf16.gmra.mrb[0].mxu0 %v2774
    %v3012 = vpop.f32.mrb[0].mxu0
    %v3013 = vadd.f32 %v2707, %v3012
    %v3014 = vpop.f32.mrb[0].mxu0
    %v3015 = vpop.f32.mrb[0].mxu0
    %v3016 = vadd.f32 %v2707, %v3015
    %v3017 = vpop.f32.mrb[0].mxu0
    %3018 = vmatprep.mubr.bf16.mxu0 0
    %3019 = vmatmul.mubr.bf16.gmra.mrb[0].mxu0 %v2777
    %v3020 = vpop.f32.mrb[0].mxu0
    %v3021 = vadd.f32 %v2707, %v3020
    %v3022 = vpop.f32.mrb[0].mxu0
    %v3023 = vpop.f32.mrb[0].mxu0
    %v3024 = vadd.f32 %v2707, %v3023
    %v3025 = vpop.f32.mrb[0].mxu0
    %3026 = vmatprep.mubr.bf16.mxu0 0
    %3027 = vmatmul.mubr.bf16.gmra.mrb[0].mxu0 %v2780
    %v3028 = vpop.f32.mrb[0].mxu0
    %v3029 = vadd.f32 %v2707, %v3028
    %v3030 = vpop.f32.mrb[0].mxu0
    %v3031 = vpop.f32.mrb[0].mxu0
    %v3032 = vadd.f32 %v2707, %v3031
    %v3033 = vpop.f32.mrb[0].mxu0
    %3034 = vmatprep.mubr.bf16.mxu0 0
    %3035 = vmatmul.mubr.bf16.gmra.mrb[0].mxu0 %v2783
    %v3036 = vpop.f32.mrb[0].mxu0
    %v3037 = vadd.f32 %v2707, %v3036
    %v3038 = vpop.f32.mrb[0].mxu0
    %v3039 = vpop.f32.mrb[0].mxu0
    %v3040 = vadd.f32 %v2707, %v3039
    %v3041 = vpop.f32.mrb[0].mxu0
    %3042 = vmatprep.mubr.bf16.mxu0 0
    %3043 = vmatmul.mubr.bf16.gmra.mrb[0].mxu0 %v2786
    %v3044 = vpop.f32.mrb[0].mxu0
    %v3045 = vadd.f32 %v2707, %v3044
    %v3046 = vpop.f32.mrb[0].mxu0
    %v3047 = vpop.f32.mrb[0].mxu0
    %v3048 = vadd.f32 %v2707, %v3047
    %v3049 = vpop.f32.mrb[0].mxu0
    %3050 = vmatprep.mubr.bf16.mxu0 0
    %3051 = vmatmul.mubr.bf16.gmra.mrb[0].mxu0 %v2789
    %v3052 = vpop.f32.mrb[0].mxu0
    %v3053 = vadd.f32 %v2707, %v3052
    %v3054 = vpop.f32.mrb[0].mxu0
    %v3055 = vpop.f32.mrb[0].mxu0
    %v3056 = vadd.f32 %v2707, %v3055
    %v3057 = vpop.f32.mrb[0].mxu0
    %3058 = vmatprep.mubr.bf16.mxu0 0
    %3059 = vmatmul.mubr.bf16.gmra.mrb[0].mxu0 %v2792
    %v3060 = vpop.f32.mrb[0].mxu0
    %v3061 = vadd.f32 %v2707, %v3060
    %v3062 = vpop.f32.mrb[0].mxu0
    %v3063 = vpop.f32.mrb[0].mxu0
    %v3064 = vadd.f32 %v2707, %v3063
    %v3065 = vpop.f32.mrb[0].mxu0
    %3066 = vmatprep.mubr.bf16.mxu0 0
    %3067 = vmatmul.mubr.bf16.gmra.mrb[0].mxu0 %v2795
    %v3068 = vpop.f32.mrb[0].mxu0
    %v3069 = vadd.f32 %v2707, %v3068
    %v3070 = vpop.f32.mrb[0].mxu0
    %v3071 = vpop.f32.mrb[0].mxu0
    %v3072 = vadd.f32 %v2707, %v3071
    %v3073 = vpop.f32.mrb[0].mxu0
    %3074 = vmatprep.mubr.bf16.mxu0 0
    %3075 = vmatmul.mubr.bf16.gmra.mrb[0].mxu0 %v2798
    %v3076 = vpop.f32.mrb[0].mxu0
    %v3077 = vadd.f32 %v2707, %v3076
    %v3078 = vpop.f32.mrb[0].mxu0
    %v3079 = vpop.f32.mrb[0].mxu0
    %v3080 = vadd.f32 %v2707, %v3079
    %v3081 = vpop.f32.mrb[0].mxu0
    %3082 = vmatprep.mubr.bf16.mxu0 0
    %3083 = vmatmul.mubr.bf16.gmra.mrb[0].mxu0 %v2801
    %v3084 = vpop.f32.mrb[0].mxu0
    %v3085 = vadd.f32 %v2707, %v3084
    %v3086 = vpop.f32.mrb[0].mxu0
    %v3087 = vpop.f32.mrb[0].mxu0
    %v3088 = vadd.f32 %v2707, %v3087
    %v3089 = vpop.f32.mrb[0].mxu0
    %3090 = vmatprep.mubr.bf16.mxu0 0
    %3091 = vmatmul.mubr.bf16.gmra.mrb[0].mxu0 %v2804
    %v3092 = vpop.f32.mrb[0].mxu0
    %v3093 = vadd.f32 %v2707, %v3092
    %v3094 = vpop.f32.mrb[0].mxu0
    %v3095 = vpop.f32.mrb[0].mxu0
    %v3096 = vadd.f32 %v2707, %v3095
    %v3097 = vpop.f32.mrb[0].mxu0
    %3098 = vdwg.mxu0
    %v3099 = vadd.f32 %v2845, %v2848
    %v3100 = vadd.f32 %v3099, %v2853
    %v3101 = vadd.f32 %v3100, %v2856
    %v3102 = vadd.f32 %v3101, %v2861
    %v3103 = vadd.f32 %v3102, %v2864
    %v3104 = vadd.f32 %v3103, %v2869
    %v3105 = vadd.f32 %v3104, %v2872
    %v3106 = vadd.f32 %v3105, %v2877
    %v3107 = vadd.f32 %v3106, %v2880
    %v3108 = vadd.f32 %v3107, %v2885
    %v3109 = vadd.f32 %v3108, %v2888
    %v3110 = vadd.f32 %v3109, %v2893
    %v3111 = vadd.f32 %v3110, %v2896
    %v3112 = vadd.f32 %v3111, %v2901
    %v3113 = vadd.f32 %v3112, %v2904
    %v3114 = vadd.f32 %v3113, %v2909
    %v3115 = vadd.f32 %v3114, %v2912
    %v3116 = vadd.f32 %v3115, %v2917
    %v3117 = vadd.f32 %v3116, %v2920
    %v3118 = vadd.f32 %v3117, %v2925
    %v3119 = vadd.f32 %v3118, %v2928
    %v3120 = vadd.f32 %v3119, %v2933
    %v3121 = vadd.f32 %v3120, %v2936
    %v3122 = vadd.f32 %v3121, %v2941
    %v3123 = vadd.f32 %v3122, %v2944
    %v3124 = vadd.f32 %v3123, %v2949
    %v3125 = vadd.f32 %v3124, %v2952
    %v3126 = vadd.f32 %v3125, %v2957
    %v3127 = vadd.f32 %v3126, %v2960
    %v3128 = vadd.f32 %v3127, %v2965
    %v3129 = vadd.f32 %v3128, %v2968
    %v3130 = vadd.f32 %v3129, %v2973
    %v3131 = vadd.f32 %v3130, %v2976
    %v3132 = vadd.f32 %v3131, %v2981
    %v3133 = vadd.f32 %v3132, %v2984
    %v3134 = vadd.f32 %v3133, %v2989
    %v3135 = vadd.f32 %v3134, %v2992
    %v3136 = vadd.f32 %v3135, %v2997
    %v3137 = vadd.f32 %v3136, %v3000
    %v3138 = vadd.f32 %v3137, %v3005
    %v3139 = vadd.f32 %v3138, %v3008
    %v3140 = vadd.f32 %v3139, %v3013
    %v3141 = vadd.f32 %v3140, %v3016
    %v3142 = vadd.f32 %v3141, %v3021
    %v3143 = vadd.f32 %v3142, %v3024
    %v3144 = vadd.f32 %v3143, %v3029
    %v3145 = vadd.f32 %v3144, %v3032
    %v3146 = vadd.f32 %v3145, %v3037
    %v3147 = vadd.f32 %v3146, %v3040
    %v3148 = vadd.f32 %v3147, %v3045
    %v3149 = vadd.f32 %v3148, %v3048
    %v3150 = vadd.f32 %v3149, %v3053
    %v3151 = vadd.f32 %v3150, %v3056
    %v3152 = vadd.f32 %v3151, %v3061
    %v3153 = vadd.f32 %v3152, %v3064
    %v3154 = vadd.f32 %v3153, %v3069
    %v3155 = vadd.f32 %v3154, %v3072
    %v3156 = vadd.f32 %v3155, %v3077
    %v3157 = vadd.f32 %v3156, %v3080
    %v3158 = vadd.f32 %v3157, %v3085
    %v3159 = vadd.f32 %v3158, %v3088
    %v3160 = vadd.f32 %v3159, %v3093
    %v3161 = vadd.f32 %v3160, %v3096
    %v3162 = vrot.slane %v3161, 4
    %v3163 = vadd.f32 %v3161, %v3162
    %v3164 = vrot.slane %v3163, 2
    %v3165 = vadd.f32 %v3163, %v3164
    %v3166 = vrot.slane %v3165, 1
    %v3167 = vadd.f32 %v3165, %v3166
    %v3168 = vmul.f32 %v2845, %v2845
    %v3169 = vmul.f32 %v2848, %v2848
    %v3170 = vmul.f32 %v2853, %v2853
    %v3171 = vmul.f32 %v2856, %v2856
    %v3172 = vmul.f32 %v2861, %v2861
    %v3173 = vmul.f32 %v2864, %v2864
    %v3174 = vmul.f32 %v2869, %v2869
    %v3175 = vmul.f32 %v2872, %v2872
    %v3176 = vmul.f32 %v2877, %v2877
    %v3177 = vmul.f32 %v2880, %v2880
    %v3178 = vmul.f32 %v2885, %v2885
    %v3179 = vmul.f32 %v2888, %v2888
    %v3180 = vmul.f32 %v2893, %v2893
    %v3181 = vmul.f32 %v2896, %v2896
    %v3182 = vmul.f32 %v2901, %v2901
    %v3183 = vmul.f32 %v2904, %v2904
    %v3184 = vmul.f32 %v2909, %v2909
    %v3185 = vmul.f32 %v2912, %v2912
    %v3186 = vmul.f32 %v2917, %v2917
    %v3187 = vmul.f32 %v2920, %v2920
    %v3188 = vmul.f32 %v2925, %v2925
    %v3189 = vmul.f32 %v2928, %v2928
    %v3190 = vmul.f32 %v2933, %v2933
    %v3191 = vmul.f32 %v2936, %v2936
    %v3192 = vmul.f32 %v2941, %v2941
    %v3193 = vmul.f32 %v2944, %v2944
    %v3194 = vmul.f32 %v2949, %v2949
    %v3195 = vmul.f32 %v2952, %v2952
    %v3196 = vmul.f32 %v2957, %v2957
    %v3197 = vmul.f32 %v2960, %v2960
    %v3198 = vmul.f32 %v2965, %v2965
    %v3199 = vmul.f32 %v2968, %v2968
    %v3200 = vmul.f32 %v2973, %v2973
    %v3201 = vmul.f32 %v2976, %v2976
    %v3202 = vmul.f32 %v2981, %v2981
    %v3203 = vmul.f32 %v2984, %v2984
    %v3204 = vmul.f32 %v2989, %v2989
    %v3205 = vmul.f32 %v2992, %v2992
    %v3206 = vmul.f32 %v2997, %v2997
    %v3207 = vmul.f32 %v3000, %v3000
    %v3208 = vmul.f32 %v3005, %v3005
    %v3209 = vmul.f32 %v3008, %v3008
    %v3210 = vmul.f32 %v3013, %v3013
    %v3211 = vmul.f32 %v3016, %v3016
    %v3212 = vmul.f32 %v3021, %v3021
    %v3213 = vmul.f32 %v3024, %v3024
    %v3214 = vmul.f32 %v3029, %v3029
    %v3215 = vmul.f32 %v3032, %v3032
    %v3216 = vmul.f32 %v3037, %v3037
    %v3217 = vmul.f32 %v3040, %v3040
    %v3218 = vmul.f32 %v3045, %v3045
    %v3219 = vmul.f32 %v3048, %v3048
    %v3220 = vmul.f32 %v3053, %v3053
    %v3221 = vmul.f32 %v3056, %v3056
    %v3222 = vmul.f32 %v3061, %v3061
    %v3223 = vmul.f32 %v3064, %v3064
    %v3224 = vmul.f32 %v3069, %v3069
    %v3225 = vmul.f32 %v3072, %v3072
    %v3226 = vmul.f32 %v3077, %v3077
    %v3227 = vmul.f32 %v3080, %v3080
    %v3228 = vmul.f32 %v3085, %v3085
    %v3229 = vmul.f32 %v3088, %v3088
    %v3230 = vmul.f32 %v3093, %v3093
    %v3231 = vmul.f32 %v3096, %v3096
    %v3232 = vadd.f32 %v3168, %v3169
    %v3233 = vadd.f32 %v3232, %v3170
    %v3234 = vadd.f32 %v3233, %v3171
    %v3235 = vadd.f32 %v3234, %v3172
    %v3236 = vadd.f32 %v3235, %v3173
    %v3237 = vadd.f32 %v3236, %v3174
    %v3238 = vadd.f32 %v3237, %v3175
    %v3239 = vadd.f32 %v3238, %v3176
    %v3240 = vadd.f32 %v3239, %v3177
    %v3241 = vadd.f32 %v3240, %v3178
    %v3242 = vadd.f32 %v3241, %v3179
    %v3243 = vadd.f32 %v3242, %v3180
    %v3244 = vadd.f32 %v3243, %v3181
    %v3245 = vadd.f32 %v3244, %v3182
    %v3246 = vadd.f32 %v3245, %v3183
    %v3247 = vadd.f32 %v3246, %v3184
    %v3248 = vadd.f32 %v3247, %v3185
    %v3249 = vadd.f32 %v3248, %v3186
    %v3250 = vadd.f32 %v3249, %v3187
    %v3251 = vadd.f32 %v3250, %v3188
    %v3252 = vadd.f32 %v3251, %v3189
    %v3253 = vadd.f32 %v3252, %v3190
    %v3254 = vadd.f32 %v3253, %v3191
    %v3255 = vadd.f32 %v3254, %v3192
    %v3256 = vadd.f32 %v3255, %v3193
    %v3257 = vadd.f32 %v3256, %v3194
    %v3258 = vadd.f32 %v3257, %v3195
    %v3259 = vadd.f32 %v3258, %v3196
    %v3260 = vadd.f32 %v3259, %v3197
    %v3261 = vadd.f32 %v3260, %v3198
    %v3262 = vadd.f32 %v3261, %v3199
    %v3263 = vadd.f32 %v3262, %v3200
    %v3264 = vadd.f32 %v3263, %v3201
    %v3265 = vadd.f32 %v3264, %v3202
    %v3266 = vadd.f32 %v3265, %v3203
    %v3267 = vadd.f32 %v3266, %v3204
    %v3268 = vadd.f32 %v3267, %v3205
    %v3269 = vadd.f32 %v3268, %v3206
    %v3270 = vadd.f32 %v3269, %v3207
    %v3271 = vadd.f32 %v3270, %v3208
    %v3272 = vadd.f32 %v3271, %v3209
    %v3273 = vadd.f32 %v3272, %v3210
    %v3274 = vadd.f32 %v3273, %v3211
    %v3275 = vadd.f32 %v3274, %v3212
    %v3276 = vadd.f32 %v3275, %v3213
    %v3277 = vadd.f32 %v3276, %v3214
    %v3278 = vadd.f32 %v3277, %v3215
    %v3279 = vadd.f32 %v3278, %v3216
    %v3280 = vadd.f32 %v3279, %v3217
    %v3281 = vadd.f32 %v3280, %v3218
    %v3282 = vadd.f32 %v3281, %v3219
    %v3283 = vadd.f32 %v3282, %v3220
    %v3284 = vadd.f32 %v3283, %v3221
    %v3285 = vadd.f32 %v3284, %v3222
    %v3286 = vadd.f32 %v3285, %v3223
    %v3287 = vadd.f32 %v3286, %v3224
    %v3288 = vadd.f32 %v3287, %v3225
    %v3289 = vadd.f32 %v3288, %v3226
    %v3290 = vadd.f32 %v3289, %v3227
    %v3291 = vadd.f32 %v3290, %v3228
    %v3292 = vadd.f32 %v3291, %v3229
    %v3293 = vadd.f32 %v3292, %v3230
    %v3294 = vadd.f32 %v3293, %v3231
    %v3295 = vrot.slane %v3294, 4
    %v3296 = vadd.f32 %v3294, %v3295
    %v3297 = vrot.slane %v3296, 2
    %v3298 = vadd.f32 %v3296, %v3297
    %v3299 = vrot.slane %v3298, 1
    %v3300 = vadd.f32 %v3298, %v3299
    %v3301 = vmul.f32 %v3167, 0.001953125
    %v3302 = vmul.f32 %v3300, 0.001953125
    %v3303 = vmul.f32 %v3301, %v3301
    %v3304 = vsub.f32 %v3302, %v3303
    %v3305 = vmax.f32 %v3304, 0.0
    %v3306 = vsub.f32 %v2845, %v3301
    %v3307 = vsub.f32 %v2848, %v3301
    %v3308 = vsub.f32 %v2853, %v3301
    %v3309 = vsub.f32 %v2856, %v3301
    %v3310 = vsub.f32 %v2861, %v3301
    %v3311 = vsub.f32 %v2864, %v3301
    %v3312 = vsub.f32 %v2869, %v3301
    %v3313 = vsub.f32 %v2872, %v3301
    %v3314 = vsub.f32 %v2877, %v3301
    %v3315 = vsub.f32 %v2880, %v3301
    %v3316 = vsub.f32 %v2885, %v3301
    %v3317 = vsub.f32 %v2888, %v3301
    %v3318 = vsub.f32 %v2893, %v3301
    %v3319 = vsub.f32 %v2896, %v3301
    %v3320 = vsub.f32 %v2901, %v3301
    %v3321 = vsub.f32 %v2904, %v3301
    %v3322 = vsub.f32 %v2909, %v3301
    %v3323 = vsub.f32 %v2912, %v3301
    %v3324 = vsub.f32 %v2917, %v3301
    %v3325 = vsub.f32 %v2920, %v3301
    %v3326 = vsub.f32 %v2925, %v3301
    %v3327 = vsub.f32 %v2928, %v3301
    %v3328 = vsub.f32 %v2933, %v3301
    %v3329 = vsub.f32 %v2936, %v3301
    %v3330 = vsub.f32 %v2941, %v3301
    %v3331 = vsub.f32 %v2944, %v3301
    %v3332 = vsub.f32 %v2949, %v3301
    %v3333 = vsub.f32 %v2952, %v3301
    %v3334 = vsub.f32 %v2957, %v3301
    %v3335 = vsub.f32 %v2960, %v3301
    %v3336 = vsub.f32 %v2965, %v3301
    %v3337 = vsub.f32 %v2968, %v3301
    %v3338 = vsub.f32 %v2973, %v3301
    %v3339 = vsub.f32 %v2976, %v3301
    %v3340 = vsub.f32 %v2981, %v3301
    %v3341 = vsub.f32 %v2984, %v3301
    %v3342 = vsub.f32 %v2989, %v3301
    %v3343 = vsub.f32 %v2992, %v3301
    %v3344 = vsub.f32 %v2997, %v3301
    %v3345 = vsub.f32 %v3000, %v3301
    %v3346 = vsub.f32 %v3005, %v3301
    %v3347 = vsub.f32 %v3008, %v3301
    %v3348 = vsub.f32 %v3013, %v3301
    %v3349 = vsub.f32 %v3016, %v3301
    %v3350 = vsub.f32 %v3021, %v3301
    %v3351 = vsub.f32 %v3024, %v3301
    %v3352 = vsub.f32 %v3029, %v3301
    %v3353 = vsub.f32 %v3032, %v3301
    %v3354 = vsub.f32 %v3037, %v3301
    %v3355 = vsub.f32 %v3040, %v3301
    %v3356 = vsub.f32 %v3045, %v3301
    %v3357 = vsub.f32 %v3048, %v3301
    %v3358 = vsub.f32 %v3053, %v3301
    %v3359 = vsub.f32 %v3056, %v3301
    %v3360 = vsub.f32 %v3061, %v3301
    %v3361 = vsub.f32 %v3064, %v3301
    %v3362 = vsub.f32 %v3069, %v3301
    %v3363 = vsub.f32 %v3072, %v3301
    %v3364 = vsub.f32 %v3077, %v3301
    %v3365 = vsub.f32 %v3080, %v3301
    %v3366 = vsub.f32 %v3085, %v3301
    %v3367 = vsub.f32 %v3088, %v3301
    %v3368 = vsub.f32 %v3093, %v3301
    %v3369 = vsub.f32 %v3096, %v3301
    %v3370 = vadd.f32 %v3305, 1e-05
    %v3371 = vrsqrt.pop %v3370
    %v3372 = vmul.f32 %v3306, %v3371
    %v3373 = vmul.f32 %v3307, %v3371
    %v3374 = vmul.f32 %v3308, %v3371
    %v3375 = vmul.f32 %v3309, %v3371
    %v3376 = vmul.f32 %v3310, %v3371
    %v3377 = vmul.f32 %v3311, %v3371
    %v3378 = vmul.f32 %v3312, %v3371
    %v3379 = vmul.f32 %v3313, %v3371
    %v3380 = vmul.f32 %v3314, %v3371
    %v3381 = vmul.f32 %v3315, %v3371
    %v3382 = vmul.f32 %v3316, %v3371
    %v3383 = vmul.f32 %v3317, %v3371
    %v3384 = vmul.f32 %v3318, %v3371
    %v3385 = vmul.f32 %v3319, %v3371
    %v3386 = vmul.f32 %v3320, %v3371
    %v3387 = vmul.f32 %v3321, %v3371
    %v3388 = vmul.f32 %v3322, %v3371
    %v3389 = vmul.f32 %v3323, %v3371
    %v3390 = vmul.f32 %v3324, %v3371
    %v3391 = vmul.f32 %v3325, %v3371
    %v3392 = vmul.f32 %v3326, %v3371
    %v3393 = vmul.f32 %v3327, %v3371
    %v3394 = vmul.f32 %v3328, %v3371
    %v3395 = vmul.f32 %v3329, %v3371
    %v3396 = vmul.f32 %v3330, %v3371
    %v3397 = vmul.f32 %v3331, %v3371
    %v3398 = vmul.f32 %v3332, %v3371
    %v3399 = vmul.f32 %v3333, %v3371
    %v3400 = vmul.f32 %v3334, %v3371
    %v3401 = vmul.f32 %v3335, %v3371
    %v3402 = vmul.f32 %v3336, %v3371
    %v3403 = vmul.f32 %v3337, %v3371
    %v3404 = vmul.f32 %v3338, %v3371
    %v3405 = vmul.f32 %v3339, %v3371
    %v3406 = vmul.f32 %v3340, %v3371
    %v3407 = vmul.f32 %v3341, %v3371
    %v3408 = vmul.f32 %v3342, %v3371
    %v3409 = vmul.f32 %v3343, %v3371
    %v3410 = vmul.f32 %v3344, %v3371
    %v3411 = vmul.f32 %v3345, %v3371
    %v3412 = vmul.f32 %v3346, %v3371
    %v3413 = vmul.f32 %v3347, %v3371
    %v3414 = vmul.f32 %v3348, %v3371
    %v3415 = vmul.f32 %v3349, %v3371
    %v3416 = vmul.f32 %v3350, %v3371
    %v3417 = vmul.f32 %v3351, %v3371
    %v3418 = vmul.f32 %v3352, %v3371
    %v3419 = vmul.f32 %v3353, %v3371
    %v3420 = vmul.f32 %v3354, %v3371
    %v3421 = vmul.f32 %v3355, %v3371
    %v3422 = vmul.f32 %v3356, %v3371
    %v3423 = vmul.f32 %v3357, %v3371
    %v3424 = vmul.f32 %v3358, %v3371
    %v3425 = vmul.f32 %v3359, %v3371
    %v3426 = vmul.f32 %v3360, %v3371
    %v3427 = vmul.f32 %v3361, %v3371
    %v3428 = vmul.f32 %v3362, %v3371
    %v3429 = vmul.f32 %v3363, %v3371
    %v3430 = vmul.f32 %v3364, %v3371
    %v3431 = vmul.f32 %v3365, %v3371
    %v3432 = vmul.f32 %v3366, %v3371
    %v3433 = vmul.f32 %v3367, %v3371
    %v3434 = vmul.f32 %v3368, %v3371
    %v3435 = vmul.f32 %v3369, %v3371
    %v3436 = vld [vmem:[%s3] sm:$0x1]
    %v3438 = vlaneseq
    %v3439 = vshrl.u32 %v3438, 7
    %v3440 = vsub.s32 0, %v3439
    %v3441 = vrot.slane %v3436, %v3440
    %v3443 = vmul.f32 %v3372, %v3441
    %v3444 = vmul.f32 %v3373, %v3441
    %v3445 = vmul.f32 %v3374, %v3441
    %v3446 = vmul.f32 %v3375, %v3441
    %v3447 = vmul.f32 %v3376, %v3441
    %v3448 = vmul.f32 %v3377, %v3441
    %v3449 = vmul.f32 %v3378, %v3441
    %v3450 = vmul.f32 %v3379, %v3441
    %v3451 = vmul.f32 %v3380, %v3441
    %v3452 = vmul.f32 %v3381, %v3441
    %v3453 = vmul.f32 %v3382, %v3441
    %v3454 = vmul.f32 %v3383, %v3441
    %v3455 = vmul.f32 %v3384, %v3441
    %v3456 = vmul.f32 %v3385, %v3441
    %v3457 = vmul.f32 %v3386, %v3441
    %v3458 = vmul.f32 %v3387, %v3441
    %v3459 = vmul.f32 %v3388, %v3441
    %v3460 = vmul.f32 %v3389, %v3441
    %v3461 = vmul.f32 %v3390, %v3441
    %v3462 = vmul.f32 %v3391, %v3441
    %v3463 = vmul.f32 %v3392, %v3441
    %v3464 = vmul.f32 %v3393, %v3441
    %v3465 = vmul.f32 %v3394, %v3441
    %v3466 = vmul.f32 %v3395, %v3441
    %v3467 = vmul.f32 %v3396, %v3441
    %v3468 = vmul.f32 %v3397, %v3441
    %v3469 = vmul.f32 %v3398, %v3441
    %v3470 = vmul.f32 %v3399, %v3441
    %v3471 = vmul.f32 %v3400, %v3441
    %v3472 = vmul.f32 %v3401, %v3441
    %v3473 = vmul.f32 %v3402, %v3441
    %v3474 = vmul.f32 %v3403, %v3441
    %v3475 = vmul.f32 %v3404, %v3441
    %v3476 = vmul.f32 %v3405, %v3441
    %v3477 = vmul.f32 %v3406, %v3441
    %v3478 = vmul.f32 %v3407, %v3441
    %v3479 = vmul.f32 %v3408, %v3441
    %v3480 = vmul.f32 %v3409, %v3441
    %v3481 = vmul.f32 %v3410, %v3441
    %v3482 = vmul.f32 %v3411, %v3441
    %v3483 = vmul.f32 %v3412, %v3441
    %v3484 = vmul.f32 %v3413, %v3441
    %v3485 = vmul.f32 %v3414, %v3441
    %v3486 = vmul.f32 %v3415, %v3441
    %v3487 = vmul.f32 %v3416, %v3441
    %v3488 = vmul.f32 %v3417, %v3441
    %v3489 = vmul.f32 %v3418, %v3441
    %v3490 = vmul.f32 %v3419, %v3441
    %v3491 = vmul.f32 %v3420, %v3441
    %v3492 = vmul.f32 %v3421, %v3441
    %v3493 = vmul.f32 %v3422, %v3441
    %v3494 = vmul.f32 %v3423, %v3441
    %v3495 = vmul.f32 %v3424, %v3441
    %v3496 = vmul.f32 %v3425, %v3441
    %v3497 = vmul.f32 %v3426, %v3441
    %v3498 = vmul.f32 %v3427, %v3441
    %v3499 = vmul.f32 %v3428, %v3441
    %v3500 = vmul.f32 %v3429, %v3441
    %v3501 = vmul.f32 %v3430, %v3441
    %v3502 = vmul.f32 %v3431, %v3441
    %v3503 = vmul.f32 %v3432, %v3441
    %v3504 = vmul.f32 %v3433, %v3441
    %v3505 = vmul.f32 %v3434, %v3441
    %v3506 = vmul.f32 %v3435, %v3441
    %v3507 = vld [vmem:[%s4] sm:$0x1]
    %v3509 = vlaneseq
    %v3510 = vshrl.u32 %v3509, 7
    %v3511 = vsub.s32 0, %v3510
    %v3512 = vrot.slane %v3507, %v3511
    %v3514 = vadd.f32 %v3443, %v3512
    %v3515 = vadd.f32 %v3444, %v3512
    %v3516 = vadd.f32 %v3445, %v3512
    %v3517 = vadd.f32 %v3446, %v3512
    %v3518 = vadd.f32 %v3447, %v3512
    %v3519 = vadd.f32 %v3448, %v3512
    %v3520 = vadd.f32 %v3449, %v3512
    %v3521 = vadd.f32 %v3450, %v3512
    %v3522 = vadd.f32 %v3451, %v3512
    %v3523 = vadd.f32 %v3452, %v3512
    %v3524 = vadd.f32 %v3453, %v3512
    %v3525 = vadd.f32 %v3454, %v3512
    %v3526 = vadd.f32 %v3455, %v3512
    %v3527 = vadd.f32 %v3456, %v3512
    %v3528 = vadd.f32 %v3457, %v3512
    %v3529 = vadd.f32 %v3458, %v3512
    %v3530 = vadd.f32 %v3459, %v3512
    %v3531 = vadd.f32 %v3460, %v3512
    %v3532 = vadd.f32 %v3461, %v3512
    %v3533 = vadd.f32 %v3462, %v3512
    %v3534 = vadd.f32 %v3463, %v3512
    %v3535 = vadd.f32 %v3464, %v3512
    %v3536 = vadd.f32 %v3465, %v3512
    %v3537 = vadd.f32 %v3466, %v3512
    %v3538 = vadd.f32 %v3467, %v3512
    %v3539 = vadd.f32 %v3468, %v3512
    %v3540 = vadd.f32 %v3469, %v3512
    %v3541 = vadd.f32 %v3470, %v3512
    %v3542 = vadd.f32 %v3471, %v3512
    %v3543 = vadd.f32 %v3472, %v3512
    %v3544 = vadd.f32 %v3473, %v3512
    %v3545 = vadd.f32 %v3474, %v3512
    %v3546 = vadd.f32 %v3475, %v3512
    %v3547 = vadd.f32 %v3476, %v3512
    %v3548 = vadd.f32 %v3477, %v3512
    %v3549 = vadd.f32 %v3478, %v3512
    %v3550 = vadd.f32 %v3479, %v3512
    %v3551 = vadd.f32 %v3480, %v3512
    %v3552 = vadd.f32 %v3481, %v3512
    %v3553 = vadd.f32 %v3482, %v3512
    %v3554 = vadd.f32 %v3483, %v3512
    %v3555 = vadd.f32 %v3484, %v3512
    %v3556 = vadd.f32 %v3485, %v3512
    %v3557 = vadd.f32 %v3486, %v3512
    %v3558 = vadd.f32 %v3487, %v3512
    %v3559 = vadd.f32 %v3488, %v3512
    %v3560 = vadd.f32 %v3489, %v3512
    %v3561 = vadd.f32 %v3490, %v3512
    %v3562 = vadd.f32 %v3491, %v3512
    %v3563 = vadd.f32 %v3492, %v3512
    %v3564 = vadd.f32 %v3493, %v3512
    %v3565 = vadd.f32 %v3494, %v3512
    %v3566 = vadd.f32 %v3495, %v3512
    %v3567 = vadd.f32 %v3496, %v3512
    %v3568 = vadd.f32 %v3497, %v3512
    %v3569 = vadd.f32 %v3498, %v3512
    %v3570 = vadd.f32 %v3499, %v3512
    %v3571 = vadd.f32 %v3500, %v3512
    %v3572 = vadd.f32 %v3501, %v3512
    %v3573 = vadd.f32 %v3502, %v3512
    %v3574 = vadd.f32 %v3503, %v3512
    %v3575 = vadd.f32 %v3504, %v3512
    %v3576 = vadd.f32 %v3505, %v3512
    %v3577 = vadd.f32 %v3506, %v3512
    %v3578 = vxor.u32 %v3514, 2147483648
    %v3579 = vxor.u32 %v3515, 2147483648
    %v3580 = vxor.u32 %v3516, 2147483648
    %v3581 = vxor.u32 %v3517, 2147483648
    %v3582 = vxor.u32 %v3518, 2147483648
    %v3583 = vxor.u32 %v3519, 2147483648
    %v3584 = vxor.u32 %v3520, 2147483648
    %v3585 = vxor.u32 %v3521, 2147483648
    %v3586 = vxor.u32 %v3522, 2147483648
    %v3587 = vxor.u32 %v3523, 2147483648
    %v3588 = vxor.u32 %v3524, 2147483648
    %v3589 = vxor.u32 %v3525, 2147483648
    %v3590 = vxor.u32 %v3526, 2147483648
    %v3591 = vxor.u32 %v3527, 2147483648
    %v3592 = vxor.u32 %v3528, 2147483648
    %v3593 = vxor.u32 %v3529, 2147483648
    %v3594 = vxor.u32 %v3530, 2147483648
    %v3595 = vxor.u32 %v3531, 2147483648
    %v3596 = vxor.u32 %v3532, 2147483648
    %v3597 = vxor.u32 %v3533, 2147483648
    %v3598 = vxor.u32 %v3534, 2147483648
    %v3599 = vxor.u32 %v3535, 2147483648
    %v3600 = vxor.u32 %v3536, 2147483648
    %v3601 = vxor.u32 %v3537, 2147483648
    %v3602 = vxor.u32 %v3538, 2147483648
    %v3603 = vxor.u32 %v3539, 2147483648
    %v3604 = vxor.u32 %v3540, 2147483648
    %v3605 = vxor.u32 %v3541, 2147483648
    %v3606 = vxor.u32 %v3542, 2147483648
    %v3607 = vxor.u32 %v3543, 2147483648
    %v3608 = vxor.u32 %v3544, 2147483648
    %v3609 = vxor.u32 %v3545, 2147483648
    %v3610 = vxor.u32 %v3546, 2147483648
    %v3611 = vxor.u32 %v3547, 2147483648
    %v3612 = vxor.u32 %v3548, 2147483648
    %v3613 = vxor.u32 %v3549, 2147483648
    %v3614 = vxor.u32 %v3550, 2147483648
    %v3615 = vxor.u32 %v3551, 2147483648
    %v3616 = vxor.u32 %v3552, 2147483648
    %v3617 = vxor.u32 %v3553, 2147483648
    %v3618 = vxor.u32 %v3554, 2147483648
    %v3619 = vxor.u32 %v3555, 2147483648
    %v3620 = vxor.u32 %v3556, 2147483648
    %v3621 = vxor.u32 %v3557, 2147483648
    %v3622 = vxor.u32 %v3558, 2147483648
    %v3623 = vxor.u32 %v3559, 2147483648
    %v3624 = vxor.u32 %v3560, 2147483648
    %v3625 = vxor.u32 %v3561, 2147483648
    %v3626 = vxor.u32 %v3562, 2147483648
    %v3627 = vxor.u32 %v3563, 2147483648
    %v3628 = vxor.u32 %v3564, 2147483648
    %v3629 = vxor.u32 %v3565, 2147483648
    %v3630 = vxor.u32 %v3566, 2147483648
    %v3631 = vxor.u32 %v3567, 2147483648
    %v3632 = vxor.u32 %v3568, 2147483648
    %v3633 = vxor.u32 %v3569, 2147483648
    %v3634 = vxor.u32 %v3570, 2147483648
    %v3635 = vxor.u32 %v3571, 2147483648
    %v3636 = vxor.u32 %v3572, 2147483648
    %v3637 = vxor.u32 %v3573, 2147483648
    %v3638 = vxor.u32 %v3574, 2147483648
    %v3639 = vxor.u32 %v3575, 2147483648
    %v3640 = vxor.u32 %v3576, 2147483648
    %v3641 = vxor.u32 %v3577, 2147483648
    %v3642 = vmul.f32 %v3578, 1.442695
    %v3643 = vpow.pop %v3642
    %v3644 = vmul.f32 %v3579, 1.442695
    %v3645 = vpow.pop %v3644
    %v3646 = vmul.f32 %v3580, 1.442695
    %v3647 = vpow.pop %v3646
    %v3648 = vmul.f32 %v3581, 1.442695
    %v3649 = vpow.pop %v3648
    %v3650 = vmul.f32 %v3582, 1.442695
    %v3651 = vpow.pop %v3650
    %v3652 = vmul.f32 %v3583, 1.442695
    %v3653 = vpow.pop %v3652
    %v3654 = vmul.f32 %v3584, 1.442695
    %v3655 = vpow.pop %v3654
    %v3656 = vmul.f32 %v3585, 1.442695
    %v3657 = vpow.pop %v3656
    %v3658 = vmul.f32 %v3586, 1.442695
    %v3659 = vpow.pop %v3658
    %v3660 = vmul.f32 %v3587, 1.442695
    %v3661 = vpow.pop %v3660
    %v3662 = vmul.f32 %v3588, 1.442695
    %v3663 = vpow.pop %v3662
    %v3664 = vmul.f32 %v3589, 1.442695
    %v3665 = vpow.pop %v3664
    %v3666 = vmul.f32 %v3590, 1.442695
    %v3667 = vpow.pop %v3666
    %v3668 = vmul.f32 %v3591, 1.442695
    %v3669 = vpow.pop %v3668
    %v3670 = vmul.f32 %v3592, 1.442695
    %v3671 = vpow.pop %v3670
    %v3672 = vmul.f32 %v3593, 1.442695
    %v3673 = vpow.pop %v3672
    %v3674 = vmul.f32 %v3594, 1.442695
    %v3675 = vpow.pop %v3674
    %v3676 = vmul.f32 %v3595, 1.442695
    %v3677 = vpow.pop %v3676
    %v3678 = vmul.f32 %v3596, 1.442695
    %v3679 = vpow.pop %v3678
    %v3680 = vmul.f32 %v3597, 1.442695
    %v3681 = vpow.pop %v3680
    %v3682 = vmul.f32 %v3598, 1.442695
    %v3683 = vpow.pop %v3682
    %v3684 = vmul.f32 %v3599, 1.442695
    %v3685 = vpow.pop %v3684
    %v3686 = vmul.f32 %v3600, 1.442695
    %v3687 = vpow.pop %v3686
    %v3688 = vmul.f32 %v3601, 1.442695
    %v3689 = vpow.pop %v3688
    %v3690 = vmul.f32 %v3602, 1.442695
    %v3691 = vpow.pop %v3690
    %v3692 = vmul.f32 %v3603, 1.442695
    %v3693 = vpow.pop %v3692
    %v3694 = vmul.f32 %v3604, 1.442695
    %v3695 = vpow.pop %v3694
    %v3696 = vmul.f32 %v3605, 1.442695
    %v3697 = vpow.pop %v3696
    %v3698 = vmul.f32 %v3606, 1.442695
    %v3699 = vpow.pop %v3698
    %v3700 = vmul.f32 %v3607, 1.442695
    %v3701 = vpow.pop %v3700
    %v3702 = vmul.f32 %v3608, 1.442695
    %v3703 = vpow.pop %v3702
    %v3704 = vmul.f32 %v3609, 1.442695
    %v3705 = vpow.pop %v3704
    %v3706 = vmul.f32 %v3610, 1.442695
    %v3707 = vpow.pop %v3706
    %v3708 = vmul.f32 %v3611, 1.442695
    %v3709 = vpow.pop %v3708
    %v3710 = vmul.f32 %v3612, 1.442695
    %v3711 = vpow.pop %v3710
    %v3712 = vmul.f32 %v3613, 1.442695
    %v3713 = vpow.pop %v3712
    %v3714 = vmul.f32 %v3614, 1.442695
    %v3715 = vpow.pop %v3714
    %v3716 = vmul.f32 %v3615, 1.442695
    %v3717 = vpow.pop %v3716
    %v3718 = vmul.f32 %v3616, 1.442695
    %v3719 = vpow.pop %v3718
    %v3720 = vmul.f32 %v3617, 1.442695
    %v3721 = vpow.pop %v3720
    %v3722 = vmul.f32 %v3618, 1.442695
    %v3723 = vpow.pop %v3722
    %v3724 = vmul.f32 %v3619, 1.442695
    %v3725 = vpow.pop %v3724
    %v3726 = vmul.f32 %v3620, 1.442695
    %v3727 = vpow.pop %v3726
    %v3728 = vmul.f32 %v3621, 1.442695
    %v3729 = vpow.pop %v3728
    %v3730 = vmul.f32 %v3622, 1.442695
    %v3731 = vpow.pop %v3730
    %v3732 = vmul.f32 %v3623, 1.442695
    %v3733 = vpow.pop %v3732
    %v3734 = vmul.f32 %v3624, 1.442695
    %v3735 = vpow.pop %v3734
    %v3736 = vmul.f32 %v3625, 1.442695
    %v3737 = vpow.pop %v3736
    %v3738 = vmul.f32 %v3626, 1.442695
    %v3739 = vpow.pop %v3738
    %v3740 = vmul.f32 %v3627, 1.442695
    %v3741 = vpow.pop %v3740
    %v3742 = vmul.f32 %v3628, 1.442695
    %v3743 = vpow.pop %v3742
    %v3744 = vmul.f32 %v3629, 1.442695
    %v3745 = vpow.pop %v3744
    %v3746 = vmul.f32 %v3630, 1.442695
    %v3747 = vpow.pop %v3746
    %v3748 = vmul.f32 %v3631, 1.442695
    %v3749 = vpow.pop %v3748
    %v3750 = vmul.f32 %v3632, 1.442695
    %v3751 = vpow.pop %v3750
    %v3752 = vmul.f32 %v3633, 1.442695
    %v3753 = vpow.pop %v3752
    %v3754 = vmul.f32 %v3634, 1.442695
    %v3755 = vpow.pop %v3754
    %v3756 = vmul.f32 %v3635, 1.442695
    %v3757 = vpow.pop %v3756
    %v3758 = vmul.f32 %v3636, 1.442695
    %v3759 = vpow.pop %v3758
    %v3760 = vmul.f32 %v3637, 1.442695
    %v3761 = vpow.pop %v3760
    %v3762 = vmul.f32 %v3638, 1.442695
    %v3763 = vpow.pop %v3762
    %v3764 = vmul.f32 %v3639, 1.442695
    %v3765 = vpow.pop %v3764
    %v3766 = vmul.f32 %v3640, 1.442695
    %v3767 = vpow.pop %v3766
    %v3768 = vmul.f32 %v3641, 1.442695
    %v3769 = vpow.pop %v3768
    %v3770 = vadd.f32 %v3643, 1.0
    %v3771 = vadd.f32 %v3645, 1.0
    %v3772 = vadd.f32 %v3647, 1.0
    %v3773 = vadd.f32 %v3649, 1.0
    %v3774 = vadd.f32 %v3651, 1.0
    %v3775 = vadd.f32 %v3653, 1.0
    %v3776 = vadd.f32 %v3655, 1.0
    %v3777 = vadd.f32 %v3657, 1.0
    %v3778 = vadd.f32 %v3659, 1.0
    %v3779 = vadd.f32 %v3661, 1.0
    %v3780 = vadd.f32 %v3663, 1.0
    %v3781 = vadd.f32 %v3665, 1.0
    %v3782 = vadd.f32 %v3667, 1.0
    %v3783 = vadd.f32 %v3669, 1.0
    %v3784 = vadd.f32 %v3671, 1.0
    %v3785 = vadd.f32 %v3673, 1.0
    %v3786 = vadd.f32 %v3675, 1.0
    %v3787 = vadd.f32 %v3677, 1.0
    %v3788 = vadd.f32 %v3679, 1.0
    %v3789 = vadd.f32 %v3681, 1.0
    %v3790 = vadd.f32 %v3683, 1.0
    %v3791 = vadd.f32 %v3685, 1.0
    %v3792 = vadd.f32 %v3687, 1.0
    %v3793 = vadd.f32 %v3689, 1.0
    %v3794 = vadd.f32 %v3691, 1.0
    %v3795 = vadd.f32 %v3693, 1.0
    %v3796 = vadd.f32 %v3695, 1.0
    %v3797 = vadd.f32 %v3697, 1.0
    %v3798 = vadd.f32 %v3699, 1.0
    %v3799 = vadd.f32 %v3701, 1.0
    %v3800 = vadd.f32 %v3703, 1.0
    %v3801 = vadd.f32 %v3705, 1.0
    %v3802 = vadd.f32 %v3707, 1.0
    %v3803 = vadd.f32 %v3709, 1.0
    %v3804 = vadd.f32 %v3711, 1.0
    %v3805 = vadd.f32 %v3713, 1.0
    %v3806 = vadd.f32 %v3715, 1.0
    %v3807 = vadd.f32 %v3717, 1.0
    %v3808 = vadd.f32 %v3719, 1.0
    %v3809 = vadd.f32 %v3721, 1.0
    %v3810 = vadd.f32 %v3723, 1.0
    %v3811 = vadd.f32 %v3725, 1.0
    %v3812 = vadd.f32 %v3727, 1.0
    %v3813 = vadd.f32 %v3729, 1.0
    %v3814 = vadd.f32 %v3731, 1.0
    %v3815 = vadd.f32 %v3733, 1.0
    %v3816 = vadd.f32 %v3735, 1.0
    %v3817 = vadd.f32 %v3737, 1.0
    %v3818 = vadd.f32 %v3739, 1.0
    %v3819 = vadd.f32 %v3741, 1.0
    %v3820 = vadd.f32 %v3743, 1.0
    %v3821 = vadd.f32 %v3745, 1.0
    %v3822 = vadd.f32 %v3747, 1.0
    %v3823 = vadd.f32 %v3749, 1.0
    %v3824 = vadd.f32 %v3751, 1.0
    %v3825 = vadd.f32 %v3753, 1.0
    %v3826 = vadd.f32 %v3755, 1.0
    %v3827 = vadd.f32 %v3757, 1.0
    %v3828 = vadd.f32 %v3759, 1.0
    %v3829 = vadd.f32 %v3761, 1.0
    %v3830 = vadd.f32 %v3763, 1.0
    %v3831 = vadd.f32 %v3765, 1.0
    %v3832 = vadd.f32 %v3767, 1.0
    %v3833 = vadd.f32 %v3769, 1.0
    %v3834 = vrcp.pop %v3770
    %v3835 = vmul.f32 1.0, %v3834
    %v3836 = vrcp.pop %v3771
    %v3837 = vmul.f32 1.0, %v3836
    %v3838 = vrcp.pop %v3772
    %v3839 = vmul.f32 1.0, %v3838
    %v3840 = vrcp.pop %v3773
    %v3841 = vmul.f32 1.0, %v3840
    %v3842 = vrcp.pop %v3774
    %v3843 = vmul.f32 1.0, %v3842
    %v3844 = vrcp.pop %v3775
    %v3845 = vmul.f32 1.0, %v3844
    %v3846 = vrcp.pop %v3776
    %v3847 = vmul.f32 1.0, %v3846
    %v3848 = vrcp.pop %v3777
    %v3849 = vmul.f32 1.0, %v3848
    %v3850 = vrcp.pop %v3778
    %v3851 = vmul.f32 1.0, %v3850
    %v3852 = vrcp.pop %v3779
    %v3853 = vmul.f32 1.0, %v3852
    %v3854 = vrcp.pop %v3780
    %v3855 = vmul.f32 1.0, %v3854
    %v3856 = vrcp.pop %v3781
    %v3857 = vmul.f32 1.0, %v3856
    %v3858 = vrcp.pop %v3782
    %v3859 = vmul.f32 1.0, %v3858
    %v3860 = vrcp.pop %v3783
    %v3861 = vmul.f32 1.0, %v3860
    %v3862 = vrcp.pop %v3784
    %v3863 = vmul.f32 1.0, %v3862
    %v3864 = vrcp.pop %v3785
    %v3865 = vmul.f32 1.0, %v3864
    %v3866 = vrcp.pop %v3786
    %v3867 = vmul.f32 1.0, %v3866
    %v3868 = vrcp.pop %v3787
    %v3869 = vmul.f32 1.0, %v3868
    %v3870 = vrcp.pop %v3788
    %v3871 = vmul.f32 1.0, %v3870
    %v3872 = vrcp.pop %v3789
    %v3873 = vmul.f32 1.0, %v3872
    %v3874 = vrcp.pop %v3790
    %v3875 = vmul.f32 1.0, %v3874
    %v3876 = vrcp.pop %v3791
    %v3877 = vmul.f32 1.0, %v3876
    %v3878 = vrcp.pop %v3792
    %v3879 = vmul.f32 1.0, %v3878
    %v3880 = vrcp.pop %v3793
    %v3881 = vmul.f32 1.0, %v3880
    %v3882 = vrcp.pop %v3794
    %v3883 = vmul.f32 1.0, %v3882
    %v3884 = vrcp.pop %v3795
    %v3885 = vmul.f32 1.0, %v3884
    %v3886 = vrcp.pop %v3796
    %v3887 = vmul.f32 1.0, %v3886
    %v3888 = vrcp.pop %v3797
    %v3889 = vmul.f32 1.0, %v3888
    %v3890 = vrcp.pop %v3798
    %v3891 = vmul.f32 1.0, %v3890
    %v3892 = vrcp.pop %v3799
    %v3893 = vmul.f32 1.0, %v3892
    %v3894 = vrcp.pop %v3800
    %v3895 = vmul.f32 1.0, %v3894
    %v3896 = vrcp.pop %v3801
    %v3897 = vmul.f32 1.0, %v3896
    %v3898 = vrcp.pop %v3802
    %v3899 = vmul.f32 1.0, %v3898
    %v3900 = vrcp.pop %v3803
    %v3901 = vmul.f32 1.0, %v3900
    %v3902 = vrcp.pop %v3804
    %v3903 = vmul.f32 1.0, %v3902
    %v3904 = vrcp.pop %v3805
    %v3905 = vmul.f32 1.0, %v3904
    %v3906 = vrcp.pop %v3806
    %v3907 = vmul.f32 1.0, %v3906
    %v3908 = vrcp.pop %v3807
    %v3909 = vmul.f32 1.0, %v3908
    %v3910 = vrcp.pop %v3808
    %v3911 = vmul.f32 1.0, %v3910
    %v3912 = vrcp.pop %v3809
    %v3913 = vmul.f32 1.0, %v3912
    %v3914 = vrcp.pop %v3810
    %v3915 = vmul.f32 1.0, %v3914
    %v3916 = vrcp.pop %v3811
    %v3917 = vmul.f32 1.0, %v3916
    %v3918 = vrcp.pop %v3812
    %v3919 = vmul.f32 1.0, %v3918
    %v3920 = vrcp.pop %v3813
    %v3921 = vmul.f32 1.0, %v3920
    %v3922 = vrcp.pop %v3814
    %v3923 = vmul.f32 1.0, %v3922
    %v3924 = vrcp.pop %v3815
    %v3925 = vmul.f32 1.0, %v3924
    %v3926 = vrcp.pop %v3816
    %v3927 = vmul.f32 1.0, %v3926
    %v3928 = vrcp.pop %v3817
    %v3929 = vmul.f32 1.0, %v3928
    %v3930 = vrcp.pop %v3818
    %v3931 = vmul.f32 1.0, %v3930
    %v3932 = vrcp.pop %v3819
    %v3933 = vmul.f32 1.0, %v3932
    %v3934 = vrcp.pop %v3820
    %v3935 = vmul.f32 1.0, %v3934
    %v3936 = vrcp.pop %v3821
    %v3937 = vmul.f32 1.0, %v3936
    %v3938 = vrcp.pop %v3822
    %v3939 = vmul.f32 1.0, %v3938
    %v3940 = vrcp.pop %v3823
    %v3941 = vmul.f32 1.0, %v3940
    %v3942 = vrcp.pop %v3824
    %v3943 = vmul.f32 1.0, %v3942
    %v3944 = vrcp.pop %v3825
    %v3945 = vmul.f32 1.0, %v3944
    %v3946 = vrcp.pop %v3826
    %v3947 = vmul.f32 1.0, %v3946
    %v3948 = vrcp.pop %v3827
    %v3949 = vmul.f32 1.0, %v3948
    %v3950 = vrcp.pop %v3828
    %v3951 = vmul.f32 1.0, %v3950
    %v3952 = vrcp.pop %v3829
    %v3953 = vmul.f32 1.0, %v3952
    %v3954 = vrcp.pop %v3830
    %v3955 = vmul.f32 1.0, %v3954
    %v3956 = vrcp.pop %v3831
    %v3957 = vmul.f32 1.0, %v3956
    %v3958 = vrcp.pop %v3832
    %v3959 = vmul.f32 1.0, %v3958
    %v3960 = vrcp.pop %v3833
    %v3961 = vmul.f32 1.0, %v3960
    %v3962 = vmul.f32 %v3514, %v3835
    %v3963 = vmul.f32 %v3515, %v3837
    %v3964 = vmul.f32 %v3516, %v3839
    %v3965 = vmul.f32 %v3517, %v3841
    %v3966 = vmul.f32 %v3518, %v3843
    %v3967 = vmul.f32 %v3519, %v3845
    %v3968 = vmul.f32 %v3520, %v3847
    %v3969 = vmul.f32 %v3521, %v3849
    %v3970 = vmul.f32 %v3522, %v3851
    %v3971 = vmul.f32 %v3523, %v3853
    %v3972 = vmul.f32 %v3524, %v3855
    %v3973 = vmul.f32 %v3525, %v3857
    %v3974 = vmul.f32 %v3526, %v3859
    %v3975 = vmul.f32 %v3527, %v3861
    %v3976 = vmul.f32 %v3528, %v3863
    %v3977 = vmul.f32 %v3529, %v3865
    %v3978 = vmul.f32 %v3530, %v3867
    %v3979 = vmul.f32 %v3531, %v3869
    %v3980 = vmul.f32 %v3532, %v3871
    %v3981 = vmul.f32 %v3533, %v3873
    %v3982 = vmul.f32 %v3534, %v3875
    %v3983 = vmul.f32 %v3535, %v3877
    %v3984 = vmul.f32 %v3536, %v3879
    %v3985 = vmul.f32 %v3537, %v3881
    %v3986 = vmul.f32 %v3538, %v3883
    %v3987 = vmul.f32 %v3539, %v3885
    %v3988 = vmul.f32 %v3540, %v3887
    %v3989 = vmul.f32 %v3541, %v3889
    %v3990 = vmul.f32 %v3542, %v3891
    %v3991 = vmul.f32 %v3543, %v3893
    %v3992 = vmul.f32 %v3544, %v3895
    %v3993 = vmul.f32 %v3545, %v3897
    %v3994 = vmul.f32 %v3546, %v3899
    %v3995 = vmul.f32 %v3547, %v3901
    %v3996 = vmul.f32 %v3548, %v3903
    %v3997 = vmul.f32 %v3549, %v3905
    %v3998 = vmul.f32 %v3550, %v3907
    %v3999 = vmul.f32 %v3551, %v3909
    %v4000 = vmul.f32 %v3552, %v3911
    %v4001 = vmul.f32 %v3553, %v3913
    %v4002 = vmul.f32 %v3554, %v3915
    %v4003 = vmul.f32 %v3555, %v3917
    %v4004 = vmul.f32 %v3556, %v3919
    %v4005 = vmul.f32 %v3557, %v3921
    %v4006 = vmul.f32 %v3558, %v3923
    %v4007 = vmul.f32 %v3559, %v3925
    %v4008 = vmul.f32 %v3560, %v3927
    %v4009 = vmul.f32 %v3561, %v3929
    %v4010 = vmul.f32 %v3562, %v3931
    %v4011 = vmul.f32 %v3563, %v3933
    %v4012 = vmul.f32 %v3564, %v3935
    %v4013 = vmul.f32 %v3565, %v3937
    %v4014 = vmul.f32 %v3566, %v3939
    %v4015 = vmul.f32 %v3567, %v3941
    %v4016 = vmul.f32 %v3568, %v3943
    %v4017 = vmul.f32 %v3569, %v3945
    %v4018 = vmul.f32 %v3570, %v3947
    %v4019 = vmul.f32 %v3571, %v3949
    %v4020 = vmul.f32 %v3572, %v3951
    %v4021 = vmul.f32 %v3573, %v3953
    %v4022 = vmul.f32 %v3574, %v3955
    %v4023 = vmul.f32 %v3575, %v3957
    %v4024 = vmul.f32 %v3576, %v3959
    %v4025 = vmul.f32 %v3577, %v3961
    %4026 = vst [vmem:[#allocation2] sm:$0xff] %v3962
    %4027 = vst [vmem:[#allocation2 + $0x8] sm:$0xff] %v3963
    %4028 = vst [vmem:[#allocation2 + $0x10] sm:$0xff] %v3964
    %4029 = vst [vmem:[#allocation2 + $0x18] sm:$0xff] %v3965
    %4030 = vst [vmem:[#allocation2 + $0x20] sm:$0xff] %v3966
    %4031 = vst [vmem:[#allocation2 + $0x28] sm:$0xff] %v3967
    %4032 = vst [vmem:[#allocation2 + $0x30] sm:$0xff] %v3968
    %4033 = vst [vmem:[#allocation2 + $0x38] sm:$0xff] %v3969
    %4034 = vst [vmem:[#allocation2 + $0x40] sm:$0xff] %v3970
    %4035 = vst [vmem:[#allocation2 + $0x48] sm:$0xff] %v3971
    %4036 = vst [vmem:[#allocation2 + $0x50] sm:$0xff] %v3972
    %4037 = vst [vmem:[#allocation2 + $0x58] sm:$0xff] %v3973
    %4038 = vst [vmem:[#allocation2 + $0x60] sm:$0xff] %v3974
    %4039 = vst [vmem:[#allocation2 + $0x68] sm:$0xff] %v3975
    %4040 = vst [vmem:[#allocation2 + $0x70] sm:$0xff] %v3976
    %4041 = vst [vmem:[#allocation2 + $0x78] sm:$0xff] %v3977
    %4042 = vst [vmem:[#allocation2 + $0x80] sm:$0xff] %v3978
    %4043 = vst [vmem:[#allocation2 + $0x88] sm:$0xff] %v3979
    %4044 = vst [vmem:[#allocation2 + $0x90] sm:$0xff] %v3980
    %4045 = vst [vmem:[#allocation2 + $0x98] sm:$0xff] %v3981
    %4046 = vst [vmem:[#allocation2 + $0xa0] sm:$0xff] %v3982
    %4047 = vst [vmem:[#allocation2 + $0xa8] sm:$0xff] %v3983
    %4048 = vst [vmem:[#allocation2 + $0xb0] sm:$0xff] %v3984
    %4049 = vst [vmem:[#allocation2 + $0xb8] sm:$0xff] %v3985
    %4050 = vst [vmem:[#allocation2 + $0xc0] sm:$0xff] %v3986
    %4051 = vst [vmem:[#allocation2 + $0xc8] sm:$0xff] %v3987
    %4052 = vst [vmem:[#allocation2 + $0xd0] sm:$0xff] %v3988
    %4053 = vst [vmem:[#allocation2 + $0xd8] sm:$0xff] %v3989
    %4054 = vst [vmem:[#allocation2 + $0xe0] sm:$0xff] %v3990
    %4055 = vst [vmem:[#allocation2 + $0xe8] sm:$0xff] %v3991
    %4056 = vst [vmem:[#allocation2 + $0xf0] sm:$0xff] %v3992
    %4057 = vst [vmem:[#allocation2 + $0xf8] sm:$0xff] %v3993
    %4058 = vst [vmem:[#allocation2 + $0x100] sm:$0xff] %v3994
    %4059 = vst [vmem:[#allocation2 + $0x108] sm:$0xff] %v3995
    %4060 = vst [vmem:[#allocation2 + $0x110] sm:$0xff] %v3996
    %4061 = vst [vmem:[#allocation2 + $0x118] sm:$0xff] %v3997
    %4062 = vst [vmem:[#allocation2 + $0x120] sm:$0xff] %v3998
    %4063 = vst [vmem:[#allocation2 + $0x128] sm:$0xff] %v3999
    %4064 = vst [vmem:[#allocation2 + $0x130] sm:$0xff] %v4000
    %4065 = vst [vmem:[#allocation2 + $0x138] sm:$0xff] %v4001
    %4066 = vst [vmem:[#allocation2 + $0x140] sm:$0xff] %v4002
    %4067 = vst [vmem:[#allocation2 + $0x148] sm:$0xff] %v4003
    %4068 = vst [vmem:[#allocation2 + $0x150] sm:$0xff] %v4004
    %4069 = vst [vmem:[#allocation2 + $0x158] sm:$0xff] %v4005
    %4070 = vst [vmem:[#allocation2 + $0x160] sm:$0xff] %v4006
    %4071 = vst [vmem:[#allocation2 + $0x168] sm:$0xff] %v4007
    %4072 = vst [vmem:[#allocation2 + $0x170] sm:$0xff] %v4008
    %4073 = vst [vmem:[#allocation2 + $0x178] sm:$0xff] %v4009
    %4074 = vst [vmem:[#allocation2 + $0x180] sm:$0xff] %v4010
    %4075 = vst [vmem:[#allocation2 + $0x188] sm:$0xff] %v4011
    %4076 = vst [vmem:[#allocation2 + $0x190] sm:$0xff] %v4012
    %4077 = vst [vmem:[#allocation2 + $0x198] sm:$0xff] %v4013
    %4078 = vst [vmem:[#allocation2 + $0x1a0] sm:$0xff] %v4014
    %4079 = vst [vmem:[#allocation2 + $0x1a8] sm:$0xff] %v4015
    %4080 = vst [vmem:[#allocation2 + $0x1b0] sm:$0xff] %v4016
    %4081 = vst [vmem:[#allocation2 + $0x1b8] sm:$0xff] %v4017
    %4082 = vst [vmem:[#allocation2 + $0x1c0] sm:$0xff] %v4018
    %4083 = vst [vmem:[#allocation2 + $0x1c8] sm:$0xff] %v4019
    %4084 = vst [vmem:[#allocation2 + $0x1d0] sm:$0xff] %v4020
    %4085 = vst [vmem:[#allocation2 + $0x1d8] sm:$0xff] %v4021
    %4086 = vst [vmem:[#allocation2 + $0x1e0] sm:$0xff] %v4022
    %4087 = vst [vmem:[#allocation2 + $0x1e8] sm:$0xff] %v4023
    %4088 = vst [vmem:[#allocation2 + $0x1f0] sm:$0xff] %v4024
    %4089 = vst [vmem:[#allocation2 + $0x1f8] sm:$0xff] %v4025
    // Predicated region
    $region22: #{tpu_custom_call.1} parent=1 // pred_check
      _
    $region23: #{tpu_custom_call.1} parent=1 // pred_check_branch
      %4091 = sbr.rel (0) target = $region25
    $region24: #{tpu_custom_call.1} parent=1 // pred_region
      %s4093 = ssub.s32 8192, 8192
      %4094 = vsyncadd [#allocation3], %s4093
      %s4095 = sshll.u32 [#allocation2], 4
      %s4096 = int_to_ptr.vmem [resolvable:$true] %s4095
      %4101 = dma.vmem_to_hbm [thread:$0]  %s4096, 8192, %s5, [#allocation3], 128, 128, 8
    $region25: #{tpu_custom_call.1} parent=1 // pred_fallthru
      _
    // Predicated region
    $region26: #{tpu_custom_call.1} parent=1 // pred_check
      _
    $region27: #{tpu_custom_call.1} parent=1 // pred_check_branch
      %4103 = sbr.rel (0) target = $region29
    $region28: #{tpu_custom_call.1} parent=1 // pred_region
      %4104 = dma.done [#allocation3], 8192
    $region29: #{tpu_custom_call.1} parent=1 // pred_fallthru
      _
    %4105 = vsyncpa [#allocation3], 1

</llo_original>
